<compile_context>
chip_gen: v5e
topology: v5e:2x2
jax: 0.10.0
libtpu: 0.0.40
codegen_flags: <defaults>
</compile_context>

<pallas_src>
import functools

import jax
import jax.numpy as jnp
from jax import lax
from jax.experimental import pallas as pl
from jax.experimental.pallas import tpu as pltpu


def _round_up(x, m):
    return ((x + m - 1) // m) * m


def _residual_se_kernel(x_ref, w1_ref, s1_ref, b1_ref,
                        w2_ref, s2_ref, b2_ref,
                        wfc1t_ref, wfc2_ref,
                        o_ref,
                        halo_scr, strips_scr):
    """One batch block per grid step.

    x_ref      : (Bblk, H, W, Ci)        unpadded NHWC input block (also the residual)
    w1_ref     : (3, 3*Ci, Co)           conv1 weights, per-dh im2col rows (dw, ci)
    w2_ref     : (3, 3*Co, Cp)           conv2 weights, N zero-padded to Cp (lane dense)
    s1/b1      : (1, Co)                 folded BN1 scale / bias (f32)
    s2/b2      : (1, Cp)                 folded BN2 scale / bias, zero-padded (f32)
    wfc1t_ref  : (Cr, Cp)                SE fc1 weight transposed, zero-padded
    wfc2_ref   : (Cr, Cp)                SE fc2 weight, zero-padded
    o_ref      : (Bblk*H*W, Cp)          lane-dense output block
    halo_scr   : (Bblk, H+2, W+2, C)     zero-halo conv input (compute dtype), reused
    strips_scr : (Bblk, H+2, W, 3*C)     dw-shifted strips (compute dtype), reused
    """
    Bblk, H, W, Ci = x_ref.shape
    Co = s1_ref.shape[1]            # true conv channel count
    Cp = o_ref.shape[1]             # lane-padded output channels (multiple of 128)
    Cr = wfc1t_ref.shape[0]
    M = Bblk * H * W
    C = Ci                          # Ci == Co asserted in the wrapper
    cdt = w1_ref.dtype              # MXU compute dtype (bf16 fast path, f32 exact)

    # ---- zero the halo borders once per step; interiors are fully overwritten
    # for each conv and borders are never written, so they stay zero for both.
    zrow = jnp.zeros((Bblk, 1, W + 2, C), cdt)
    zcol = jnp.zeros((Bblk, H + 2, 1, C), cdt)
    halo_scr[:, 0:1, :, :] = zrow
    halo_scr[:, H + 1:H + 2, :, :] = zrow
    halo_scr[:, :, 0:1, :] = zcol
    halo_scr[:, :, W + 1:W + 2, :] = zcol

    def build_strips():
        # strips[b, h', w, dw*C:(dw+1)*C] = halo[b, h', w+dw, :]
        # Only 3 dw (sublane) shifted copies per conv; every element of the
        # strips scratch is overwritten, so no zeroing needed.
        for dw in range(3):
            strips_scr[:, :, :, dw * C:(dw + 1) * C] = halo_scr[:, :, dw:dw + W, :]

    def conv3x3(w_ref):
        # 3 matmuls, one per kernel row dh.  The dh slice of strips is an
        # outer-dim (free) slice, so no per-tap sublane shifts on the MXU path.
        acc = None
        for dh in range(3):
            lhs = strips_scr[:, dh:dh + H, :, :].reshape(M, 3 * C)
            part = jnp.dot(lhs, w_ref[dh], preferred_element_type=jnp.float32)
            acc = part if acc is None else acc + part
        return acc                                             # (M, Ncols) f32

    # ---- conv1 (3x3, pad=1, stride=1, no bias) + bn1 + relu -----------------
    halo_scr[:, 1:H + 1, 1:W + 1, :] = x_ref[...].astype(cdt)
    build_strips()
    acc1 = conv3x3(w1_ref)                                     # (M, Co)
    out1 = jnp.maximum(acc1 * s1_ref[...] + b1_ref[...], 0.0)

    # ---- conv2 (3x3, pad=1, stride=1, no bias) + bn2 ------------------------
    halo_scr[:, 1:H + 1, 1:W + 1, :] = out1.astype(cdt).reshape(Bblk, H, W, Co)
    build_strips()
    acc2 = conv3x3(w2_ref)                                     # (M, Cp)
    out2 = acc2 * s2_ref[...] + b2_ref[...]                    # padded cols stay 0

    # ---- SE: global-avg-pool -> fc1 -> relu -> fc2 -> sigmoid -> scale ------
    out2_3d = out2.reshape(Bblk, H * W, Cp)
    pooled = jnp.mean(out2_3d, axis=1)                         # (Bblk, Cp)
    # fc pair on VPU/XLU: broadcast + lane reduce, then broadcast + sublane
    # reduce (Cr is tiny); padded lanes contribute exactly zero.
    hid = jnp.maximum(
        jnp.sum(pooled[:, None, :] * wfc1t_ref[...][None, :, :], axis=-1), 0.0)  # (Bblk, Cr)
    gate_pre = jnp.sum(hid[:, :, None] * wfc2_ref[...][None, :, :], axis=1)      # (Bblk, Cp)
    gate = jax.nn.sigmoid(gate_pre)
    se_out = (out2_3d * gate[:, None, :]).reshape(M, Cp)       # padded cols = 0

    # ---- identity shortcut (zero-padded to Cp lanes) + final relu -----------
    res = x_ref[...].reshape(M, Ci).astype(jnp.float32)
    if Cp > Ci:
        res = jnp.concatenate(
            [res, jnp.zeros((M, Cp - Ci), jnp.float32)], axis=-1)
    o_ref[...] = jnp.maximum(se_out + res, 0.0).astype(o_ref.dtype)


def _is_megacore():
    """Chips whose TensorCores are exposed as a single device; grid sharding
    across the cores wants >= 2 'parallel' grid steps."""
    try:
        kind = jax.devices()[0].device_kind.lower()
        return ("v7" in kind) or ("v4" in kind)
    except Exception:  # pragma: no cover
        return False


def _choose_block_b(B, per_image_bytes, fixed_bytes, budget_bytes, *, want_two_steps):
    """Largest divisor of B whose per-step VMEM estimate fits the budget; on
    megacore chips also keep >= 2 grid steps so both cores get work."""
    best = 1
    for d in range(1, B + 1):
        if B % d:
            continue
        if fixed_bytes + d * per_image_bytes > budget_bytes:
            continue
        if want_two_steps and B >= 2 and (B // d) < 2:
            continue
        best = d
    return best


def residual_se_block_nhwc(x_nhwc, params, *, block_b=None,
                           compute_dtype=jnp.bfloat16,
                           out_dtype=jnp.float32,
                           vmem_budget_bytes=40 * 2 ** 20):
    """Core NHWC entry point.  x_nhwc: (B, H, W, C) float32 -> (B, H, W, C).

    out_dtype=jnp.bfloat16 halves HBM writeback when the next layer consumes
    bf16 (kept f32 here so the exact-path check stays tight)."""
    B, H, W, C = x_nhwc.shape
    Co = params["w1"].shape[3]
    Cr = params["wfc1"].shape[1]
    assert C == Co, "identity shortcut requires in_channels == out_channels"
    assert Cr >= 1, "out_channels must be >= the SE reduction factor"

    Cp = max(128, _round_up(Co, 128))        # lane-dense output channel width
    cdt = compute_dtype
    csize = jnp.dtype(cdt).itemsize

    # Rough per-step VMEM estimate: double-buffered in/out blocks + scratches
    # + f32 temporaries (fudge).
    per_image = (H * W * C * 4 * 2                      # input block (x2 buffers)
                 + H * W * Cp * jnp.dtype(out_dtype).itemsize * 2   # output block
                 + (H + 2) * (W + 2) * C * csize        # halo scratch
                 + (H + 2) * W * 3 * C * csize          # strips scratch
                 + H * W * (Co + 3 * Cp) * 4)           # f32 temps (fudge)
    fixed = (9 * C * Co + 9 * Co * Cp) * csize * 2 + 6 * Cp * 4 * 2

    if block_b is None:
        block_b = _choose_block_b(B, per_image, fixed, vmem_budget_bytes,
                                  want_two_steps=_is_megacore())
    assert B % block_b == 0
    nsteps = B // block_b
    vmem_need = fixed + block_b * per_image
    vmem_limit = int(min(max(32 * 2 ** 20, 2 * vmem_need), 60 * 2 ** 20))

    # Weight prep: per-dh im2col rows ordered (dw, cin); conv2 / bn2 / SE
    # weights zero-padded on the channel (lane) axis to Cp.
    pad_c = ((0, 0), (0, 0), (0, Cp - Co))
    w1_3d = params["w1"].reshape(3, 3 * C, Co).astype(cdt)
    w2_3d = jnp.pad(params["w2"].reshape(3, 3 * Co, Co).astype(cdt), pad_c)
    s1 = params["bn1_scale"].reshape(1, Co).astype(jnp.float32)
    b1 = params["bn1_bias"].reshape(1, Co).astype(jnp.float32)
    s2 = jnp.pad(params["bn2_scale"].reshape(1, Co),
                 ((0, 0), (0, Cp - Co))).astype(jnp.float32)
    b2 = jnp.pad(params["bn2_bias"].reshape(1, Co),
                 ((0, 0), (0, Cp - Co))).astype(jnp.float32)
    wfc1_t = jnp.pad(params["wfc1"].T,
                     ((0, 0), (0, Cp - Co))).astype(jnp.float32)     # (Cr, Cp)
    wfc2 = jnp.pad(params["wfc2"],
                   ((0, 0), (0, Cp - Co))).astype(jnp.float32)       # (Cr, Cp)

    grid_spec = pltpu.PrefetchScalarGridSpec(
        num_scalar_prefetch=0,
        grid=(nsteps,),
        in_specs=[
            pl.BlockSpec((block_b, H, W, C), lambda b: (b, 0, 0, 0)),
            pl.BlockSpec((3, 3 * C, Co), lambda b: (0, 0, 0)),
            pl.BlockSpec((1, Co), lambda b: (0, 0)),
            pl.BlockSpec((1, Co), lambda b: (0, 0)),
            pl.BlockSpec((3, 3 * Co, Cp), lambda b: (0, 0, 0)),
            pl.BlockSpec((1, Cp), lambda b: (0, 0)),
            pl.BlockSpec((1, Cp), lambda b: (0, 0)),
            pl.BlockSpec((Cr, Cp), lambda b: (0, 0)),
            pl.BlockSpec((Cr, Cp), lambda b: (0, 0)),
        ],
        out_specs=pl.BlockSpec((block_b * H * W, Cp), lambda b: (b, 0)),
        scratch_shapes=[
            pltpu.VMEM((block_b, H + 2, W + 2, C), cdt),
            pltpu.VMEM((block_b, H + 2, W, 3 * C), cdt),
        ],
    )

    out_flat = pl.pallas_call(
        _residual_se_kernel,
        out_shape=jax.ShapeDtypeStruct((B * H * W, Cp), out_dtype),
        grid_spec=grid_spec,
        compiler_params=pltpu.CompilerParams(
            dimension_semantics=("parallel",),
            vmem_limit_bytes=vmem_limit),
    )(x_nhwc, w1_3d, s1, b1, w2_3d, s2, b2, wfc1_t, wfc2)

    out = out_flat.reshape(B, H, W, Cp)
    # In a real network, consume the padded NHWC slab directly (or use Co>=128)
    # instead of slicing here.
    return out[..., :Co] if Cp != Co else out


def residual_se_block(x_nchw, params, *, block_b=None,
                      compute_dtype=jnp.bfloat16, out_dtype=jnp.float32):
    """PyTorch-interface (NCHW) wrapper.  In a real network, stay NHWC and call
    residual_se_block_nhwc directly to avoid the two layout transposes."""
    x = jnp.transpose(x_nchw, (0, 2, 3, 1))
    y = residual_se_block_nhwc(x, params, block_b=block_b,
                               compute_dtype=compute_dtype, out_dtype=out_dtype)
    return jnp.transpose(y, (0, 3, 1, 2))


# ----------------------------- pure-JAX reference ----------------------------
def _conv3x3_ref(x_nhwc, w_hwio):
    return lax.conv_general_dilated(
        x_nhwc, w_hwio, window_strides=(1, 1), padding=((1, 1), (1, 1)),
        dimension_numbers=("NHWC", "HWIO", "NHWC"))


def residual_se_block_ref(x_nchw, params):
    x = jnp.transpose(x_nchw, (0, 2, 3, 1))
    out = _conv3x3_ref(x, params["w1"])
    out = out * params["bn1_scale"] + params["bn1_bias"]
    out = jnp.maximum(out, 0.0)
    out = _conv3x3_ref(out, params["w2"])
    out = out * params["bn2_scale"] + params["bn2_bias"]
    pooled = jnp.mean(out, axis=(1, 2))                            # (B, C)
    hid = jnp.maximum(pooled @ params["wfc1"], 0.0)
    gate = jax.nn.sigmoid(hid @ params["wfc2"])                    # (B, C)
    out = out * gate[:, None, None, :]
    out = jnp.maximum(out + x, 0.0)
    return jnp.transpose(out, (0, 3, 1, 2))


# --------------------------------- parameters --------------------------------
def make_params(key, in_channels, out_channels, reduction=16, eps=1e-5):
    cr = out_channels // reduction
    assert cr >= 1, "out_channels must be >= reduction for the SE hidden dim"
    ks = jax.random.split(key, 10)
    w1 = 0.1 * jax.random.normal(ks[0], (3, 3, in_channels, out_channels), jnp.float32)
    w2 = 0.1 * jax.random.normal(ks[1], (3, 3, out_channels, out_channels), jnp.float32)
    wfc1 = 0.2 * jax.random.normal(ks[2], (out_channels, cr), jnp.float32)
    wfc2 = 0.2 * jax.random.normal(ks[3], (cr, out_channels), jnp.float32)

    def bn_fold(kg, kb, km, kv):
        gamma = 1.0 + 0.1 * jax.random.normal(kg, (out_channels,), jnp.float32)
        beta = 0.1 * jax.random.normal(kb, (out_channels,), jnp.float32)
        mean = 0.1 * jax.random.normal(km, (out_channels,), jnp.float32)
        var = jax.random.uniform(kv, (out_channels,), jnp.float32, 0.5, 1.5)
        scale = gamma / jnp.sqrt(var + eps)
        bias = beta - mean * scale
        return scale, bias

    bn1_scale, bn1_bias = bn_fold(ks[4], ks[5], ks[6], ks[7])
    bn2_scale, bn2_bias = bn_fold(ks[8], ks[9], ks[4], ks[5])
    return dict(w1=w1, w2=w2, wfc1=wfc1, wfc2=wfc2,
                bn1_scale=bn1_scale, bn1_bias=bn1_bias,
                bn2_scale=bn2_scale, bn2_bias=bn2_bias)


if __name__ == "__main__":
    # channels >= reduction(16) so the SE hidden dim >= 1.
    B, C, H, W = 4, 32, 8, 8
    key = jax.random.PRNGKey(0)
    kx, kp = jax.random.split(key)
    x = jax.random.normal(kx, (B, C, H, W), jnp.float32)
    params = make_params(kp, in_channels=C, out_channels=C, reduction=16)

    ref = residual_se_block_ref(x, params)

    # Exact (f32 MXU) path, auto block_b (single grid step on 1-TC chips).
    fwd_f32 = jax.jit(functools.partial(residual_se_block,
                                        compute_dtype=jnp.float32))
    out_f32 = jax.block_until_ready(fwd_f32(x, params))
    assert out_f32.shape == (B, C, H, W)
    assert jnp.allclose(out_f32, ref, atol=1e-3, rtol=1e-3), \
        float(jnp.max(jnp.abs(out_f32 - ref)))

    # Fast (bf16 MXU inputs, f32 accumulate) path with an explicit 2-step grid
    # (exercises batch blocking / megacore sharding).  Loose check.
    fwd_bf16 = jax.jit(functools.partial(residual_se_block, block_b=2,
                                         compute_dtype=jnp.bfloat16))
    out_bf16 = jax.block_until_ready(fwd_bf16(x, params))
    err = float(jnp.max(jnp.abs(out_bf16 - ref)))
    assert err < 0.25, err

    print("KERNEL_OK")
</pallas_src>

<mosaic_0001>
module attributes {stable_mosaic.version = 11 : i64} {
  func.func @_residual_se_kernel(%arg0: i32, %arg1: memref<4x8x8x32xf32, #tpu.memory_space<vmem>>, %arg2: memref<3x96x32xf32, #tpu.memory_space<vmem>>, %arg3: memref<1x32xf32, #tpu.memory_space<vmem>>, %arg4: memref<1x32xf32, #tpu.memory_space<vmem>>, %arg5: memref<3x96x128xf32, #tpu.memory_space<vmem>>, %arg6: memref<1x128xf32, #tpu.memory_space<vmem>>, %arg7: memref<1x128xf32, #tpu.memory_space<vmem>>, %arg8: memref<2x128xf32, #tpu.memory_space<vmem>>, %arg9: memref<2x128xf32, #tpu.memory_space<vmem>>, %arg10: memref<256x128xf32, #tpu.memory_space<vmem>>, %arg11: memref<4x10x10x32xf32, #tpu.memory_space<vmem>>, %arg12: memref<4x10x8x96xf32, #tpu.memory_space<vmem>>) attributes {dimension_semantics = [#tpu.dimension_semantics<parallel>], iteration_bounds = array<i64: 1>, scalar_prefetch = 0 : i64, scratch_operands = 2 : i64, tpu.core_type = #tpu.core_type<tc>, window_params = [{transform_indices = @transform_0, window_bounds = array<i64: 4, 8, 8, 32>}, {pipeline_mode = #tpu.pipeline_mode<synchronous>, transform_indices = @transform_1, window_bounds = array<i64: 3, 96, 32>}, {pipeline_mode = #tpu.pipeline_mode<synchronous>, transform_indices = @transform_2, window_bounds = array<i64: 1, 32>}, {pipeline_mode = #tpu.pipeline_mode<synchronous>, transform_indices = @transform_3, window_bounds = array<i64: 1, 32>}, {pipeline_mode = #tpu.pipeline_mode<synchronous>, transform_indices = @transform_4, window_bounds = array<i64: 3, 96, 128>}, {pipeline_mode = #tpu.pipeline_mode<synchronous>, transform_indices = @transform_5, window_bounds = array<i64: 1, 128>}, {pipeline_mode = #tpu.pipeline_mode<synchronous>, transform_indices = @transform_6, window_bounds = array<i64: 1, 128>}, {pipeline_mode = #tpu.pipeline_mode<synchronous>, transform_indices = @transform_7, window_bounds = array<i64: 2, 128>}, {pipeline_mode = #tpu.pipeline_mode<synchronous>, transform_indices = @transform_8, window_bounds = array<i64: 2, 128>}, {transform_indices = @transform_9, window_bounds = array<i64: 256, 128>}]} {
    %cst = arith.constant 0.000000e+00 : f32
    %0 = vector.broadcast %cst : f32 to vector<4x1x10x32xf32>
    %cst_0 = arith.constant 0.000000e+00 : f32
    %1 = vector.broadcast %cst_0 : f32 to vector<4x10x1x32xf32>
    %c0 = arith.constant 0 : index
    %c0_1 = arith.constant 0 : index
    %c0_2 = arith.constant 0 : index
    %c0_3 = arith.constant 0 : index
    %2 = vector.load %arg11[%c0, %c0_1, %c0_2, %c0_3] : memref<4x10x10x32xf32, #tpu.memory_space<vmem>>, vector<4x1x10x32xf32>
    tpu.vector_store %arg11[%c0, %c0_1, %c0_2, %c0_3], %0 {strides = array<i32>} : memref<4x10x10x32xf32, #tpu.memory_space<vmem>>, vector<4x1x10x32xf32>,
    %c0_4 = arith.constant 0 : index
    %c9 = arith.constant 9 : index
    %c0_5 = arith.constant 0 : index
    %c0_6 = arith.constant 0 : index
    %3 = vector.load %arg11[%c0_4, %c9, %c0_5, %c0_6] : memref<4x10x10x32xf32, #tpu.memory_space<vmem>>, vector<4x1x10x32xf32>
    tpu.vector_store %arg11[%c0_4, %c9, %c0_5, %c0_6], %0 {strides = array<i32>} : memref<4x10x10x32xf32, #tpu.memory_space<vmem>>, vector<4x1x10x32xf32>,
    %c0_7 = arith.constant 0 : index
    %c0_8 = arith.constant 0 : index
    %c0_9 = arith.constant 0 : index
    %c0_10 = arith.constant 0 : index
    %4 = vector.load %arg11[%c0_7, %c0_8, %c0_9, %c0_10] : memref<4x10x10x32xf32, #tpu.memory_space<vmem>>, vector<4x10x1x32xf32>
    tpu.vector_store %arg11[%c0_7, %c0_8, %c0_9, %c0_10], %1 {strides = array<i32>} : memref<4x10x10x32xf32, #tpu.memory_space<vmem>>, vector<4x10x1x32xf32>,
    %c0_11 = arith.constant 0 : index
    %c0_12 = arith.constant 0 : index
    %c9_13 = arith.constant 9 : index
    %c0_14 = arith.constant 0 : index
    %5 = vector.load %arg11[%c0_11, %c0_12, %c9_13, %c0_14] : memref<4x10x10x32xf32, #tpu.memory_space<vmem>>, vector<4x10x1x32xf32>
    tpu.vector_store %arg11[%c0_11, %c0_12, %c9_13, %c0_14], %1 {strides = array<i32>} : memref<4x10x10x32xf32, #tpu.memory_space<vmem>>, vector<4x10x1x32xf32>,
    %c0_15 = arith.constant 0 : index
    %c0_16 = arith.constant 0 : index
    %c0_17 = arith.constant 0 : index
    %c0_18 = arith.constant 0 : index
    %6 = vector.load %arg1[%c0_15, %c0_16, %c0_17, %c0_18] : memref<4x8x8x32xf32, #tpu.memory_space<vmem>>, vector<4x8x8x32xf32>
    %c0_19 = arith.constant 0 : index
    %c1 = arith.constant 1 : index
    %c1_20 = arith.constant 1 : index
    %c0_21 = arith.constant 0 : index
    %7 = vector.load %arg11[%c0_19, %c1, %c1_20, %c0_21] : memref<4x10x10x32xf32, #tpu.memory_space<vmem>>, vector<4x8x8x32xf32>
    tpu.vector_store %arg11[%c0_19, %c1, %c1_20, %c0_21], %6 {strides = array<i32>} : memref<4x10x10x32xf32, #tpu.memory_space<vmem>>, vector<4x8x8x32xf32>,
    %c0_22 = arith.constant 0 : index
    %c0_23 = arith.constant 0 : index
    %c0_24 = arith.constant 0 : index
    %c0_25 = arith.constant 0 : index
    %8 = vector.load %arg11[%c0_22, %c0_23, %c0_24, %c0_25] : memref<4x10x10x32xf32, #tpu.memory_space<vmem>>, vector<4x10x8x32xf32>
    %c0_26 = arith.constant 0 : index
    %c0_27 = arith.constant 0 : index
    %c0_28 = arith.constant 0 : index
    %c0_29 = arith.constant 0 : index
    %9 = vector.load %arg12[%c0_26, %c0_27, %c0_28, %c0_29] : memref<4x10x8x96xf32, #tpu.memory_space<vmem>>, vector<4x10x8x32xf32>
    tpu.vector_store %arg12[%c0_26, %c0_27, %c0_28, %c0_29], %8 {strides = array<i32>} : memref<4x10x8x96xf32, #tpu.memory_space<vmem>>, vector<4x10x8x32xf32>,
    %c0_30 = arith.constant 0 : index
    %c0_31 = arith.constant 0 : index
    %c1_32 = arith.constant 1 : index
    %c0_33 = arith.constant 0 : index
    %10 = vector.load %arg11[%c0_30, %c0_31, %c1_32, %c0_33] : memref<4x10x10x32xf32, #tpu.memory_space<vmem>>, vector<4x10x8x32xf32>
    %c0_34 = arith.constant 0 : index
    %c0_35 = arith.constant 0 : index
    %c0_36 = arith.constant 0 : index
    %c32 = arith.constant 32 : index
    %11 = vector.load %arg12[%c0_34, %c0_35, %c0_36, %c32] : memref<4x10x8x96xf32, #tpu.memory_space<vmem>>, vector<4x10x8x32xf32>
    tpu.vector_store %arg12[%c0_34, %c0_35, %c0_36, %c32], %10 {strides = array<i32>} : memref<4x10x8x96xf32, #tpu.memory_space<vmem>>, vector<4x10x8x32xf32>,
    %c0_37 = arith.constant 0 : index
    %c0_38 = arith.constant 0 : index
    %c2 = arith.constant 2 : index
    %c0_39 = arith.constant 0 : index
    %12 = vector.load %arg11[%c0_37, %c0_38, %c2, %c0_39] : memref<4x10x10x32xf32, #tpu.memory_space<vmem>>, vector<4x10x8x32xf32>
    %c0_40 = arith.constant 0 : index
    %c0_41 = arith.constant 0 : index
    %c0_42 = arith.constant 0 : index
    %c64 = arith.constant 64 : index
    %13 = vector.load %arg12[%c0_40, %c0_41, %c0_42, %c64] : memref<4x10x8x96xf32, #tpu.memory_space<vmem>>, vector<4x10x8x32xf32>
    tpu.vector_store %arg12[%c0_40, %c0_41, %c0_42, %c64], %12 {strides = array<i32>} : memref<4x10x8x96xf32, #tpu.memory_space<vmem>>, vector<4x10x8x32xf32>,
    %c0_43 = arith.constant 0 : index
    %c0_44 = arith.constant 0 : index
    %c0_45 = arith.constant 0 : index
    %c0_46 = arith.constant 0 : index
    %14 = vector.load %arg12[%c0_43, %c0_44, %c0_45, %c0_46] : memref<4x10x8x96xf32, #tpu.memory_space<vmem>>, vector<4x8x8x96xf32>
    %15 = vector.shape_cast %14 : vector<4x8x8x96xf32> to vector<256x96xf32>
    %c0_47 = arith.constant 0 : index
    %c0_48 = arith.constant 0 : index
    %c0_49 = arith.constant 0 : index
    %16 = vector.load %arg2[%c0_47, %c0_48, %c0_49] : memref<3x96x32xf32, #tpu.memory_space<vmem>>, vector<1x96x32xf32>
    %17 = vector.shape_cast %16 : vector<1x96x32xf32> to vector<96x32xf32>
    %cst_50 = arith.constant dense<0.000000e+00> : vector<256x32xf32>
    %18 = tpu.matmul %15, %17, %cst_50 {dimension_numbers = #tpu.dot_dimension_numbers<[1], [0], [0], [1], [0, 0, 1, 1], [], []>} : vector<256x96xf32>, vector<96x32xf32>, vector<256x32xf32> -> vector<256x32xf32>
    %c0_51 = arith.constant 0 : index
    %c1_52 = arith.constant 1 : index
    %c0_53 = arith.constant 0 : index
    %c0_54 = arith.constant 0 : index
    %19 = vector.load %arg12[%c0_51, %c1_52, %c0_53, %c0_54] : memref<4x10x8x96xf32, #tpu.memory_space<vmem>>, vector<4x8x8x96xf32>
    %20 = vector.shape_cast %19 : vector<4x8x8x96xf32> to vector<256x96xf32>
    %c1_55 = arith.constant 1 : index
    %c0_56 = arith.constant 0 : index
    %c0_57 = arith.constant 0 : index
    %21 = vector.load %arg2[%c1_55, %c0_56, %c0_57] : memref<3x96x32xf32, #tpu.memory_space<vmem>>, vector<1x96x32xf32>
    %22 = vector.shape_cast %21 : vector<1x96x32xf32> to vector<96x32xf32>
    %cst_58 = arith.constant dense<0.000000e+00> : vector<256x32xf32>
    %23 = tpu.matmul %20, %22, %cst_58 {dimension_numbers = #tpu.dot_dimension_numbers<[1], [0], [0], [1], [0, 0, 1, 1], [], []>} : vector<256x96xf32>, vector<96x32xf32>, vector<256x32xf32> -> vector<256x32xf32>
    %24 = arith.addf %18, %23 : vector<256x32xf32>
    %c0_59 = arith.constant 0 : index
    %c2_60 = arith.constant 2 : index
    %c0_61 = arith.constant 0 : index
    %c0_62 = arith.constant 0 : index
    %25 = vector.load %arg12[%c0_59, %c2_60, %c0_61, %c0_62] : memref<4x10x8x96xf32, #tpu.memory_space<vmem>>, vector<4x8x8x96xf32>
    %26 = vector.shape_cast %25 : vector<4x8x8x96xf32> to vector<256x96xf32>
    %c2_63 = arith.constant 2 : index
    %c0_64 = arith.constant 0 : index
    %c0_65 = arith.constant 0 : index
    %27 = vector.load %arg2[%c2_63, %c0_64, %c0_65] : memref<3x96x32xf32, #tpu.memory_space<vmem>>, vector<1x96x32xf32>
    %28 = vector.shape_cast %27 : vector<1x96x32xf32> to vector<96x32xf32>
    %cst_66 = arith.constant dense<0.000000e+00> : vector<256x32xf32>
    %29 = tpu.matmul %26, %28, %cst_66 {dimension_numbers = #tpu.dot_dimension_numbers<[1], [0], [0], [1], [0, 0, 1, 1], [], []>} : vector<256x96xf32>, vector<96x32xf32>, vector<256x32xf32> -> vector<256x32xf32>
    %30 = arith.addf %24, %29 : vector<256x32xf32>
    %c0_67 = arith.constant 0 : index
    %c0_68 = arith.constant 0 : index
    %31 = vector.load %arg3[%c0_67, %c0_68] : memref<1x32xf32, #tpu.memory_space<vmem>>, vector<1x32xf32>
    %32 = vector.broadcast %31 : vector<1x32xf32> to vector<256x32xf32>
    %33 = arith.mulf %30, %32 : vector<256x32xf32>
    %c0_69 = arith.constant 0 : index
    %c0_70 = arith.constant 0 : index
    %34 = vector.load %arg4[%c0_69, %c0_70] : memref<1x32xf32, #tpu.memory_space<vmem>>, vector<1x32xf32>
    %35 = vector.broadcast %34 : vector<1x32xf32> to vector<256x32xf32>
    %36 = arith.addf %33, %35 : vector<256x32xf32>
    %cst_71 = arith.constant 0.000000e+00 : f32
    %37 = vector.broadcast %cst_71 : f32 to vector<256x32xf32>
    %38 = arith.maximumf %36, %37 : vector<256x32xf32>
    %39 = vector.shape_cast %38 : vector<256x32xf32> to vector<4x8x8x32xf32>
    %c0_72 = arith.constant 0 : index
    %c1_73 = arith.constant 1 : index
    %c1_74 = arith.constant 1 : index
    %c0_75 = arith.constant 0 : index
    %40 = vector.load %arg11[%c0_72, %c1_73, %c1_74, %c0_75] : memref<4x10x10x32xf32, #tpu.memory_space<vmem>>, vector<4x8x8x32xf32>
    tpu.vector_store %arg11[%c0_72, %c1_73, %c1_74, %c0_75], %39 {strides = array<i32>} : memref<4x10x10x32xf32, #tpu.memory_space<vmem>>, vector<4x8x8x32xf32>,
    %c0_76 = arith.constant 0 : index
    %c0_77 = arith.constant 0 : index
    %c0_78 = arith.constant 0 : index
    %c0_79 = arith.constant 0 : index
    %41 = vector.load %arg11[%c0_76, %c0_77, %c0_78, %c0_79] : memref<4x10x10x32xf32, #tpu.memory_space<vmem>>, vector<4x10x8x32xf32>
    %c0_80 = arith.constant 0 : index
    %c0_81 = arith.constant 0 : index
    %c0_82 = arith.constant 0 : index
    %c0_83 = arith.constant 0 : index
    %42 = vector.load %arg12[%c0_80, %c0_81, %c0_82, %c0_83] : memref<4x10x8x96xf32, #tpu.memory_space<vmem>>, vector<4x10x8x32xf32>
    tpu.vector_store %arg12[%c0_80, %c0_81, %c0_82, %c0_83], %41 {strides = array<i32>} : memref<4x10x8x96xf32, #tpu.memory_space<vmem>>, vector<4x10x8x32xf32>,
    %c0_84 = arith.constant 0 : index
    %c0_85 = arith.constant 0 : index
    %c1_86 = arith.constant 1 : index
    %c0_87 = arith.constant 0 : index
    %43 = vector.load %arg11[%c0_84, %c0_85, %c1_86, %c0_87] : memref<4x10x10x32xf32, #tpu.memory_space<vmem>>, vector<4x10x8x32xf32>
    %c0_88 = arith.constant 0 : index
    %c0_89 = arith.constant 0 : index
    %c0_90 = arith.constant 0 : index
    %c32_91 = arith.constant 32 : index
    %44 = vector.load %arg12[%c0_88, %c0_89, %c0_90, %c32_91] : memref<4x10x8x96xf32, #tpu.memory_space<vmem>>, vector<4x10x8x32xf32>
    tpu.vector_store %arg12[%c0_88, %c0_89, %c0_90, %c32_91], %43 {strides = array<i32>} : memref<4x10x8x96xf32, #tpu.memory_space<vmem>>, vector<4x10x8x32xf32>,
    %c0_92 = arith.constant 0 : index
    %c0_93 = arith.constant 0 : index
    %c2_94 = arith.constant 2 : index
    %c0_95 = arith.constant 0 : index
    %45 = vector.load %arg11[%c0_92, %c0_93, %c2_94, %c0_95] : memref<4x10x10x32xf32, #tpu.memory_space<vmem>>, vector<4x10x8x32xf32>
    %c0_96 = arith.constant 0 : index
    %c0_97 = arith.constant 0 : index
    %c0_98 = arith.constant 0 : index
    %c64_99 = arith.constant 64 : index
    %46 = vector.load %arg12[%c0_96, %c0_97, %c0_98, %c64_99] : memref<4x10x8x96xf32, #tpu.memory_space<vmem>>, vector<4x10x8x32xf32>
    tpu.vector_store %arg12[%c0_96, %c0_97, %c0_98, %c64_99], %45 {strides = array<i32>} : memref<4x10x8x96xf32, #tpu.memory_space<vmem>>, vector<4x10x8x32xf32>,
    %c0_100 = arith.constant 0 : index
    %c0_101 = arith.constant 0 : index
    %c0_102 = arith.constant 0 : index
    %c0_103 = arith.constant 0 : index
    %47 = vector.load %arg12[%c0_100, %c0_101, %c0_102, %c0_103] : memref<4x10x8x96xf32, #tpu.memory_space<vmem>>, vector<4x8x8x96xf32>
    %48 = vector.shape_cast %47 : vector<4x8x8x96xf32> to vector<256x96xf32>
    %c0_104 = arith.constant 0 : index
    %c0_105 = arith.constant 0 : index
    %c0_106 = arith.constant 0 : index
    %49 = vector.load %arg5[%c0_104, %c0_105, %c0_106] : memref<3x96x128xf32, #tpu.memory_space<vmem>>, vector<1x96x128xf32>
    %50 = vector.shape_cast %49 : vector<1x96x128xf32> to vector<96x128xf32>
    %cst_107 = arith.constant dense<0.000000e+00> : vector<256x128xf32>
    %51 = tpu.matmul %48, %50, %cst_107 {dimension_numbers = #tpu.dot_dimension_numbers<[1], [0], [0], [1], [0, 0, 1, 1], [], []>} : vector<256x96xf32>, vector<96x128xf32>, vector<256x128xf32> -> vector<256x128xf32>
    %c0_108 = arith.constant 0 : index
    %c1_109 = arith.constant 1 : index
    %c0_110 = arith.constant 0 : index
    %c0_111 = arith.constant 0 : index
    %52 = vector.load %arg12[%c0_108, %c1_109, %c0_110, %c0_111] : memref<4x10x8x96xf32, #tpu.memory_space<vmem>>, vector<4x8x8x96xf32>
    %53 = vector.shape_cast %52 : vector<4x8x8x96xf32> to vector<256x96xf32>
    %c1_112 = arith.constant 1 : index
    %c0_113 = arith.constant 0 : index
    %c0_114 = arith.constant 0 : index
    %54 = vector.load %arg5[%c1_112, %c0_113, %c0_114] : memref<3x96x128xf32, #tpu.memory_space<vmem>>, vector<1x96x128xf32>
    %55 = vector.shape_cast %54 : vector<1x96x128xf32> to vector<96x128xf32>
    %cst_115 = arith.constant dense<0.000000e+00> : vector<256x128xf32>
    %56 = tpu.matmul %53, %55, %cst_115 {dimension_numbers = #tpu.dot_dimension_numbers<[1], [0], [0], [1], [0, 0, 1, 1], [], []>} : vector<256x96xf32>, vector<96x128xf32>, vector<256x128xf32> -> vector<256x128xf32>
    %57 = arith.addf %51, %56 : vector<256x128xf32>
    %c0_116 = arith.constant 0 : index
    %c2_117 = arith.constant 2 : index
    %c0_118 = arith.constant 0 : index
    %c0_119 = arith.constant 0 : index
    %58 = vector.load %arg12[%c0_116, %c2_117, %c0_118, %c0_119] : memref<4x10x8x96xf32, #tpu.memory_space<vmem>>, vector<4x8x8x96xf32>
    %59 = vector.shape_cast %58 : vector<4x8x8x96xf32> to vector<256x96xf32>
    %c2_120 = arith.constant 2 : index
    %c0_121 = arith.constant 0 : index
    %c0_122 = arith.constant 0 : index
    %60 = vector.load %arg5[%c2_120, %c0_121, %c0_122] : memref<3x96x128xf32, #tpu.memory_space<vmem>>, vector<1x96x128xf32>
    %61 = vector.shape_cast %60 : vector<1x96x128xf32> to vector<96x128xf32>
    %cst_123 = arith.constant dense<0.000000e+00> : vector<256x128xf32>
    %62 = tpu.matmul %59, %61, %cst_123 {dimension_numbers = #tpu.dot_dimension_numbers<[1], [0], [0], [1], [0, 0, 1, 1], [], []>} : vector<256x96xf32>, vector<96x128xf32>, vector<256x128xf32> -> vector<256x128xf32>
    %63 = arith.addf %57, %62 : vector<256x128xf32>
    %c0_124 = arith.constant 0 : index
    %c0_125 = arith.constant 0 : index
    %64 = vector.load %arg6[%c0_124, %c0_125] : memref<1x128xf32, #tpu.memory_space<vmem>>, vector<1x128xf32>
    %65 = vector.broadcast %64 : vector<1x128xf32> to vector<256x128xf32>
    %66 = arith.mulf %63, %65 : vector<256x128xf32>
    %c0_126 = arith.constant 0 : index
    %c0_127 = arith.constant 0 : index
    %67 = vector.load %arg7[%c0_126, %c0_127] : memref<1x128xf32, #tpu.memory_space<vmem>>, vector<1x128xf32>
    %68 = vector.broadcast %67 : vector<1x128xf32> to vector<256x128xf32>
    %69 = arith.addf %66, %68 : vector<256x128xf32>
    %70 = vector.shape_cast %69 : vector<256x128xf32> to vector<4x64x128xf32>
    %cst_128 = arith.constant dense<0.000000e+00> : vector<4x128xf32>
    %71 = vector.multi_reduction <add>, %70, %cst_128 [1] : vector<4x64x128xf32> to vector<4x128xf32>
    %cst_129 = arith.constant 6.400000e+01 : f32
    %72 = vector.broadcast %cst_129 : f32 to vector<4x128xf32>
    %73 = arith.divf %71, %72 : vector<4x128xf32>
    %74 = vector.shape_cast %73 : vector<4x128xf32> to vector<4x1x128xf32>
    %c0_130 = arith.constant 0 : index
    %c0_131 = arith.constant 0 : index
    %75 = vector.load %arg8[%c0_130, %c0_131] : memref<2x128xf32, #tpu.memory_space<vmem>>, vector<2x128xf32>
    %76 = vector.shape_cast %75 : vector<2x128xf32> to vector<1x2x128xf32>
    %77 = vector.broadcast %74 : vector<4x1x128xf32> to vector<4x2x128xf32>
    %78 = vector.broadcast %76 : vector<1x2x128xf32> to vector<4x2x128xf32>
    %79 = arith.mulf %77, %78 : vector<4x2x128xf32>
    %cst_132 = arith.constant dense<0.000000e+00> : vector<4x2xf32>
    %80 = vector.multi_reduction <add>, %79, %cst_132 [2] : vector<4x2x128xf32> to vector<4x2xf32>
    %cst_133 = arith.constant 0.000000e+00 : f32
    %81 = vector.broadcast %cst_133 : f32 to vector<4x2xf32>
    %82 = arith.maximumf %80, %81 : vector<4x2xf32>
    %83 = vector.shape_cast %82 : vector<4x2xf32> to vector<4x2x1xf32>
    %c0_134 = arith.constant 0 : index
    %c0_135 = arith.constant 0 : index
    %84 = vector.load %arg9[%c0_134, %c0_135] : memref<2x128xf32, #tpu.memory_space<vmem>>, vector<2x128xf32>
    %85 = vector.shape_cast %84 : vector<2x128xf32> to vector<1x2x128xf32>
    %86 = vector.broadcast %83 : vector<4x2x1xf32> to vector<4x2x128xf32>
    %87 = vector.broadcast %85 : vector<1x2x128xf32> to vector<4x2x128xf32>
    %88 = arith.mulf %86, %87 : vector<4x2x128xf32>
    %cst_136 = arith.constant dense<0.000000e+00> : vector<4x128xf32>
    %89 = vector.multi_reduction <add>, %88, %cst_136 [1] : vector<4x2x128xf32> to vector<4x128xf32>
    %90 = arith.negf %89 : vector<4x128xf32>
    %91 = math.exp %90 : vector<4x128xf32>
    %cst_137 = arith.constant 1.000000e+00 : f32
    %92 = vector.broadcast %cst_137 : f32 to vector<4x128xf32>
    %93 = arith.addf %92, %91 : vector<4x128xf32>
    %94 = arith.divf %92, %93 : vector<4x128xf32>
    %95 = vector.shape_cast %94 : vector<4x128xf32> to vector<4x1x128xf32>
    %96 = vector.broadcast %95 : vector<4x1x128xf32> to vector<4x64x128xf32>
    %97 = arith.mulf %70, %96 : vector<4x64x128xf32>
    %98 = vector.shape_cast %97 : vector<4x64x128xf32> to vector<256x128xf32>
    %c0_138 = arith.constant 0 : index
    %c0_139 = arith.constant 0 : index
    %c0_140 = arith.constant 0 : index
    %c0_141 = arith.constant 0 : index
    %99 = vector.load %arg1[%c0_138, %c0_139, %c0_140, %c0_141] : memref<4x8x8x32xf32, #tpu.memory_space<vmem>>, vector<4x8x8x32xf32>
    %100 = vector.shape_cast %99 : vector<4x8x8x32xf32> to vector<256x32xf32>
    %cst_142 = arith.constant 0.000000e+00 : f32
    %101 = vector.broadcast %cst_142 : f32 to vector<256x96xf32>
    %102 = tpu.concatenate %100, %101 in 1 : vector<256x32xf32>, vector<256x96xf32> -> vector<256x128xf32>
    %103 = arith.addf %98, %102 : vector<256x128xf32>
    %cst_143 = arith.constant 0.000000e+00 : f32
    %104 = vector.broadcast %cst_143 : f32 to vector<256x128xf32>
    %105 = arith.maximumf %103, %104 : vector<256x128xf32>
    %c0_144 = arith.constant 0 : index
    %c0_145 = arith.constant 0 : index
    %106 = vector.load %arg10[%c0_144, %c0_145] : memref<256x128xf32, #tpu.memory_space<vmem>>, vector<256x128xf32>
    tpu.vector_store %arg10[%c0_144, %c0_145], %105 {strides = array<i32>} : memref<256x128xf32, #tpu.memory_space<vmem>>, vector<256x128xf32>,
    return
  }
  func.func @transform_0(%arg0: i32) -> (i32, i32, i32, i32) {
    %c0_i32 = arith.constant 0 : i32
    %c0_i32_0 = arith.constant 0 : i32
    %c0_i32_1 = arith.constant 0 : i32
    %c0_i32_2 = arith.constant 0 : i32
    return %arg0, %c0_i32, %c0_i32_0, %c0_i32_1 : i32, i32, i32, i32
  }
  func.func @transform_1(%arg0: i32) -> (i32, i32, i32) {
    %c0_i32 = arith.constant 0 : i32
    %c0_i32_0 = arith.constant 0 : i32
    %c0_i32_1 = arith.constant 0 : i32
    %c0_i32_2 = arith.constant 0 : i32
    return %c0_i32, %c0_i32_0, %c0_i32_1 : i32, i32, i32
  }
  func.func @transform_2(%arg0: i32) -> (i32, i32) {
    %c0_i32 = arith.constant 0 : i32
    %c0_i32_0 = arith.constant 0 : i32
    %c0_i32_1 = arith.constant 0 : i32
    return %c0_i32, %c0_i32_0 : i32, i32
  }
  func.func @transform_3(%arg0: i32) -> (i32, i32) {
    %c0_i32 = arith.constant 0 : i32
    %c0_i32_0 = arith.constant 0 : i32
    %c0_i32_1 = arith.constant 0 : i32
    return %c0_i32, %c0_i32_0 : i32, i32
  }
  func.func @transform_4(%arg0: i32) -> (i32, i32, i32) {
    %c0_i32 = arith.constant 0 : i32
    %c0_i32_0 = arith.constant 0 : i32
    %c0_i32_1 = arith.constant 0 : i32
    %c0_i32_2 = arith.constant 0 : i32
    return %c0_i32, %c0_i32_0, %c0_i32_1 : i32, i32, i32
  }
  func.func @transform_5(%arg0: i32) -> (i32, i32) {
    %c0_i32 = arith.constant 0 : i32
    %c0_i32_0 = arith.constant 0 : i32
    %c0_i32_1 = arith.constant 0 : i32
    return %c0_i32, %c0_i32_0 : i32, i32
  }
  func.func @transform_6(%arg0: i32) -> (i32, i32) {
    %c0_i32 = arith.constant 0 : i32
    %c0_i32_0 = arith.constant 0 : i32
    %c0_i32_1 = arith.constant 0 : i32
    return %c0_i32, %c0_i32_0 : i32, i32
  }
  func.func @transform_7(%arg0: i32) -> (i32, i32) {
    %c0_i32 = arith.constant 0 : i32
    %c0_i32_0 = arith.constant 0 : i32
    %c0_i32_1 = arith.constant 0 : i32
    return %c0_i32, %c0_i32_0 : i32, i32
  }
  func.func @transform_8(%arg0: i32) -> (i32, i32) {
    %c0_i32 = arith.constant 0 : i32
    %c0_i32_0 = arith.constant 0 : i32
    %c0_i32_1 = arith.constant 0 : i32
    return %c0_i32, %c0_i32_0 : i32, i32
  }
  func.func @transform_9(%arg0: i32) -> (i32, i32) {
    %c0_i32 = arith.constant 0 : i32
    %c0_i32_0 = arith.constant 0 : i32
    return %arg0, %c0_i32 : i32, i32
  }
}

</mosaic_0001>

<llo_original>
// kernel: residual_se_block.1
$region0: #{residual_se_block.1}
  #allocation0 [shape = 'u32[]', space=smem, size = 0x4, offset = 0x4, fixed_abs, tag = 'smem constant byte address 0x4 - core index']
  #allocation1 [shape = 'u32[72,128]{1,0:T(1,128)}', space=vmem, size = 0x9000, scoped, tag = 'internal scratch']
  #allocation2 [shape = 'f32[4,10,10,32]{3,2,1,0:T(8,128)}', space=vmem, size = 0x50000, scoped, tag = 'scratch operand']
  #allocation3 [shape = 'f32[4,10,8,96]{3,2,1,0:T(8,128)}', space=vmem, size = 0x28000, scoped, tag = 'scratch operand']
  %s0 = inlined_call_operand.vmem [shape: f32[4,8,8,32], index: 0, kind: input, shape index: {}]
  %s1 = inlined_call_operand.vmem [shape: f32[3,96,32], index: 1, kind: input, shape index: {}]
  %s2 = inlined_call_operand.vmem [shape: f32[1,32], index: 2, kind: input, shape index: {}]
  %s3 = inlined_call_operand.vmem [shape: f32[1,32], index: 3, kind: input, shape index: {}]
  %s4 = inlined_call_operand.vmem [shape: f32[3,96,128], index: 4, kind: input, shape index: {}]
  %s5 = inlined_call_operand.vmem [shape: f32[1,128], index: 5, kind: input, shape index: {}]
  %s6 = inlined_call_operand.vmem [shape: f32[1,128], index: 6, kind: input, shape index: {}]
  %s7 = inlined_call_operand.vmem [shape: f32[2,128], index: 7, kind: input, shape index: {}]
  %s8 = inlined_call_operand.vmem [shape: f32[2,128], index: 8, kind: input, shape index: {}]
  %s9 = inlined_call_operand.vmem [shape: f32[256,128], index: 9, kind: output, shape index: {}]
  %s10 = sld [smem:[#allocation0]]
  $region46: #{residual_se_block.1} parent=0
    _
  %s12 = ssub.s32 1, %s10
  %s13 = scalar_select 0, %s12, %s10
  // Predicated region
  $region2: #{residual_se_block.1} parent=0 // pred_check
    _
  $region3: #{residual_se_block.1} parent=0 // pred_check_branch
    %15 = sbr.rel (0) target = $region5
  $region4: #{residual_se_block.1} parent=0 // pred_region
    _
  $region5: #{residual_se_block.1} parent=0 // pred_fallthru
    _
  // Predicated region
  $region6: #{residual_se_block.1} parent=0 // pred_check
    _
  $region7: #{residual_se_block.1} parent=0 // pred_check_branch
    %17 = sbr.rel (0) target = $region9
  $region8: #{residual_se_block.1} parent=0 // pred_region
    _
  $region9: #{residual_se_block.1} parent=0 // pred_fallthru
    _
  // Predicated region
  $region10: #{residual_se_block.1} parent=0 // pred_check
    _
  $region11: #{residual_se_block.1} parent=0 // pred_check_branch
    %19 = sbr.rel (0) target = $region13
  $region12: #{residual_se_block.1} parent=0 // pred_region
    _
  $region13: #{residual_se_block.1} parent=0 // pred_fallthru
    _
  // Predicated region
  $region14: #{residual_se_block.1} parent=0 // pred_check
    _
  $region15: #{residual_se_block.1} parent=0 // pred_check_branch
    %21 = sbr.rel (0) target = $region17
  $region16: #{residual_se_block.1} parent=0 // pred_region
    _
  $region17: #{residual_se_block.1} parent=0 // pred_fallthru
    _
  // Predicated region
  $region18: #{residual_se_block.1} parent=0 // pred_check
    _
  $region19: #{residual_se_block.1} parent=0 // pred_check_branch
    %23 = sbr.rel (0) target = $region21
  $region20: #{residual_se_block.1} parent=0 // pred_region
    _
  $region21: #{residual_se_block.1} parent=0 // pred_fallthru
    _
  // Predicated region
  $region22: #{residual_se_block.1} parent=0 // pred_check
    _
  $region23: #{residual_se_block.1} parent=0 // pred_check_branch
    %25 = sbr.rel (0) target = $region25
  $region24: #{residual_se_block.1} parent=0 // pred_region
    _
  $region25: #{residual_se_block.1} parent=0 // pred_fallthru
    _
  // Predicated region
  $region26: #{residual_se_block.1} parent=0 // pred_check
    _
  $region27: #{residual_se_block.1} parent=0 // pred_check_branch
    %27 = sbr.rel (0) target = $region29
  $region28: #{residual_se_block.1} parent=0 // pred_region
    _
  $region29: #{residual_se_block.1} parent=0 // pred_fallthru
    _
  // Predicated region
  $region30: #{residual_se_block.1} parent=0 // pred_check
    _
  $region31: #{residual_se_block.1} parent=0 // pred_check_branch
    %29 = sbr.rel (0) target = $region33
  $region32: #{residual_se_block.1} parent=0 // pred_region
    _
  $region33: #{residual_se_block.1} parent=0 // pred_fallthru
    _
  // Predicated region
  $region34: #{residual_se_block.1} parent=0 // pred_check
    _
  $region35: #{residual_se_block.1} parent=0 // pred_check_branch
    %31 = sbr.rel (0) target = $region37
  $region36: #{residual_se_block.1} parent=0 // pred_region
    _
  $region37: #{residual_se_block.1} parent=0 // pred_fallthru
    _
  %vm32 = vcmask 261120
  %33 = vst.msk [vmem:[#allocation2] sm:$0xff] %vm32, 0.0
  %vm34 = vcmask 254976
  %35 = vst.msk [vmem:[#allocation2 + $0x8] sm:$0x3] %vm34, 0.0
  %36 = vst.msk [vmem:[#allocation2 + $0xa0] sm:$0xff] %vm32, 0.0
  %37 = vst.msk [vmem:[#allocation2 + $0xa8] sm:$0x3] %vm34, 0.0
  %38 = vst.msk [vmem:[#allocation2 + $0x140] sm:$0xff] %vm32, 0.0
  %39 = vst.msk [vmem:[#allocation2 + $0x148] sm:$0x3] %vm34, 0.0
  %40 = vst.msk [vmem:[#allocation2 + $0x1e0] sm:$0xff] %vm32, 0.0
  %41 = vst.msk [vmem:[#allocation2 + $0x1e8] sm:$0x3] %vm34, 0.0
  %s42 = scalar_lea.vmem [#allocation2], 144
  %43 = vst.msk [vmem:[%s42] sm:$0xff] %vm32, 0.0
  %44 = vst.msk [vmem:[%s42 + $0x8] sm:$0x3] %vm34, 0.0
  %45 = vst.msk [vmem:[%s42 + $0xa0] sm:$0xff] %vm32, 0.0
  %46 = vst.msk [vmem:[%s42 + $0xa8] sm:$0x3] %vm34, 0.0
  %47 = vst.msk [vmem:[%s42 + $0x140] sm:$0xff] %vm32, 0.0
  %48 = vst.msk [vmem:[%s42 + $0x148] sm:$0x3] %vm34, 0.0
  %49 = vst.msk [vmem:[%s42 + $0x1e0] sm:$0xff] %vm32, 0.0
  %50 = vst.msk [vmem:[%s42 + $0x1e8] sm:$0x3] %vm34, 0.0
  %vm51 = vcmask 253952
  %52 = vst.msk [vmem:[#allocation2] sm:$0x1] %vm51, 0.0
  %53 = vst.msk [vmem:[#allocation2 + $0x10] sm:$0x1] %vm51, 0.0
  %54 = vst.msk [vmem:[#allocation2 + $0x20] sm:$0x1] %vm51, 0.0
  %55 = vst.msk [vmem:[#allocation2 + $0x30] sm:$0x1] %vm51, 0.0
  %56 = vst.msk [vmem:[#allocation2 + $0x40] sm:$0x1] %vm51, 0.0
  %57 = vst.msk [vmem:[#allocation2 + $0x50] sm:$0x1] %vm51, 0.0
  %58 = vst.msk [vmem:[#allocation2 + $0x60] sm:$0x1] %vm51, 0.0
  %59 = vst.msk [vmem:[#allocation2 + $0x70] sm:$0x1] %vm51, 0.0
  %60 = vst.msk [vmem:[#allocation2 + $0x80] sm:$0x1] %vm51, 0.0
  %61 = vst.msk [vmem:[#allocation2 + $0x90] sm:$0x1] %vm51, 0.0
  %62 = vst.msk [vmem:[#allocation2 + $0xa0] sm:$0x1] %vm51, 0.0
  %63 = vst.msk [vmem:[#allocation2 + $0xb0] sm:$0x1] %vm51, 0.0
  %64 = vst.msk [vmem:[#allocation2 + $0xc0] sm:$0x1] %vm51, 0.0
  %65 = vst.msk [vmem:[#allocation2 + $0xd0] sm:$0x1] %vm51, 0.0
  %66 = vst.msk [vmem:[#allocation2 + $0xe0] sm:$0x1] %vm51, 0.0
  %67 = vst.msk [vmem:[#allocation2 + $0xf0] sm:$0x1] %vm51, 0.0
  %68 = vst.msk [vmem:[#allocation2 + $0x100] sm:$0x1] %vm51, 0.0
  %69 = vst.msk [vmem:[#allocation2 + $0x110] sm:$0x1] %vm51, 0.0
  %70 = vst.msk [vmem:[#allocation2 + $0x120] sm:$0x1] %vm51, 0.0
  %71 = vst.msk [vmem:[#allocation2 + $0x130] sm:$0x1] %vm51, 0.0
  %72 = vst.msk [vmem:[#allocation2 + $0x140] sm:$0x1] %vm51, 0.0
  %73 = vst.msk [vmem:[#allocation2 + $0x150] sm:$0x1] %vm51, 0.0
  %74 = vst.msk [vmem:[#allocation2 + $0x160] sm:$0x1] %vm51, 0.0
  %75 = vst.msk [vmem:[#allocation2 + $0x170] sm:$0x1] %vm51, 0.0
  %76 = vst.msk [vmem:[#allocation2 + $0x180] sm:$0x1] %vm51, 0.0
  %77 = vst.msk [vmem:[#allocation2 + $0x190] sm:$0x1] %vm51, 0.0
  %78 = vst.msk [vmem:[#allocation2 + $0x1a0] sm:$0x1] %vm51, 0.0
  %79 = vst.msk [vmem:[#allocation2 + $0x1b0] sm:$0x1] %vm51, 0.0
  %80 = vst.msk [vmem:[#allocation2 + $0x1c0] sm:$0x1] %vm51, 0.0
  %81 = vst.msk [vmem:[#allocation2 + $0x1d0] sm:$0x1] %vm51, 0.0
  %82 = vst.msk [vmem:[#allocation2 + $0x1e0] sm:$0x1] %vm51, 0.0
  %83 = vst.msk [vmem:[#allocation2 + $0x1f0] sm:$0x1] %vm51, 0.0
  %84 = vst.msk [vmem:[#allocation2 + $0x200] sm:$0x1] %vm51, 0.0
  %85 = vst.msk [vmem:[#allocation2 + $0x210] sm:$0x1] %vm51, 0.0
  %86 = vst.msk [vmem:[#allocation2 + $0x220] sm:$0x1] %vm51, 0.0
  %87 = vst.msk [vmem:[#allocation2 + $0x230] sm:$0x1] %vm51, 0.0
  %88 = vst.msk [vmem:[#allocation2 + $0x240] sm:$0x1] %vm51, 0.0
  %89 = vst.msk [vmem:[#allocation2 + $0x250] sm:$0x1] %vm51, 0.0
  %90 = vst.msk [vmem:[#allocation2 + $0x260] sm:$0x1] %vm51, 0.0
  %91 = vst.msk [vmem:[#allocation2 + $0x270] sm:$0x1] %vm51, 0.0
  %92 = vst.msk [vmem:[#allocation2 + $0x9] sm:$0x1] %vm51, 0.0
  %93 = vst.msk [vmem:[#allocation2 + $0x19] sm:$0x1] %vm51, 0.0
  %94 = vst.msk [vmem:[#allocation2 + $0x29] sm:$0x1] %vm51, 0.0
  %95 = vst.msk [vmem:[#allocation2 + $0x39] sm:$0x1] %vm51, 0.0
  %96 = vst.msk [vmem:[#allocation2 + $0x49] sm:$0x1] %vm51, 0.0
  %97 = vst.msk [vmem:[#allocation2 + $0x59] sm:$0x1] %vm51, 0.0
  %98 = vst.msk [vmem:[#allocation2 + $0x69] sm:$0x1] %vm51, 0.0
  %99 = vst.msk [vmem:[#allocation2 + $0x79] sm:$0x1] %vm51, 0.0
  %100 = vst.msk [vmem:[#allocation2 + $0x89] sm:$0x1] %vm51, 0.0
  %101 = vst.msk [vmem:[#allocation2 + $0x99] sm:$0x1] %vm51, 0.0
  %102 = vst.msk [vmem:[#allocation2 + $0xa9] sm:$0x1] %vm51, 0.0
  %103 = vst.msk [vmem:[#allocation2 + $0xb9] sm:$0x1] %vm51, 0.0
  %104 = vst.msk [vmem:[#allocation2 + $0xc9] sm:$0x1] %vm51, 0.0
  %105 = vst.msk [vmem:[#allocation2 + $0xd9] sm:$0x1] %vm51, 0.0
  %106 = vst.msk [vmem:[#allocation2 + $0xe9] sm:$0x1] %vm51, 0.0
  %107 = vst.msk [vmem:[#allocation2 + $0xf9] sm:$0x1] %vm51, 0.0
  %108 = vst.msk [vmem:[#allocation2 + $0x109] sm:$0x1] %vm51, 0.0
  %109 = vst.msk [vmem:[#allocation2 + $0x119] sm:$0x1] %vm51, 0.0
  %110 = vst.msk [vmem:[#allocation2 + $0x129] sm:$0x1] %vm51, 0.0
  %111 = vst.msk [vmem:[#allocation2 + $0x139] sm:$0x1] %vm51, 0.0
  %112 = vst.msk [vmem:[#allocation2 + $0x149] sm:$0x1] %vm51, 0.0
  %113 = vst.msk [vmem:[#allocation2 + $0x159] sm:$0x1] %vm51, 0.0
  %114 = vst.msk [vmem:[#allocation2 + $0x169] sm:$0x1] %vm51, 0.0
  %115 = vst.msk [vmem:[#allocation2 + $0x179] sm:$0x1] %vm51, 0.0
  %116 = vst.msk [vmem:[#allocation2 + $0x189] sm:$0x1] %vm51, 0.0
  %117 = vst.msk [vmem:[#allocation2 + $0x199] sm:$0x1] %vm51, 0.0
  %118 = vst.msk [vmem:[#allocation2 + $0x1a9] sm:$0x1] %vm51, 0.0
  %119 = vst.msk [vmem:[#allocation2 + $0x1b9] sm:$0x1] %vm51, 0.0
  %120 = vst.msk [vmem:[#allocation2 + $0x1c9] sm:$0x1] %vm51, 0.0
  %121 = vst.msk [vmem:[#allocation2 + $0x1d9] sm:$0x1] %vm51, 0.0
  %122 = vst.msk [vmem:[#allocation2 + $0x1e9] sm:$0x1] %vm51, 0.0
  %123 = vst.msk [vmem:[#allocation2 + $0x1f9] sm:$0x1] %vm51, 0.0
  %124 = vst.msk [vmem:[#allocation2 + $0x209] sm:$0x1] %vm51, 0.0
  %125 = vst.msk [vmem:[#allocation2 + $0x219] sm:$0x1] %vm51, 0.0
  %126 = vst.msk [vmem:[#allocation2 + $0x229] sm:$0x1] %vm51, 0.0
  %127 = vst.msk [vmem:[#allocation2 + $0x239] sm:$0x1] %vm51, 0.0
  %128 = vst.msk [vmem:[#allocation2 + $0x249] sm:$0x1] %vm51, 0.0
  %129 = vst.msk [vmem:[#allocation2 + $0x259] sm:$0x1] %vm51, 0.0
  %130 = vst.msk [vmem:[#allocation2 + $0x269] sm:$0x1] %vm51, 0.0
  %131 = vst.msk [vmem:[#allocation2 + $0x279] sm:$0x1] %vm51, 0.0
  %v132 = vld [vmem:[%s0] sm:$0xff]
  %v133 = vld [vmem:[%s0 + $0x8] sm:$0xff]
  %v134 = vld [vmem:[%s0 + $0x10] sm:$0xff]
  %v135 = vld [vmem:[%s0 + $0x18] sm:$0xff]
  %v136 = vld [vmem:[%s0 + $0x20] sm:$0xff]
  %v137 = vld [vmem:[%s0 + $0x28] sm:$0xff]
  %v138 = vld [vmem:[%s0 + $0x30] sm:$0xff]
  %v139 = vld [vmem:[%s0 + $0x38] sm:$0xff]
  %v140 = vld [vmem:[%s0 + $0x40] sm:$0xff]
  %v141 = vld [vmem:[%s0 + $0x48] sm:$0xff]
  %v142 = vld [vmem:[%s0 + $0x50] sm:$0xff]
  %v143 = vld [vmem:[%s0 + $0x58] sm:$0xff]
  %v144 = vld [vmem:[%s0 + $0x60] sm:$0xff]
  %v145 = vld [vmem:[%s0 + $0x68] sm:$0xff]
  %v146 = vld [vmem:[%s0 + $0x70] sm:$0xff]
  %v147 = vld [vmem:[%s0 + $0x78] sm:$0xff]
  %v148 = vld [vmem:[%s0 + $0x80] sm:$0xff]
  %v149 = vld [vmem:[%s0 + $0x88] sm:$0xff]
  %v150 = vld [vmem:[%s0 + $0x90] sm:$0xff]
  %v151 = vld [vmem:[%s0 + $0x98] sm:$0xff]
  %v152 = vld [vmem:[%s0 + $0xa0] sm:$0xff]
  %v153 = vld [vmem:[%s0 + $0xa8] sm:$0xff]
  %v154 = vld [vmem:[%s0 + $0xb0] sm:$0xff]
  %v155 = vld [vmem:[%s0 + $0xb8] sm:$0xff]
  %v156 = vld [vmem:[%s0 + $0xc0] sm:$0xff]
  %v157 = vld [vmem:[%s0 + $0xc8] sm:$0xff]
  %v158 = vld [vmem:[%s0 + $0xd0] sm:$0xff]
  %v159 = vld [vmem:[%s0 + $0xd8] sm:$0xff]
  %v160 = vld [vmem:[%s0 + $0xe0] sm:$0xff]
  %v161 = vld [vmem:[%s0 + $0xe8] sm:$0xff]
  %v162 = vld [vmem:[%s0 + $0xf0] sm:$0xff]
  %v163 = vld [vmem:[%s0 + $0xf8] sm:$0xff]
  %s164 = scalar_lea.vmem [#allocation2], 16
  %165 = vst.msk [vmem:[%s164 + $0x1] sm:$0xff] %vm32, %v132
  %166 = vst.msk [vmem:[%s164 + $0x11] sm:$0xff] %vm32, %v133
  %167 = vst.msk [vmem:[%s164 + $0x21] sm:$0xff] %vm32, %v134
  %168 = vst.msk [vmem:[%s164 + $0x31] sm:$0xff] %vm32, %v135
  %169 = vst.msk [vmem:[%s164 + $0x41] sm:$0xff] %vm32, %v136
  %170 = vst.msk [vmem:[%s164 + $0x51] sm:$0xff] %vm32, %v137
  %171 = vst.msk [vmem:[%s164 + $0x61] sm:$0xff] %vm32, %v138
  %172 = vst.msk [vmem:[%s164 + $0x71] sm:$0xff] %vm32, %v139
  %173 = vst.msk [vmem:[%s164 + $0xa1] sm:$0xff] %vm32, %v140
  %174 = vst.msk [vmem:[%s164 + $0xb1] sm:$0xff] %vm32, %v141
  %175 = vst.msk [vmem:[%s164 + $0xc1] sm:$0xff] %vm32, %v142
  %176 = vst.msk [vmem:[%s164 + $0xd1] sm:$0xff] %vm32, %v143
  %177 = vst.msk [vmem:[%s164 + $0xe1] sm:$0xff] %vm32, %v144
  %178 = vst.msk [vmem:[%s164 + $0xf1] sm:$0xff] %vm32, %v145
  %179 = vst.msk [vmem:[%s164 + $0x101] sm:$0xff] %vm32, %v146
  %180 = vst.msk [vmem:[%s164 + $0x111] sm:$0xff] %vm32, %v147
  %181 = vst.msk [vmem:[%s164 + $0x141] sm:$0xff] %vm32, %v148
  %182 = vst.msk [vmem:[%s164 + $0x151] sm:$0xff] %vm32, %v149
  %183 = vst.msk [vmem:[%s164 + $0x161] sm:$0xff] %vm32, %v150
  %184 = vst.msk [vmem:[%s164 + $0x171] sm:$0xff] %vm32, %v151
  %185 = vst.msk [vmem:[%s164 + $0x181] sm:$0xff] %vm32, %v152
  %186 = vst.msk [vmem:[%s164 + $0x191] sm:$0xff] %vm32, %v153
  %187 = vst.msk [vmem:[%s164 + $0x1a1] sm:$0xff] %vm32, %v154
  %188 = vst.msk [vmem:[%s164 + $0x1b1] sm:$0xff] %vm32, %v155
  %189 = vst.msk [vmem:[%s164 + $0x1e1] sm:$0xff] %vm32, %v156
  %190 = vst.msk [vmem:[%s164 + $0x1f1] sm:$0xff] %vm32, %v157
  %191 = vst.msk [vmem:[%s164 + $0x201] sm:$0xff] %vm32, %v158
  %192 = vst.msk [vmem:[%s164 + $0x211] sm:$0xff] %vm32, %v159
  %193 = vst.msk [vmem:[%s164 + $0x221] sm:$0xff] %vm32, %v160
  %194 = vst.msk [vmem:[%s164 + $0x231] sm:$0xff] %vm32, %v161
  %195 = vst.msk [vmem:[%s164 + $0x241] sm:$0xff] %vm32, %v162
  %196 = vst.msk [vmem:[%s164 + $0x251] sm:$0xff] %vm32, %v163
  %v197 = vld [vmem:[#allocation2] sm:$0xff]
  %v198 = vld [vmem:[#allocation2 + $0x10] sm:$0xff]
  %v199 = vld [vmem:[#allocation2 + $0x20] sm:$0xff]
  %v200 = vld [vmem:[#allocation2 + $0x30] sm:$0xff]
  %v201 = vld [vmem:[#allocation2 + $0x40] sm:$0xff]
  %v202 = vld [vmem:[#allocation2 + $0x50] sm:$0xff]
  %v203 = vld [vmem:[#allocation2 + $0x60] sm:$0xff]
  %v204 = vld [vmem:[#allocation2 + $0x70] sm:$0xff]
  %v205 = vld [vmem:[#allocation2 + $0x80] sm:$0xff]
  %v206 = vld [vmem:[#allocation2 + $0x90] sm:$0xff]
  %v207 = vld [vmem:[#allocation2 + $0xa0] sm:$0xff]
  %v208 = vld [vmem:[#allocation2 + $0xb0] sm:$0xff]
  %v209 = vld [vmem:[#allocation2 + $0xc0] sm:$0xff]
  %v210 = vld [vmem:[#allocation2 + $0xd0] sm:$0xff]
  %v211 = vld [vmem:[#allocation2 + $0xe0] sm:$0xff]
  %v212 = vld [vmem:[#allocation2 + $0xf0] sm:$0xff]
  %v213 = vld [vmem:[#allocation2 + $0x100] sm:$0xff]
  %v214 = vld [vmem:[#allocation2 + $0x110] sm:$0xff]
  %v215 = vld [vmem:[#allocation2 + $0x120] sm:$0xff]
  %v216 = vld [vmem:[#allocation2 + $0x130] sm:$0xff]
  %v217 = vld [vmem:[#allocation2 + $0x140] sm:$0xff]
  %v218 = vld [vmem:[#allocation2 + $0x150] sm:$0xff]
  %v219 = vld [vmem:[#allocation2 + $0x160] sm:$0xff]
  %v220 = vld [vmem:[#allocation2 + $0x170] sm:$0xff]
  %v221 = vld [vmem:[#allocation2 + $0x180] sm:$0xff]
  %v222 = vld [vmem:[#allocation2 + $0x190] sm:$0xff]
  %v223 = vld [vmem:[#allocation2 + $0x1a0] sm:$0xff]
  %v224 = vld [vmem:[#allocation2 + $0x1b0] sm:$0xff]
  %v225 = vld [vmem:[#allocation2 + $0x1c0] sm:$0xff]
  %v226 = vld [vmem:[#allocation2 + $0x1d0] sm:$0xff]
  %v227 = vld [vmem:[#allocation2 + $0x1e0] sm:$0xff]
  %v228 = vld [vmem:[#allocation2 + $0x1f0] sm:$0xff]
  %v229 = vld [vmem:[#allocation2 + $0x200] sm:$0xff]
  %v230 = vld [vmem:[#allocation2 + $0x210] sm:$0xff]
  %v231 = vld [vmem:[#allocation2 + $0x220] sm:$0xff]
  %v232 = vld [vmem:[#allocation2 + $0x230] sm:$0xff]
  %v233 = vld [vmem:[#allocation2 + $0x240] sm:$0xff]
  %v234 = vld [vmem:[#allocation2 + $0x250] sm:$0xff]
  %v235 = vld [vmem:[#allocation2 + $0x260] sm:$0xff]
  %v236 = vld [vmem:[#allocation2 + $0x270] sm:$0xff]
  %237 = vst.msk [vmem:[#allocation3] sm:$0xff] %vm32, %v197
  %238 = vst.msk [vmem:[#allocation3 + $0x8] sm:$0xff] %vm32, %v198
  %239 = vst.msk [vmem:[#allocation3 + $0x10] sm:$0xff] %vm32, %v199
  %240 = vst.msk [vmem:[#allocation3 + $0x18] sm:$0xff] %vm32, %v200
  %241 = vst.msk [vmem:[#allocation3 + $0x20] sm:$0xff] %vm32, %v201
  %242 = vst.msk [vmem:[#allocation3 + $0x28] sm:$0xff] %vm32, %v202
  %243 = vst.msk [vmem:[#allocation3 + $0x30] sm:$0xff] %vm32, %v203
  %244 = vst.msk [vmem:[#allocation3 + $0x38] sm:$0xff] %vm32, %v204
  %245 = vst.msk [vmem:[#allocation3 + $0x40] sm:$0xff] %vm32, %v205
  %246 = vst.msk [vmem:[#allocation3 + $0x48] sm:$0xff] %vm32, %v206
  %247 = vst.msk [vmem:[#allocation3 + $0x50] sm:$0xff] %vm32, %v207
  %248 = vst.msk [vmem:[#allocation3 + $0x58] sm:$0xff] %vm32, %v208
  %249 = vst.msk [vmem:[#allocation3 + $0x60] sm:$0xff] %vm32, %v209
  %250 = vst.msk [vmem:[#allocation3 + $0x68] sm:$0xff] %vm32, %v210
  %251 = vst.msk [vmem:[#allocation3 + $0x70] sm:$0xff] %vm32, %v211
  %252 = vst.msk [vmem:[#allocation3 + $0x78] sm:$0xff] %vm32, %v212
  %253 = vst.msk [vmem:[#allocation3 + $0x80] sm:$0xff] %vm32, %v213
  %254 = vst.msk [vmem:[#allocation3 + $0x88] sm:$0xff] %vm32, %v214
  %255 = vst.msk [vmem:[#allocation3 + $0x90] sm:$0xff] %vm32, %v215
  %256 = vst.msk [vmem:[#allocation3 + $0x98] sm:$0xff] %vm32, %v216
  %257 = vst.msk [vmem:[#allocation3 + $0xa0] sm:$0xff] %vm32, %v217
  %258 = vst.msk [vmem:[#allocation3 + $0xa8] sm:$0xff] %vm32, %v218
  %259 = vst.msk [vmem:[#allocation3 + $0xb0] sm:$0xff] %vm32, %v219
  %260 = vst.msk [vmem:[#allocation3 + $0xb8] sm:$0xff] %vm32, %v220
  %261 = vst.msk [vmem:[#allocation3 + $0xc0] sm:$0xff] %vm32, %v221
  %262 = vst.msk [vmem:[#allocation3 + $0xc8] sm:$0xff] %vm32, %v222
  %263 = vst.msk [vmem:[#allocation3 + $0xd0] sm:$0xff] %vm32, %v223
  %264 = vst.msk [vmem:[#allocation3 + $0xd8] sm:$0xff] %vm32, %v224
  %265 = vst.msk [vmem:[#allocation3 + $0xe0] sm:$0xff] %vm32, %v225
  %266 = vst.msk [vmem:[#allocation3 + $0xe8] sm:$0xff] %vm32, %v226
  %267 = vst.msk [vmem:[#allocation3 + $0xf0] sm:$0xff] %vm32, %v227
  %268 = vst.msk [vmem:[#allocation3 + $0xf8] sm:$0xff] %vm32, %v228
  %269 = vst.msk [vmem:[#allocation3 + $0x100] sm:$0xff] %vm32, %v229
  %270 = vst.msk [vmem:[#allocation3 + $0x108] sm:$0xff] %vm32, %v230
  %271 = vst.msk [vmem:[#allocation3 + $0x110] sm:$0xff] %vm32, %v231
  %272 = vst.msk [vmem:[#allocation3 + $0x118] sm:$0xff] %vm32, %v232
  %273 = vst.msk [vmem:[#allocation3 + $0x120] sm:$0xff] %vm32, %v233
  %274 = vst.msk [vmem:[#allocation3 + $0x128] sm:$0xff] %vm32, %v234
  %275 = vst.msk [vmem:[#allocation3 + $0x130] sm:$0xff] %vm32, %v235
  %276 = vst.msk [vmem:[#allocation3 + $0x138] sm:$0xff] %vm32, %v236
  %v277 = vld [vmem:[#allocation2 + $0x1] sm:$0xff]
  %v278 = vld [vmem:[#allocation2 + $0x11] sm:$0xff]
  %v279 = vld [vmem:[#allocation2 + $0x21] sm:$0xff]
  %v280 = vld [vmem:[#allocation2 + $0x31] sm:$0xff]
  %v281 = vld [vmem:[#allocation2 + $0x41] sm:$0xff]
  %v282 = vld [vmem:[#allocation2 + $0x51] sm:$0xff]
  %v283 = vld [vmem:[#allocation2 + $0x61] sm:$0xff]
  %v284 = vld [vmem:[#allocation2 + $0x71] sm:$0xff]
  %v285 = vld [vmem:[#allocation2 + $0x81] sm:$0xff]
  %v286 = vld [vmem:[#allocation2 + $0x91] sm:$0xff]
  %v287 = vld [vmem:[#allocation2 + $0xa1] sm:$0xff]
  %v288 = vld [vmem:[#allocation2 + $0xb1] sm:$0xff]
  %v289 = vld [vmem:[#allocation2 + $0xc1] sm:$0xff]
  %v290 = vld [vmem:[#allocation2 + $0xd1] sm:$0xff]
  %v291 = vld [vmem:[#allocation2 + $0xe1] sm:$0xff]
  %v292 = vld [vmem:[#allocation2 + $0xf1] sm:$0xff]
  %v293 = vld [vmem:[#allocation2 + $0x101] sm:$0xff]
  %v294 = vld [vmem:[#allocation2 + $0x111] sm:$0xff]
  %v295 = vld [vmem:[#allocation2 + $0x121] sm:$0xff]
  %v296 = vld [vmem:[#allocation2 + $0x131] sm:$0xff]
  %v297 = vld [vmem:[#allocation2 + $0x141] sm:$0xff]
  %v298 = vld [vmem:[#allocation2 + $0x151] sm:$0xff]
  %v299 = vld [vmem:[#allocation2 + $0x161] sm:$0xff]
  %v300 = vld [vmem:[#allocation2 + $0x171] sm:$0xff]
  %v301 = vld [vmem:[#allocation2 + $0x181] sm:$0xff]
  %v302 = vld [vmem:[#allocation2 + $0x191] sm:$0xff]
  %v303 = vld [vmem:[#allocation2 + $0x1a1] sm:$0xff]
  %v304 = vld [vmem:[#allocation2 + $0x1b1] sm:$0xff]
  %v305 = vld [vmem:[#allocation2 + $0x1c1] sm:$0xff]
  %v306 = vld [vmem:[#allocation2 + $0x1d1] sm:$0xff]
  %v307 = vld [vmem:[#allocation2 + $0x1e1] sm:$0xff]
  %v308 = vld [vmem:[#allocation2 + $0x1f1] sm:$0xff]
  %v309 = vld [vmem:[#allocation2 + $0x201] sm:$0xff]
  %v310 = vld [vmem:[#allocation2 + $0x211] sm:$0xff]
  %v311 = vld [vmem:[#allocation2 + $0x221] sm:$0xff]
  %v312 = vld [vmem:[#allocation2 + $0x231] sm:$0xff]
  %v313 = vld [vmem:[#allocation2 + $0x241] sm:$0xff]
  %v314 = vld [vmem:[#allocation2 + $0x251] sm:$0xff]
  %v315 = vld [vmem:[#allocation2 + $0x261] sm:$0xff]
  %v316 = vld [vmem:[#allocation2 + $0x271] sm:$0xff]
  %357 = vrot.lane.b32.xlu0 %v277, 32
  %v358 = vpop.permute.xlu0 %357
  %359 = vrot.lane.b32.xlu0 %v278, 32
  %v360 = vpop.permute.xlu0 %359
  %361 = vrot.lane.b32.xlu0 %v279, 32
  %v362 = vpop.permute.xlu0 %361
  %363 = vrot.lane.b32.xlu0 %v280, 32
  %v364 = vpop.permute.xlu0 %363
  %365 = vrot.lane.b32.xlu0 %v281, 32
  %v366 = vpop.permute.xlu0 %365
  %367 = vrot.lane.b32.xlu0 %v282, 32
  %v368 = vpop.permute.xlu0 %367
  %369 = vrot.lane.b32.xlu0 %v283, 32
  %v370 = vpop.permute.xlu0 %369
  %371 = vrot.lane.b32.xlu0 %v284, 32
  %v372 = vpop.permute.xlu0 %371
  %373 = vrot.lane.b32.xlu0 %v285, 32
  %v374 = vpop.permute.xlu0 %373
  %375 = vrot.lane.b32.xlu0 %v286, 32
  %v376 = vpop.permute.xlu0 %375
  %377 = vrot.lane.b32.xlu0 %v287, 32
  %v378 = vpop.permute.xlu0 %377
  %379 = vrot.lane.b32.xlu0 %v288, 32
  %v380 = vpop.permute.xlu0 %379
  %381 = vrot.lane.b32.xlu0 %v289, 32
  %v382 = vpop.permute.xlu0 %381
  %383 = vrot.lane.b32.xlu0 %v290, 32
  %v384 = vpop.permute.xlu0 %383
  %385 = vrot.lane.b32.xlu0 %v291, 32
  %v386 = vpop.permute.xlu0 %385
  %387 = vrot.lane.b32.xlu0 %v292, 32
  %v388 = vpop.permute.xlu0 %387
  %389 = vrot.lane.b32.xlu0 %v293, 32
  %v390 = vpop.permute.xlu0 %389
  %391 = vrot.lane.b32.xlu0 %v294, 32
  %v392 = vpop.permute.xlu0 %391
  %393 = vrot.lane.b32.xlu0 %v295, 32
  %v394 = vpop.permute.xlu0 %393
  %395 = vrot.lane.b32.xlu0 %v296, 32
  %v396 = vpop.permute.xlu0 %395
  %397 = vrot.lane.b32.xlu0 %v297, 32
  %v398 = vpop.permute.xlu0 %397
  %399 = vrot.lane.b32.xlu0 %v298, 32
  %v400 = vpop.permute.xlu0 %399
  %401 = vrot.lane.b32.xlu0 %v299, 32
  %v402 = vpop.permute.xlu0 %401
  %403 = vrot.lane.b32.xlu0 %v300, 32
  %v404 = vpop.permute.xlu0 %403
  %405 = vrot.lane.b32.xlu0 %v301, 32
  %v406 = vpop.permute.xlu0 %405
  %407 = vrot.lane.b32.xlu0 %v302, 32
  %v408 = vpop.permute.xlu0 %407
  %409 = vrot.lane.b32.xlu0 %v303, 32
  %v410 = vpop.permute.xlu0 %409
  %411 = vrot.lane.b32.xlu0 %v304, 32
  %v412 = vpop.permute.xlu0 %411
  %413 = vrot.lane.b32.xlu0 %v305, 32
  %v414 = vpop.permute.xlu0 %413
  %415 = vrot.lane.b32.xlu0 %v306, 32
  %v416 = vpop.permute.xlu0 %415
  %417 = vrot.lane.b32.xlu0 %v307, 32
  %v418 = vpop.permute.xlu0 %417
  %419 = vrot.lane.b32.xlu0 %v308, 32
  %v420 = vpop.permute.xlu0 %419
  %421 = vrot.lane.b32.xlu0 %v309, 32
  %v422 = vpop.permute.xlu0 %421
  %423 = vrot.lane.b32.xlu0 %v310, 32
  %v424 = vpop.permute.xlu0 %423
  %425 = vrot.lane.b32.xlu0 %v311, 32
  %v426 = vpop.permute.xlu0 %425
  %427 = vrot.lane.b32.xlu0 %v312, 32
  %v428 = vpop.permute.xlu0 %427
  %429 = vrot.lane.b32.xlu0 %v313, 32
  %v430 = vpop.permute.xlu0 %429
  %431 = vrot.lane.b32.xlu0 %v314, 32
  %v432 = vpop.permute.xlu0 %431
  %433 = vrot.lane.b32.xlu0 %v315, 32
  %v434 = vpop.permute.xlu0 %433
  %435 = vrot.lane.b32.xlu0 %v316, 32
  %v436 = vpop.permute.xlu0 %435
  %vm477 = vcmask 523520
  %478 = vst.msk [vmem:[#allocation3] sm:$0xff] %vm477, %v358
  %479 = vst.msk [vmem:[#allocation3 + $0x8] sm:$0xff] %vm477, %v360
  %480 = vst.msk [vmem:[#allocation3 + $0x10] sm:$0xff] %vm477, %v362
  %481 = vst.msk [vmem:[#allocation3 + $0x18] sm:$0xff] %vm477, %v364
  %482 = vst.msk [vmem:[#allocation3 + $0x20] sm:$0xff] %vm477, %v366
  %483 = vst.msk [vmem:[#allocation3 + $0x28] sm:$0xff] %vm477, %v368
  %484 = vst.msk [vmem:[#allocation3 + $0x30] sm:$0xff] %vm477, %v370
  %485 = vst.msk [vmem:[#allocation3 + $0x38] sm:$0xff] %vm477, %v372
  %486 = vst.msk [vmem:[#allocation3 + $0x40] sm:$0xff] %vm477, %v374
  %487 = vst.msk [vmem:[#allocation3 + $0x48] sm:$0xff] %vm477, %v376
  %488 = vst.msk [vmem:[#allocation3 + $0x50] sm:$0xff] %vm477, %v378
  %489 = vst.msk [vmem:[#allocation3 + $0x58] sm:$0xff] %vm477, %v380
  %490 = vst.msk [vmem:[#allocation3 + $0x60] sm:$0xff] %vm477, %v382
  %491 = vst.msk [vmem:[#allocation3 + $0x68] sm:$0xff] %vm477, %v384
  %492 = vst.msk [vmem:[#allocation3 + $0x70] sm:$0xff] %vm477, %v386
  %493 = vst.msk [vmem:[#allocation3 + $0x78] sm:$0xff] %vm477, %v388
  %494 = vst.msk [vmem:[#allocation3 + $0x80] sm:$0xff] %vm477, %v390
  %495 = vst.msk [vmem:[#allocation3 + $0x88] sm:$0xff] %vm477, %v392
  %496 = vst.msk [vmem:[#allocation3 + $0x90] sm:$0xff] %vm477, %v394
  %497 = vst.msk [vmem:[#allocation3 + $0x98] sm:$0xff] %vm477, %v396
  %498 = vst.msk [vmem:[#allocation3 + $0xa0] sm:$0xff] %vm477, %v398
  %499 = vst.msk [vmem:[#allocation3 + $0xa8] sm:$0xff] %vm477, %v400
  %500 = vst.msk [vmem:[#allocation3 + $0xb0] sm:$0xff] %vm477, %v402
  %501 = vst.msk [vmem:[#allocation3 + $0xb8] sm:$0xff] %vm477, %v404
  %502 = vst.msk [vmem:[#allocation3 + $0xc0] sm:$0xff] %vm477, %v406
  %503 = vst.msk [vmem:[#allocation3 + $0xc8] sm:$0xff] %vm477, %v408
  %504 = vst.msk [vmem:[#allocation3 + $0xd0] sm:$0xff] %vm477, %v410
  %505 = vst.msk [vmem:[#allocation3 + $0xd8] sm:$0xff] %vm477, %v412
  %506 = vst.msk [vmem:[#allocation3 + $0xe0] sm:$0xff] %vm477, %v414
  %507 = vst.msk [vmem:[#allocation3 + $0xe8] sm:$0xff] %vm477, %v416
  %508 = vst.msk [vmem:[#allocation3 + $0xf0] sm:$0xff] %vm477, %v418
  %509 = vst.msk [vmem:[#allocation3 + $0xf8] sm:$0xff] %vm477, %v420
  %510 = vst.msk [vmem:[#allocation3 + $0x100] sm:$0xff] %vm477, %v422
  %511 = vst.msk [vmem:[#allocation3 + $0x108] sm:$0xff] %vm477, %v424
  %512 = vst.msk [vmem:[#allocation3 + $0x110] sm:$0xff] %vm477, %v426
  %513 = vst.msk [vmem:[#allocation3 + $0x118] sm:$0xff] %vm477, %v428
  %514 = vst.msk [vmem:[#allocation3 + $0x120] sm:$0xff] %vm477, %v430
  %515 = vst.msk [vmem:[#allocation3 + $0x128] sm:$0xff] %vm477, %v432
  %516 = vst.msk [vmem:[#allocation3 + $0x130] sm:$0xff] %vm477, %v434
  %517 = vst.msk [vmem:[#allocation3 + $0x138] sm:$0xff] %vm477, %v436
  %v518 = vld [vmem:[#allocation2 + $0x2] sm:$0xff]
  %v519 = vld [vmem:[#allocation2 + $0x12] sm:$0xff]
  %v520 = vld [vmem:[#allocation2 + $0x22] sm:$0xff]
  %v521 = vld [vmem:[#allocation2 + $0x32] sm:$0xff]
  %v522 = vld [vmem:[#allocation2 + $0x42] sm:$0xff]
  %v523 = vld [vmem:[#allocation2 + $0x52] sm:$0xff]
  %v524 = vld [vmem:[#allocation2 + $0x62] sm:$0xff]
  %v525 = vld [vmem:[#allocation2 + $0x72] sm:$0xff]
  %v526 = vld [vmem:[#allocation2 + $0x82] sm:$0xff]
  %v527 = vld [vmem:[#allocation2 + $0x92] sm:$0xff]
  %v528 = vld [vmem:[#allocation2 + $0xa2] sm:$0xff]
  %v529 = vld [vmem:[#allocation2 + $0xb2] sm:$0xff]
  %v530 = vld [vmem:[#allocation2 + $0xc2] sm:$0xff]
  %v531 = vld [vmem:[#allocation2 + $0xd2] sm:$0xff]
  %v532 = vld [vmem:[#allocation2 + $0xe2] sm:$0xff]
  %v533 = vld [vmem:[#allocation2 + $0xf2] sm:$0xff]
  %v534 = vld [vmem:[#allocation2 + $0x102] sm:$0xff]
  %v535 = vld [vmem:[#allocation2 + $0x112] sm:$0xff]
  %v536 = vld [vmem:[#allocation2 + $0x122] sm:$0xff]
  %v537 = vld [vmem:[#allocation2 + $0x132] sm:$0xff]
  %v538 = vld [vmem:[#allocation2 + $0x142] sm:$0xff]
  %v539 = vld [vmem:[#allocation2 + $0x152] sm:$0xff]
  %v540 = vld [vmem:[#allocation2 + $0x162] sm:$0xff]
  %v541 = vld [vmem:[#allocation2 + $0x172] sm:$0xff]
  %v542 = vld [vmem:[#allocation2 + $0x182] sm:$0xff]
  %v543 = vld [vmem:[#allocation2 + $0x192] sm:$0xff]
  %v544 = vld [vmem:[#allocation2 + $0x1a2] sm:$0xff]
  %v545 = vld [vmem:[#allocation2 + $0x1b2] sm:$0xff]
  %v546 = vld [vmem:[#allocation2 + $0x1c2] sm:$0xff]
  %v547 = vld [vmem:[#allocation2 + $0x1d2] sm:$0xff]
  %v548 = vld [vmem:[#allocation2 + $0x1e2] sm:$0xff]
  %v549 = vld [vmem:[#allocation2 + $0x1f2] sm:$0xff]
  %v550 = vld [vmem:[#allocation2 + $0x202] sm:$0xff]
  %v551 = vld [vmem:[#allocation2 + $0x212] sm:$0xff]
  %v552 = vld [vmem:[#allocation2 + $0x222] sm:$0xff]
  %v553 = vld [vmem:[#allocation2 + $0x232] sm:$0xff]
  %v554 = vld [vmem:[#allocation2 + $0x242] sm:$0xff]
  %v555 = vld [vmem:[#allocation2 + $0x252] sm:$0xff]
  %v556 = vld [vmem:[#allocation2 + $0x262] sm:$0xff]
  %v557 = vld [vmem:[#allocation2 + $0x272] sm:$0xff]
  %598 = vrot.lane.b32.xlu0 %v518, 64
  %v599 = vpop.permute.xlu0 %598
  %600 = vrot.lane.b32.xlu0 %v519, 64
  %v601 = vpop.permute.xlu0 %600
  %602 = vrot.lane.b32.xlu0 %v520, 64
  %v603 = vpop.permute.xlu0 %602
  %604 = vrot.lane.b32.xlu0 %v521, 64
  %v605 = vpop.permute.xlu0 %604
  %606 = vrot.lane.b32.xlu0 %v522, 64
  %v607 = vpop.permute.xlu0 %606
  %608 = vrot.lane.b32.xlu0 %v523, 64
  %v609 = vpop.permute.xlu0 %608
  %610 = vrot.lane.b32.xlu0 %v524, 64
  %v611 = vpop.permute.xlu0 %610
  %612 = vrot.lane.b32.xlu0 %v525, 64
  %v613 = vpop.permute.xlu0 %612
  %614 = vrot.lane.b32.xlu0 %v526, 64
  %v615 = vpop.permute.xlu0 %614
  %616 = vrot.lane.b32.xlu0 %v527, 64
  %v617 = vpop.permute.xlu0 %616
  %618 = vrot.lane.b32.xlu0 %v528, 64
  %v619 = vpop.permute.xlu0 %618
  %620 = vrot.lane.b32.xlu0 %v529, 64
  %v621 = vpop.permute.xlu0 %620
  %622 = vrot.lane.b32.xlu0 %v530, 64
  %v623 = vpop.permute.xlu0 %622
  %624 = vrot.lane.b32.xlu0 %v531, 64
  %v625 = vpop.permute.xlu0 %624
  %626 = vrot.lane.b32.xlu0 %v532, 64
  %v627 = vpop.permute.xlu0 %626
  %628 = vrot.lane.b32.xlu0 %v533, 64
  %v629 = vpop.permute.xlu0 %628
  %630 = vrot.lane.b32.xlu0 %v534, 64
  %v631 = vpop.permute.xlu0 %630
  %632 = vrot.lane.b32.xlu0 %v535, 64
  %v633 = vpop.permute.xlu0 %632
  %634 = vrot.lane.b32.xlu0 %v536, 64
  %v635 = vpop.permute.xlu0 %634
  %636 = vrot.lane.b32.xlu0 %v537, 64
  %v637 = vpop.permute.xlu0 %636
  %638 = vrot.lane.b32.xlu0 %v538, 64
  %v639 = vpop.permute.xlu0 %638
  %640 = vrot.lane.b32.xlu0 %v539, 64
  %v641 = vpop.permute.xlu0 %640
  %642 = vrot.lane.b32.xlu0 %v540, 64
  %v643 = vpop.permute.xlu0 %642
  %644 = vrot.lane.b32.xlu0 %v541, 64
  %v645 = vpop.permute.xlu0 %644
  %646 = vrot.lane.b32.xlu0 %v542, 64
  %v647 = vpop.permute.xlu0 %646
  %648 = vrot.lane.b32.xlu0 %v543, 64
  %v649 = vpop.permute.xlu0 %648
  %650 = vrot.lane.b32.xlu0 %v544, 64
  %v651 = vpop.permute.xlu0 %650
  %652 = vrot.lane.b32.xlu0 %v545, 64
  %v653 = vpop.permute.xlu0 %652
  %654 = vrot.lane.b32.xlu0 %v546, 64
  %v655 = vpop.permute.xlu0 %654
  %656 = vrot.lane.b32.xlu0 %v547, 64
  %v657 = vpop.permute.xlu0 %656
  %658 = vrot.lane.b32.xlu0 %v548, 64
  %v659 = vpop.permute.xlu0 %658
  %660 = vrot.lane.b32.xlu0 %v549, 64
  %v661 = vpop.permute.xlu0 %660
  %662 = vrot.lane.b32.xlu0 %v550, 64
  %v663 = vpop.permute.xlu0 %662
  %664 = vrot.lane.b32.xlu0 %v551, 64
  %v665 = vpop.permute.xlu0 %664
  %666 = vrot.lane.b32.xlu0 %v552, 64
  %v667 = vpop.permute.xlu0 %666
  %668 = vrot.lane.b32.xlu0 %v553, 64
  %v669 = vpop.permute.xlu0 %668
  %670 = vrot.lane.b32.xlu0 %v554, 64
  %v671 = vpop.permute.xlu0 %670
  %672 = vrot.lane.b32.xlu0 %v555, 64
  %v673 = vpop.permute.xlu0 %672
  %674 = vrot.lane.b32.xlu0 %v556, 64
  %v675 = vpop.permute.xlu0 %674
  %676 = vrot.lane.b32.xlu0 %v557, 64
  %v677 = vpop.permute.xlu0 %676
  %vm718 = vcmask 785920
  %719 = vst.msk [vmem:[#allocation3] sm:$0xff] %vm718, %v599
  %720 = vst.msk [vmem:[#allocation3 + $0x8] sm:$0xff] %vm718, %v601
  %721 = vst.msk [vmem:[#allocation3 + $0x10] sm:$0xff] %vm718, %v603
  %722 = vst.msk [vmem:[#allocation3 + $0x18] sm:$0xff] %vm718, %v605
  %723 = vst.msk [vmem:[#allocation3 + $0x20] sm:$0xff] %vm718, %v607
  %724 = vst.msk [vmem:[#allocation3 + $0x28] sm:$0xff] %vm718, %v609
  %725 = vst.msk [vmem:[#allocation3 + $0x30] sm:$0xff] %vm718, %v611
  %726 = vst.msk [vmem:[#allocation3 + $0x38] sm:$0xff] %vm718, %v613
  %727 = vst.msk [vmem:[#allocation3 + $0x40] sm:$0xff] %vm718, %v615
  %728 = vst.msk [vmem:[#allocation3 + $0x48] sm:$0xff] %vm718, %v617
  %729 = vst.msk [vmem:[#allocation3 + $0x50] sm:$0xff] %vm718, %v619
  %730 = vst.msk [vmem:[#allocation3 + $0x58] sm:$0xff] %vm718, %v621
  %731 = vst.msk [vmem:[#allocation3 + $0x60] sm:$0xff] %vm718, %v623
  %732 = vst.msk [vmem:[#allocation3 + $0x68] sm:$0xff] %vm718, %v625
  %733 = vst.msk [vmem:[#allocation3 + $0x70] sm:$0xff] %vm718, %v627
  %734 = vst.msk [vmem:[#allocation3 + $0x78] sm:$0xff] %vm718, %v629
  %735 = vst.msk [vmem:[#allocation3 + $0x80] sm:$0xff] %vm718, %v631
  %736 = vst.msk [vmem:[#allocation3 + $0x88] sm:$0xff] %vm718, %v633
  %737 = vst.msk [vmem:[#allocation3 + $0x90] sm:$0xff] %vm718, %v635
  %738 = vst.msk [vmem:[#allocation3 + $0x98] sm:$0xff] %vm718, %v637
  %739 = vst.msk [vmem:[#allocation3 + $0xa0] sm:$0xff] %vm718, %v639
  %740 = vst.msk [vmem:[#allocation3 + $0xa8] sm:$0xff] %vm718, %v641
  %741 = vst.msk [vmem:[#allocation3 + $0xb0] sm:$0xff] %vm718, %v643
  %742 = vst.msk [vmem:[#allocation3 + $0xb8] sm:$0xff] %vm718, %v645
  %743 = vst.msk [vmem:[#allocation3 + $0xc0] sm:$0xff] %vm718, %v647
  %744 = vst.msk [vmem:[#allocation3 + $0xc8] sm:$0xff] %vm718, %v649
  %745 = vst.msk [vmem:[#allocation3 + $0xd0] sm:$0xff] %vm718, %v651
  %746 = vst.msk [vmem:[#allocation3 + $0xd8] sm:$0xff] %vm718, %v653
  %747 = vst.msk [vmem:[#allocation3 + $0xe0] sm:$0xff] %vm718, %v655
  %748 = vst.msk [vmem:[#allocation3 + $0xe8] sm:$0xff] %vm718, %v657
  %749 = vst.msk [vmem:[#allocation3 + $0xf0] sm:$0xff] %vm718, %v659
  %750 = vst.msk [vmem:[#allocation3 + $0xf8] sm:$0xff] %vm718, %v661
  %751 = vst.msk [vmem:[#allocation3 + $0x100] sm:$0xff] %vm718, %v663
  %752 = vst.msk [vmem:[#allocation3 + $0x108] sm:$0xff] %vm718, %v665
  %753 = vst.msk [vmem:[#allocation3 + $0x110] sm:$0xff] %vm718, %v667
  %754 = vst.msk [vmem:[#allocation3 + $0x118] sm:$0xff] %vm718, %v669
  %755 = vst.msk [vmem:[#allocation3 + $0x120] sm:$0xff] %vm718, %v671
  %756 = vst.msk [vmem:[#allocation3 + $0x128] sm:$0xff] %vm718, %v673
  %757 = vst.msk [vmem:[#allocation3 + $0x130] sm:$0xff] %vm718, %v675
  %758 = vst.msk [vmem:[#allocation3 + $0x138] sm:$0xff] %vm718, %v677
  %v759 = vld [vmem:[#allocation3] sm:$0xff]
  %v760 = vld [vmem:[#allocation3 + $0x8] sm:$0xff]
  %v761 = vld [vmem:[#allocation3 + $0x10] sm:$0xff]
  %v762 = vld [vmem:[#allocation3 + $0x18] sm:$0xff]
  %v763 = vld [vmem:[#allocation3 + $0x20] sm:$0xff]
  %v764 = vld [vmem:[#allocation3 + $0x28] sm:$0xff]
  %v765 = vld [vmem:[#allocation3 + $0x30] sm:$0xff]
  %v766 = vld [vmem:[#allocation3 + $0x38] sm:$0xff]
  %v767 = vld [vmem:[#allocation3 + $0x50] sm:$0xff]
  %v768 = vld [vmem:[#allocation3 + $0x58] sm:$0xff]
  %v769 = vld [vmem:[#allocation3 + $0x60] sm:$0xff]
  %v770 = vld [vmem:[#allocation3 + $0x68] sm:$0xff]
  %v771 = vld [vmem:[#allocation3 + $0x70] sm:$0xff]
  %v772 = vld [vmem:[#allocation3 + $0x78] sm:$0xff]
  %v773 = vld [vmem:[#allocation3 + $0x80] sm:$0xff]
  %v774 = vld [vmem:[#allocation3 + $0x88] sm:$0xff]
  %v775 = vld [vmem:[#allocation3 + $0xa0] sm:$0xff]
  %v776 = vld [vmem:[#allocation3 + $0xa8] sm:$0xff]
  %v777 = vld [vmem:[#allocation3 + $0xb0] sm:$0xff]
  %v778 = vld [vmem:[#allocation3 + $0xb8] sm:$0xff]
  %v779 = vld [vmem:[#allocation3 + $0xc0] sm:$0xff]
  %v780 = vld [vmem:[#allocation3 + $0xc8] sm:$0xff]
  %v781 = vld [vmem:[#allocation3 + $0xd0] sm:$0xff]
  %v782 = vld [vmem:[#allocation3 + $0xd8] sm:$0xff]
  %v783 = vld [vmem:[#allocation3 + $0xf0] sm:$0xff]
  %v784 = vld [vmem:[#allocation3 + $0xf8] sm:$0xff]
  %v785 = vld [vmem:[#allocation3 + $0x100] sm:$0xff]
  %v786 = vld [vmem:[#allocation3 + $0x108] sm:$0xff]
  %v787 = vld [vmem:[#allocation3 + $0x110] sm:$0xff]
  %v788 = vld [vmem:[#allocation3 + $0x118] sm:$0xff]
  %v789 = vld [vmem:[#allocation3 + $0x120] sm:$0xff]
  %v790 = vld [vmem:[#allocation3 + $0x128] sm:$0xff]
  %v791 = vld [vmem:[%s1] sm:$0xff]
  %v792 = vld [vmem:[%s1 + $0x8] sm:$0xff]
  %v793 = vld [vmem:[%s1 + $0x10] sm:$0xff]
  %v794 = vld [vmem:[%s1 + $0x18] sm:$0xff]
  %v795 = vld [vmem:[%s1 + $0x20] sm:$0xff]
  %v796 = vld [vmem:[%s1 + $0x28] sm:$0xff]
  %v797 = vld [vmem:[%s1 + $0x30] sm:$0xff]
  %v798 = vld [vmem:[%s1 + $0x38] sm:$0xff]
  %v799 = vld [vmem:[%s1 + $0x40] sm:$0xff]
  %v800 = vld [vmem:[%s1 + $0x48] sm:$0xff]
  %v801 = vld [vmem:[%s1 + $0x50] sm:$0xff]
  %v802 = vld [vmem:[%s1 + $0x58] sm:$0xff]
  %s803 = scalar_lea.vmem [#allocation3], 8
  %v804 = vld [vmem:[%s803] sm:$0xff]
  %v805 = vld [vmem:[%s803 + $0x8] sm:$0xff]
  %v806 = vld [vmem:[%s803 + $0x10] sm:$0xff]
  %v807 = vld [vmem:[%s803 + $0x18] sm:$0xff]
  %v808 = vld [vmem:[%s803 + $0x20] sm:$0xff]
  %v809 = vld [vmem:[%s803 + $0x28] sm:$0xff]
  %v810 = vld [vmem:[%s803 + $0x30] sm:$0xff]
  %v811 = vld [vmem:[%s803 + $0x38] sm:$0xff]
  %v812 = vld [vmem:[%s803 + $0x50] sm:$0xff]
  %v813 = vld [vmem:[%s803 + $0x58] sm:$0xff]
  %v814 = vld [vmem:[%s803 + $0x60] sm:$0xff]
  %v815 = vld [vmem:[%s803 + $0x68] sm:$0xff]
  %v816 = vld [vmem:[%s803 + $0x70] sm:$0xff]
  %v817 = vld [vmem:[%s803 + $0x78] sm:$0xff]
  %v818 = vld [vmem:[%s803 + $0x80] sm:$0xff]
  %v819 = vld [vmem:[%s803 + $0x88] sm:$0xff]
  %v820 = vld [vmem:[%s803 + $0xa0] sm:$0xff]
  %v821 = vld [vmem:[%s803 + $0xa8] sm:$0xff]
  %v822 = vld [vmem:[%s803 + $0xb0] sm:$0xff]
  %v823 = vld [vmem:[%s803 + $0xb8] sm:$0xff]
  %v824 = vld [vmem:[%s803 + $0xc0] sm:$0xff]
  %v825 = vld [vmem:[%s803 + $0xc8] sm:$0xff]
  %v826 = vld [vmem:[%s803 + $0xd0] sm:$0xff]
  %v827 = vld [vmem:[%s803 + $0xd8] sm:$0xff]
  %v828 = vld [vmem:[%s803 + $0xf0] sm:$0xff]
  %v829 = vld [vmem:[%s803 + $0xf8] sm:$0xff]
  %v830 = vld [vmem:[%s803 + $0x100] sm:$0xff]
  %v831 = vld [vmem:[%s803 + $0x108] sm:$0xff]
  %v832 = vld [vmem:[%s803 + $0x110] sm:$0xff]
  %v833 = vld [vmem:[%s803 + $0x118] sm:$0xff]
  %v834 = vld [vmem:[%s803 + $0x120] sm:$0xff]
  %v835 = vld [vmem:[%s803 + $0x128] sm:$0xff]
  %s836 = scalar_lea.vmem %s1, 96
  %v837 = vld [vmem:[%s836] sm:$0xff]
  %v838 = vld [vmem:[%s836 + $0x8] sm:$0xff]
  %v839 = vld [vmem:[%s836 + $0x10] sm:$0xff]
  %v840 = vld [vmem:[%s836 + $0x18] sm:$0xff]
  %v841 = vld [vmem:[%s836 + $0x20] sm:$0xff]
  %v842 = vld [vmem:[%s836 + $0x28] sm:$0xff]
  %v843 = vld [vmem:[%s836 + $0x30] sm:$0xff]
  %v844 = vld [vmem:[%s836 + $0x38] sm:$0xff]
  %v845 = vld [vmem:[%s836 + $0x40] sm:$0xff]
  %v846 = vld [vmem:[%s836 + $0x48] sm:$0xff]
  %v847 = vld [vmem:[%s836 + $0x50] sm:$0xff]
  %v848 = vld [vmem:[%s836 + $0x58] sm:$0xff]
  %vm849 = vcmask 785408
  %v851 = vsel %vm849, %v804, 0
  %v854 = vsel %vm849, %v805, 0
  %v857 = vsel %vm849, %v806, 0
  %v860 = vsel %vm849, %v807, 0
  %v863 = vsel %vm849, %v808, 0
  %v866 = vsel %vm849, %v809, 0
  %v869 = vsel %vm849, %v810, 0
  %v872 = vsel %vm849, %v811, 0
  %v875 = vsel %vm849, %v812, 0
  %v878 = vsel %vm849, %v813, 0
  %v881 = vsel %vm849, %v814, 0
  %v884 = vsel %vm849, %v815, 0
  %v887 = vsel %vm849, %v816, 0
  %v890 = vsel %vm849, %v817, 0
  %v893 = vsel %vm849, %v818, 0
  %v896 = vsel %vm849, %v819, 0
  %v899 = vsel %vm849, %v820, 0
  %v902 = vsel %vm849, %v821, 0
  %v905 = vsel %vm849, %v822, 0
  %v908 = vsel %vm849, %v823, 0
  %v911 = vsel %vm849, %v824, 0
  %v914 = vsel %vm849, %v825, 0
  %v917 = vsel %vm849, %v826, 0
  %v920 = vsel %vm849, %v827, 0
  %v923 = vsel %vm849, %v828, 0
  %v926 = vsel %vm849, %v829, 0
  %v929 = vsel %vm849, %v830, 0
  %v932 = vsel %vm849, %v831, 0
  %v935 = vsel %vm849, %v832, 0
  %v938 = vsel %vm849, %v833, 0
  %v941 = vsel %vm849, %v834, 0
  %v944 = vsel %vm849, %v835, 0
  %946 = vmatpush.msra.mxu0 0.0
  %947 = vmatpush.msra.mxu0 0.0
  %948 = vmatpush.msra.mxu0 0.0
  %949 = vmatpush.msra.mxu0 0.0
  %950 = vmatpush.msra.mxu0 %v848
  %951 = vmatpush.msra.mxu0 %v847
  %952 = vmatpush.msra.mxu0 %v846
  %953 = vmatpush.msra.mxu0 %v845
  %954 = vmatpush.msra.mxu0 %v844
  %955 = vmatpush.msra.mxu0 %v843
  %956 = vmatpush.msra.mxu0 %v842
  %957 = vmatpush.msra.mxu0 %v841
  %958 = vmatpush.msra.mxu0 %v840
  %959 = vmatpush.msra.mxu0 %v839
  %960 = vmatpush.msra.mxu0 %v838
  %961 = vmatpush.msra.mxu0 %v837
  %962 = vmatmul.f32.gmra.mxu0 %v851
  %v963 = vpop.f32.mrf.mxu0
  %v964 = vadd.f32 0.0, %v963
  %965 = vmatmul.f32.gmra.mxu0 %v854
  %v966 = vpop.f32.mrf.mxu0
  %v967 = vadd.f32 0.0, %v966
  %968 = vmatmul.f32.gmra.mxu0 %v857
  %v969 = vpop.f32.mrf.mxu0
  %v970 = vadd.f32 0.0, %v969
  %971 = vmatmul.f32.gmra.mxu0 %v860
  %v972 = vpop.f32.mrf.mxu0
  %v973 = vadd.f32 0.0, %v972
  %974 = vmatmul.f32.gmra.mxu0 %v863
  %v975 = vpop.f32.mrf.mxu0
  %v976 = vadd.f32 0.0, %v975
  %977 = vmatmul.f32.gmra.mxu0 %v866
  %v978 = vpop.f32.mrf.mxu0
  %v979 = vadd.f32 0.0, %v978
  %980 = vmatmul.f32.gmra.mxu0 %v869
  %v981 = vpop.f32.mrf.mxu0
  %v982 = vadd.f32 0.0, %v981
  %983 = vmatmul.f32.gmra.mxu0 %v872
  %v984 = vpop.f32.mrf.mxu0
  %v985 = vadd.f32 0.0, %v984
  %986 = vmatmul.f32.gmra.mxu0 %v875
  %v987 = vpop.f32.mrf.mxu0
  %v988 = vadd.f32 0.0, %v987
  %989 = vmatmul.f32.gmra.mxu0 %v878
  %v990 = vpop.f32.mrf.mxu0
  %v991 = vadd.f32 0.0, %v990
  %992 = vmatmul.f32.gmra.mxu0 %v881
  %v993 = vpop.f32.mrf.mxu0
  %v994 = vadd.f32 0.0, %v993
  %995 = vmatmul.f32.gmra.mxu0 %v884
  %v996 = vpop.f32.mrf.mxu0
  %v997 = vadd.f32 0.0, %v996
  %998 = vmatmul.f32.gmra.mxu0 %v887
  %v999 = vpop.f32.mrf.mxu0
  %v1000 = vadd.f32 0.0, %v999
  %1001 = vmatmul.f32.gmra.mxu0 %v890
  %v1002 = vpop.f32.mrf.mxu0
  %v1003 = vadd.f32 0.0, %v1002
  %1004 = vmatmul.f32.gmra.mxu0 %v893
  %v1005 = vpop.f32.mrf.mxu0
  %v1006 = vadd.f32 0.0, %v1005
  %1007 = vmatmul.f32.gmra.mxu0 %v896
  %v1008 = vpop.f32.mrf.mxu0
  %v1009 = vadd.f32 0.0, %v1008
  %1010 = vmatmul.f32.gmra.mxu0 %v899
  %v1011 = vpop.f32.mrf.mxu0
  %v1012 = vadd.f32 0.0, %v1011
  %1013 = vmatmul.f32.gmra.mxu0 %v902
  %v1014 = vpop.f32.mrf.mxu0
  %v1015 = vadd.f32 0.0, %v1014
  %1016 = vmatmul.f32.gmra.mxu0 %v905
  %v1017 = vpop.f32.mrf.mxu0
  %v1018 = vadd.f32 0.0, %v1017
  %1019 = vmatmul.f32.gmra.mxu0 %v908
  %v1020 = vpop.f32.mrf.mxu0
  %v1021 = vadd.f32 0.0, %v1020
  %1022 = vmatmul.f32.gmra.mxu0 %v911
  %v1023 = vpop.f32.mrf.mxu0
  %v1024 = vadd.f32 0.0, %v1023
  %1025 = vmatmul.f32.gmra.mxu0 %v914
  %v1026 = vpop.f32.mrf.mxu0
  %v1027 = vadd.f32 0.0, %v1026
  %1028 = vmatmul.f32.gmra.mxu0 %v917
  %v1029 = vpop.f32.mrf.mxu0
  %v1030 = vadd.f32 0.0, %v1029
  %1031 = vmatmul.f32.gmra.mxu0 %v920
  %v1032 = vpop.f32.mrf.mxu0
  %v1033 = vadd.f32 0.0, %v1032
  %1034 = vmatmul.f32.gmra.mxu0 %v923
  %v1035 = vpop.f32.mrf.mxu0
  %v1036 = vadd.f32 0.0, %v1035
  %1037 = vmatmul.f32.gmra.mxu0 %v926
  %v1038 = vpop.f32.mrf.mxu0
  %v1039 = vadd.f32 0.0, %v1038
  %1040 = vmatmul.f32.gmra.mxu0 %v929
  %v1041 = vpop.f32.mrf.mxu0
  %v1042 = vadd.f32 0.0, %v1041
  %1043 = vmatmul.f32.gmra.mxu0 %v932
  %v1044 = vpop.f32.mrf.mxu0
  %v1045 = vadd.f32 0.0, %v1044
  %1046 = vmatmul.f32.gmra.mxu0 %v935
  %v1047 = vpop.f32.mrf.mxu0
  %v1048 = vadd.f32 0.0, %v1047
  %1049 = vmatmul.f32.gmra.mxu0 %v938
  %v1050 = vpop.f32.mrf.mxu0
  %v1051 = vadd.f32 0.0, %v1050
  %1052 = vmatmul.f32.gmra.mxu0 %v941
  %v1053 = vpop.f32.mrf.mxu0
  %v1054 = vadd.f32 0.0, %v1053
  %1055 = vmatmul.f32.gmra.mxu0 %v944
  %v1056 = vpop.f32.mrf.mxu0
  %v1057 = vadd.f32 0.0, %v1056
  %1058 = vdwg.mxu0
  %v1060 = vsel %vm849, %v759, 0
  %v1063 = vsel %vm849, %v760, 0
  %v1066 = vsel %vm849, %v761, 0
  %v1069 = vsel %vm849, %v762, 0
  %v1072 = vsel %vm849, %v763, 0
  %v1075 = vsel %vm849, %v764, 0
  %v1078 = vsel %vm849, %v765, 0
  %v1081 = vsel %vm849, %v766, 0
  %v1084 = vsel %vm849, %v767, 0
  %v1087 = vsel %vm849, %v768, 0
  %v1090 = vsel %vm849, %v769, 0
  %v1093 = vsel %vm849, %v770, 0
  %v1096 = vsel %vm849, %v771, 0
  %v1099 = vsel %vm849, %v772, 0
  %v1102 = vsel %vm849, %v773, 0
  %v1105 = vsel %vm849, %v774, 0
  %v1108 = vsel %vm849, %v775, 0
  %v1111 = vsel %vm849, %v776, 0
  %v1114 = vsel %vm849, %v777, 0
  %v1117 = vsel %vm849, %v778, 0
  %v1120 = vsel %vm849, %v779, 0
  %v1123 = vsel %vm849, %v780, 0
  %v1126 = vsel %vm849, %v781, 0
  %v1129 = vsel %vm849, %v782, 0
  %v1132 = vsel %vm849, %v783, 0
  %v1135 = vsel %vm849, %v784, 0
  %v1138 = vsel %vm849, %v785, 0
  %v1141 = vsel %vm849, %v786, 0
  %v1144 = vsel %vm849, %v787, 0
  %v1147 = vsel %vm849, %v788, 0
  %v1150 = vsel %vm849, %v789, 0
  %v1153 = vsel %vm849, %v790, 0
  %1155 = vmatpush.msra.mxu0 0.0
  %1156 = vmatpush.msra.mxu0 0.0
  %1157 = vmatpush.msra.mxu0 0.0
  %1158 = vmatpush.msra.mxu0 0.0
  %1159 = vmatpush.msra.mxu0 %v802
  %1160 = vmatpush.msra.mxu0 %v801
  %1161 = vmatpush.msra.mxu0 %v800
  %1162 = vmatpush.msra.mxu0 %v799
  %1163 = vmatpush.msra.mxu0 %v798
  %1164 = vmatpush.msra.mxu0 %v797
  %1165 = vmatpush.msra.mxu0 %v796
  %1166 = vmatpush.msra.mxu0 %v795
  %1167 = vmatpush.msra.mxu0 %v794
  %1168 = vmatpush.msra.mxu0 %v793
  %1169 = vmatpush.msra.mxu0 %v792
  %1170 = vmatpush.msra.mxu0 %v791
  %1171 = vmatmul.f32.gmra.mxu0 %v1060
  %v1172 = vpop.f32.mrf.mxu0
  %v1173 = vadd.f32 %v964, %v1172
  %1174 = vmatmul.f32.gmra.mxu0 %v1063
  %v1175 = vpop.f32.mrf.mxu0
  %v1176 = vadd.f32 %v967, %v1175
  %1177 = vmatmul.f32.gmra.mxu0 %v1066
  %v1178 = vpop.f32.mrf.mxu0
  %v1179 = vadd.f32 %v970, %v1178
  %1180 = vmatmul.f32.gmra.mxu0 %v1069
  %v1181 = vpop.f32.mrf.mxu0
  %v1182 = vadd.f32 %v973, %v1181
  %1183 = vmatmul.f32.gmra.mxu0 %v1072
  %v1184 = vpop.f32.mrf.mxu0
  %v1185 = vadd.f32 %v976, %v1184
  %1186 = vmatmul.f32.gmra.mxu0 %v1075
  %v1187 = vpop.f32.mrf.mxu0
  %v1188 = vadd.f32 %v979, %v1187
  %1189 = vmatmul.f32.gmra.mxu0 %v1078
  %v1190 = vpop.f32.mrf.mxu0
  %v1191 = vadd.f32 %v982, %v1190
  %1192 = vmatmul.f32.gmra.mxu0 %v1081
  %v1193 = vpop.f32.mrf.mxu0
  %v1194 = vadd.f32 %v985, %v1193
  %1195 = vmatmul.f32.gmra.mxu0 %v1084
  %v1196 = vpop.f32.mrf.mxu0
  %v1197 = vadd.f32 %v988, %v1196
  %1198 = vmatmul.f32.gmra.mxu0 %v1087
  %v1199 = vpop.f32.mrf.mxu0
  %v1200 = vadd.f32 %v991, %v1199
  %1201 = vmatmul.f32.gmra.mxu0 %v1090
  %v1202 = vpop.f32.mrf.mxu0
  %v1203 = vadd.f32 %v994, %v1202
  %1204 = vmatmul.f32.gmra.mxu0 %v1093
  %v1205 = vpop.f32.mrf.mxu0
  %v1206 = vadd.f32 %v997, %v1205
  %1207 = vmatmul.f32.gmra.mxu0 %v1096
  %v1208 = vpop.f32.mrf.mxu0
  %v1209 = vadd.f32 %v1000, %v1208
  %1210 = vmatmul.f32.gmra.mxu0 %v1099
  %v1211 = vpop.f32.mrf.mxu0
  %v1212 = vadd.f32 %v1003, %v1211
  %1213 = vmatmul.f32.gmra.mxu0 %v1102
  %v1214 = vpop.f32.mrf.mxu0
  %v1215 = vadd.f32 %v1006, %v1214
  %1216 = vmatmul.f32.gmra.mxu0 %v1105
  %v1217 = vpop.f32.mrf.mxu0
  %v1218 = vadd.f32 %v1009, %v1217
  %1219 = vmatmul.f32.gmra.mxu0 %v1108
  %v1220 = vpop.f32.mrf.mxu0
  %v1221 = vadd.f32 %v1012, %v1220
  %1222 = vmatmul.f32.gmra.mxu0 %v1111
  %v1223 = vpop.f32.mrf.mxu0
  %v1224 = vadd.f32 %v1015, %v1223
  %1225 = vmatmul.f32.gmra.mxu0 %v1114
  %v1226 = vpop.f32.mrf.mxu0
  %v1227 = vadd.f32 %v1018, %v1226
  %1228 = vmatmul.f32.gmra.mxu0 %v1117
  %v1229 = vpop.f32.mrf.mxu0
  %v1230 = vadd.f32 %v1021, %v1229
  %1231 = vmatmul.f32.gmra.mxu0 %v1120
  %v1232 = vpop.f32.mrf.mxu0
  %v1233 = vadd.f32 %v1024, %v1232
  %1234 = vmatmul.f32.gmra.mxu0 %v1123
  %v1235 = vpop.f32.mrf.mxu0
  %v1236 = vadd.f32 %v1027, %v1235
  %1237 = vmatmul.f32.gmra.mxu0 %v1126
  %v1238 = vpop.f32.mrf.mxu0
  %v1239 = vadd.f32 %v1030, %v1238
  %1240 = vmatmul.f32.gmra.mxu0 %v1129
  %v1241 = vpop.f32.mrf.mxu0
  %v1242 = vadd.f32 %v1033, %v1241
  %1243 = vmatmul.f32.gmra.mxu0 %v1132
  %v1244 = vpop.f32.mrf.mxu0
  %v1245 = vadd.f32 %v1036, %v1244
  %1246 = vmatmul.f32.gmra.mxu0 %v1135
  %v1247 = vpop.f32.mrf.mxu0
  %v1248 = vadd.f32 %v1039, %v1247
  %1249 = vmatmul.f32.gmra.mxu0 %v1138
  %v1250 = vpop.f32.mrf.mxu0
  %v1251 = vadd.f32 %v1042, %v1250
  %1252 = vmatmul.f32.gmra.mxu0 %v1141
  %v1253 = vpop.f32.mrf.mxu0
  %v1254 = vadd.f32 %v1045, %v1253
  %1255 = vmatmul.f32.gmra.mxu0 %v1144
  %v1256 = vpop.f32.mrf.mxu0
  %v1257 = vadd.f32 %v1048, %v1256
  %1258 = vmatmul.f32.gmra.mxu0 %v1147
  %v1259 = vpop.f32.mrf.mxu0
  %v1260 = vadd.f32 %v1051, %v1259
  %1261 = vmatmul.f32.gmra.mxu0 %v1150
  %v1262 = vpop.f32.mrf.mxu0
  %v1263 = vadd.f32 %v1054, %v1262
  %1264 = vmatmul.f32.gmra.mxu0 %v1153
  %v1265 = vpop.f32.mrf.mxu0
  %v1266 = vadd.f32 %v1057, %v1265
  %1267 = vdwg.mxu0
  %s1268 = scalar_lea.vmem [#allocation3], 16
  %v1269 = vld [vmem:[%s1268] sm:$0xff]
  %v1270 = vld [vmem:[%s1268 + $0x8] sm:$0xff]
  %v1271 = vld [vmem:[%s1268 + $0x10] sm:$0xff]
  %v1272 = vld [vmem:[%s1268 + $0x18] sm:$0xff]
  %v1273 = vld [vmem:[%s1268 + $0x20] sm:$0xff]
  %v1274 = vld [vmem:[%s1268 + $0x28] sm:$0xff]
  %v1275 = vld [vmem:[%s1268 + $0x30] sm:$0xff]
  %v1276 = vld [vmem:[%s1268 + $0x38] sm:$0xff]
  %v1277 = vld [vmem:[%s1268 + $0x50] sm:$0xff]
  %v1278 = vld [vmem:[%s1268 + $0x58] sm:$0xff]
  %v1279 = vld [vmem:[%s1268 + $0x60] sm:$0xff]
  %v1280 = vld [vmem:[%s1268 + $0x68] sm:$0xff]
  %v1281 = vld [vmem:[%s1268 + $0x70] sm:$0xff]
  %v1282 = vld [vmem:[%s1268 + $0x78] sm:$0xff]
  %v1283 = vld [vmem:[%s1268 + $0x80] sm:$0xff]
  %v1284 = vld [vmem:[%s1268 + $0x88] sm:$0xff]
  %v1285 = vld [vmem:[%s1268 + $0xa0] sm:$0xff]
  %v1286 = vld [vmem:[%s1268 + $0xa8] sm:$0xff]
  %v1287 = vld [vmem:[%s1268 + $0xb0] sm:$0xff]
  %v1288 = vld [vmem:[%s1268 + $0xb8] sm:$0xff]
  %v1289 = vld [vmem:[%s1268 + $0xc0] sm:$0xff]
  %v1290 = vld [vmem:[%s1268 + $0xc8] sm:$0xff]
  %v1291 = vld [vmem:[%s1268 + $0xd0] sm:$0xff]
  %v1292 = vld [vmem:[%s1268 + $0xd8] sm:$0xff]
  %v1293 = vld [vmem:[%s1268 + $0xf0] sm:$0xff]
  %v1294 = vld [vmem:[%s1268 + $0xf8] sm:$0xff]
  %v1295 = vld [vmem:[%s1268 + $0x100] sm:$0xff]
  %v1296 = vld [vmem:[%s1268 + $0x108] sm:$0xff]
  %v1297 = vld [vmem:[%s1268 + $0x110] sm:$0xff]
  %v1298 = vld [vmem:[%s1268 + $0x118] sm:$0xff]
  %v1299 = vld [vmem:[%s1268 + $0x120] sm:$0xff]
  %v1300 = vld [vmem:[%s1268 + $0x128] sm:$0xff]
  %s1301 = scalar_lea.vmem %s1, 192
  %v1302 = vld [vmem:[%s1301] sm:$0xff]
  %v1303 = vld [vmem:[%s1301 + $0x8] sm:$0xff]
  %v1304 = vld [vmem:[%s1301 + $0x10] sm:$0xff]
  %v1305 = vld [vmem:[%s1301 + $0x18] sm:$0xff]
  %v1306 = vld [vmem:[%s1301 + $0x20] sm:$0xff]
  %v1307 = vld [vmem:[%s1301 + $0x28] sm:$0xff]
  %v1308 = vld [vmem:[%s1301 + $0x30] sm:$0xff]
  %v1309 = vld [vmem:[%s1301 + $0x38] sm:$0xff]
  %v1310 = vld [vmem:[%s1301 + $0x40] sm:$0xff]
  %v1311 = vld [vmem:[%s1301 + $0x48] sm:$0xff]
  %v1312 = vld [vmem:[%s1301 + $0x50] sm:$0xff]
  %v1313 = vld [vmem:[%s1301 + $0x58] sm:$0xff]
  %v1315 = vsel %vm849, %v1269, 0
  %v1318 = vsel %vm849, %v1270, 0
  %v1321 = vsel %vm849, %v1271, 0
  %v1324 = vsel %vm849, %v1272, 0
  %v1327 = vsel %vm849, %v1273, 0
  %v1330 = vsel %vm849, %v1274, 0
  %v1333 = vsel %vm849, %v1275, 0
  %v1336 = vsel %vm849, %v1276, 0
  %v1339 = vsel %vm849, %v1277, 0
  %v1342 = vsel %vm849, %v1278, 0
  %v1345 = vsel %vm849, %v1279, 0
  %v1348 = vsel %vm849, %v1280, 0
  %v1351 = vsel %vm849, %v1281, 0
  %v1354 = vsel %vm849, %v1282, 0
  %v1357 = vsel %vm849, %v1283, 0
  %v1360 = vsel %vm849, %v1284, 0
  %v1363 = vsel %vm849, %v1285, 0
  %v1366 = vsel %vm849, %v1286, 0
  %v1369 = vsel %vm849, %v1287, 0
  %v1372 = vsel %vm849, %v1288, 0
  %v1375 = vsel %vm849, %v1289, 0
  %v1378 = vsel %vm849, %v1290, 0
  %v1381 = vsel %vm849, %v1291, 0
  %v1384 = vsel %vm849, %v1292, 0
  %v1387 = vsel %vm849, %v1293, 0
  %v1390 = vsel %vm849, %v1294, 0
  %v1393 = vsel %vm849, %v1295, 0
  %v1396 = vsel %vm849, %v1296, 0
  %v1399 = vsel %vm849, %v1297, 0
  %v1402 = vsel %vm849, %v1298, 0
  %v1405 = vsel %vm849, %v1299, 0
  %v1408 = vsel %vm849, %v1300, 0
  %1410 = vmatpush.msra.mxu0 0.0
  %1411 = vmatpush.msra.mxu0 0.0
  %1412 = vmatpush.msra.mxu0 0.0
  %1413 = vmatpush.msra.mxu0 0.0
  %1414 = vmatpush.msra.mxu0 %v1313
  %1415 = vmatpush.msra.mxu0 %v1312
  %1416 = vmatpush.msra.mxu0 %v1311
  %1417 = vmatpush.msra.mxu0 %v1310
  %1418 = vmatpush.msra.mxu0 %v1309
  %1419 = vmatpush.msra.mxu0 %v1308
  %1420 = vmatpush.msra.mxu0 %v1307
  %1421 = vmatpush.msra.mxu0 %v1306
  %1422 = vmatpush.msra.mxu0 %v1305
  %1423 = vmatpush.msra.mxu0 %v1304
  %1424 = vmatpush.msra.mxu0 %v1303
  %1425 = vmatpush.msra.mxu0 %v1302
  %1426 = vmatmul.f32.gmra.mxu0 %v1315
  %v1427 = vpop.f32.mrf.mxu0
  %v1428 = vadd.f32 0.0, %v1427
  %1429 = vmatmul.f32.gmra.mxu0 %v1318
  %v1430 = vpop.f32.mrf.mxu0
  %v1431 = vadd.f32 0.0, %v1430
  %1432 = vmatmul.f32.gmra.mxu0 %v1321
  %v1433 = vpop.f32.mrf.mxu0
  %v1434 = vadd.f32 0.0, %v1433
  %1435 = vmatmul.f32.gmra.mxu0 %v1324
  %v1436 = vpop.f32.mrf.mxu0
  %v1437 = vadd.f32 0.0, %v1436
  %1438 = vmatmul.f32.gmra.mxu0 %v1327
  %v1439 = vpop.f32.mrf.mxu0
  %v1440 = vadd.f32 0.0, %v1439
  %1441 = vmatmul.f32.gmra.mxu0 %v1330
  %v1442 = vpop.f32.mrf.mxu0
  %v1443 = vadd.f32 0.0, %v1442
  %1444 = vmatmul.f32.gmra.mxu0 %v1333
  %v1445 = vpop.f32.mrf.mxu0
  %v1446 = vadd.f32 0.0, %v1445
  %1447 = vmatmul.f32.gmra.mxu0 %v1336
  %v1448 = vpop.f32.mrf.mxu0
  %v1449 = vadd.f32 0.0, %v1448
  %1450 = vmatmul.f32.gmra.mxu0 %v1339
  %v1451 = vpop.f32.mrf.mxu0
  %v1452 = vadd.f32 0.0, %v1451
  %1453 = vmatmul.f32.gmra.mxu0 %v1342
  %v1454 = vpop.f32.mrf.mxu0
  %v1455 = vadd.f32 0.0, %v1454
  %1456 = vmatmul.f32.gmra.mxu0 %v1345
  %v1457 = vpop.f32.mrf.mxu0
  %v1458 = vadd.f32 0.0, %v1457
  %1459 = vmatmul.f32.gmra.mxu0 %v1348
  %v1460 = vpop.f32.mrf.mxu0
  %v1461 = vadd.f32 0.0, %v1460
  %1462 = vmatmul.f32.gmra.mxu0 %v1351
  %v1463 = vpop.f32.mrf.mxu0
  %v1464 = vadd.f32 0.0, %v1463
  %1465 = vmatmul.f32.gmra.mxu0 %v1354
  %v1466 = vpop.f32.mrf.mxu0
  %v1467 = vadd.f32 0.0, %v1466
  %1468 = vmatmul.f32.gmra.mxu0 %v1357
  %v1469 = vpop.f32.mrf.mxu0
  %v1470 = vadd.f32 0.0, %v1469
  %1471 = vmatmul.f32.gmra.mxu0 %v1360
  %v1472 = vpop.f32.mrf.mxu0
  %v1473 = vadd.f32 0.0, %v1472
  %1474 = vmatmul.f32.gmra.mxu0 %v1363
  %v1475 = vpop.f32.mrf.mxu0
  %v1476 = vadd.f32 0.0, %v1475
  %1477 = vmatmul.f32.gmra.mxu0 %v1366
  %v1478 = vpop.f32.mrf.mxu0
  %v1479 = vadd.f32 0.0, %v1478
  %1480 = vmatmul.f32.gmra.mxu0 %v1369
  %v1481 = vpop.f32.mrf.mxu0
  %v1482 = vadd.f32 0.0, %v1481
  %1483 = vmatmul.f32.gmra.mxu0 %v1372
  %v1484 = vpop.f32.mrf.mxu0
  %v1485 = vadd.f32 0.0, %v1484
  %1486 = vmatmul.f32.gmra.mxu0 %v1375
  %v1487 = vpop.f32.mrf.mxu0
  %v1488 = vadd.f32 0.0, %v1487
  %1489 = vmatmul.f32.gmra.mxu0 %v1378
  %v1490 = vpop.f32.mrf.mxu0
  %v1491 = vadd.f32 0.0, %v1490
  %1492 = vmatmul.f32.gmra.mxu0 %v1381
  %v1493 = vpop.f32.mrf.mxu0
  %v1494 = vadd.f32 0.0, %v1493
  %1495 = vmatmul.f32.gmra.mxu0 %v1384
  %v1496 = vpop.f32.mrf.mxu0
  %v1497 = vadd.f32 0.0, %v1496
  %1498 = vmatmul.f32.gmra.mxu0 %v1387
  %v1499 = vpop.f32.mrf.mxu0
  %v1500 = vadd.f32 0.0, %v1499
  %1501 = vmatmul.f32.gmra.mxu0 %v1390
  %v1502 = vpop.f32.mrf.mxu0
  %v1503 = vadd.f32 0.0, %v1502
  %1504 = vmatmul.f32.gmra.mxu0 %v1393
  %v1505 = vpop.f32.mrf.mxu0
  %v1506 = vadd.f32 0.0, %v1505
  %1507 = vmatmul.f32.gmra.mxu0 %v1396
  %v1508 = vpop.f32.mrf.mxu0
  %v1509 = vadd.f32 0.0, %v1508
  %1510 = vmatmul.f32.gmra.mxu0 %v1399
  %v1511 = vpop.f32.mrf.mxu0
  %v1512 = vadd.f32 0.0, %v1511
  %1513 = vmatmul.f32.gmra.mxu0 %v1402
  %v1514 = vpop.f32.mrf.mxu0
  %v1515 = vadd.f32 0.0, %v1514
  %1516 = vmatmul.f32.gmra.mxu0 %v1405
  %v1517 = vpop.f32.mrf.mxu0
  %v1518 = vadd.f32 0.0, %v1517
  %1519 = vmatmul.f32.gmra.mxu0 %v1408
  %v1520 = vpop.f32.mrf.mxu0
  %v1521 = vadd.f32 0.0, %v1520
  %1522 = vdwg.mxu0
  %v1523 = vadd.f32 %v1173, %v1428
  %v1524 = vadd.f32 %v1176, %v1431
  %v1525 = vadd.f32 %v1179, %v1434
  %v1526 = vadd.f32 %v1182, %v1437
  %v1527 = vadd.f32 %v1185, %v1440
  %v1528 = vadd.f32 %v1188, %v1443
  %v1529 = vadd.f32 %v1191, %v1446
  %v1530 = vadd.f32 %v1194, %v1449
  %v1531 = vadd.f32 %v1197, %v1452
  %v1532 = vadd.f32 %v1200, %v1455
  %v1533 = vadd.f32 %v1203, %v1458
  %v1534 = vadd.f32 %v1206, %v1461
  %v1535 = vadd.f32 %v1209, %v1464
  %v1536 = vadd.f32 %v1212, %v1467
  %v1537 = vadd.f32 %v1215, %v1470
  %v1538 = vadd.f32 %v1218, %v1473
  %v1539 = vadd.f32 %v1221, %v1476
  %v1540 = vadd.f32 %v1224, %v1479
  %v1541 = vadd.f32 %v1227, %v1482
  %v1542 = vadd.f32 %v1230, %v1485
  %v1543 = vadd.f32 %v1233, %v1488
  %v1544 = vadd.f32 %v1236, %v1491
  %v1545 = vadd.f32 %v1239, %v1494
  %v1546 = vadd.f32 %v1242, %v1497
  %v1547 = vadd.f32 %v1245, %v1500
  %v1548 = vadd.f32 %v1248, %v1503
  %v1549 = vadd.f32 %v1251, %v1506
  %v1550 = vadd.f32 %v1254, %v1509
  %v1551 = vadd.f32 %v1257, %v1512
  %v1552 = vadd.f32 %v1260, %v1515
  %v1553 = vadd.f32 %v1263, %v1518
  %v1554 = vadd.f32 %v1266, %v1521
  %v1555 = vld [vmem:[%s2] sm:$0x1]
  %v1557 = vperm.slane %v1555, 0
  %v1559 = vmul.f32 %v1523, %v1557
  %v1560 = vmul.f32 %v1524, %v1557
  %v1561 = vmul.f32 %v1525, %v1557
  %v1562 = vmul.f32 %v1526, %v1557
  %v1563 = vmul.f32 %v1527, %v1557
  %v1564 = vmul.f32 %v1528, %v1557
  %v1565 = vmul.f32 %v1529, %v1557
  %v1566 = vmul.f32 %v1530, %v1557
  %v1567 = vmul.f32 %v1531, %v1557
  %v1568 = vmul.f32 %v1532, %v1557
  %v1569 = vmul.f32 %v1533, %v1557
  %v1570 = vmul.f32 %v1534, %v1557
  %v1571 = vmul.f32 %v1535, %v1557
  %v1572 = vmul.f32 %v1536, %v1557
  %v1573 = vmul.f32 %v1537, %v1557
  %v1574 = vmul.f32 %v1538, %v1557
  %v1575 = vmul.f32 %v1539, %v1557
  %v1576 = vmul.f32 %v1540, %v1557
  %v1577 = vmul.f32 %v1541, %v1557
  %v1578 = vmul.f32 %v1542, %v1557
  %v1579 = vmul.f32 %v1543, %v1557
  %v1580 = vmul.f32 %v1544, %v1557
  %v1581 = vmul.f32 %v1545, %v1557
  %v1582 = vmul.f32 %v1546, %v1557
  %v1583 = vmul.f32 %v1547, %v1557
  %v1584 = vmul.f32 %v1548, %v1557
  %v1585 = vmul.f32 %v1549, %v1557
  %v1586 = vmul.f32 %v1550, %v1557
  %v1587 = vmul.f32 %v1551, %v1557
  %v1588 = vmul.f32 %v1552, %v1557
  %v1589 = vmul.f32 %v1553, %v1557
  %v1590 = vmul.f32 %v1554, %v1557
  %v1591 = vld [vmem:[%s3] sm:$0x1]
  %v1593 = vperm.slane %v1591, 0
  %v1595 = vadd.f32 %v1559, %v1593
  %v1596 = vadd.f32 %v1560, %v1593
  %v1597 = vadd.f32 %v1561, %v1593
  %v1598 = vadd.f32 %v1562, %v1593
  %v1599 = vadd.f32 %v1563, %v1593
  %v1600 = vadd.f32 %v1564, %v1593
  %v1601 = vadd.f32 %v1565, %v1593
  %v1602 = vadd.f32 %v1566, %v1593
  %v1603 = vadd.f32 %v1567, %v1593
  %v1604 = vadd.f32 %v1568, %v1593
  %v1605 = vadd.f32 %v1569, %v1593
  %v1606 = vadd.f32 %v1570, %v1593
  %v1607 = vadd.f32 %v1571, %v1593
  %v1608 = vadd.f32 %v1572, %v1593
  %v1609 = vadd.f32 %v1573, %v1593
  %v1610 = vadd.f32 %v1574, %v1593
  %v1611 = vadd.f32 %v1575, %v1593
  %v1612 = vadd.f32 %v1576, %v1593
  %v1613 = vadd.f32 %v1577, %v1593
  %v1614 = vadd.f32 %v1578, %v1593
  %v1615 = vadd.f32 %v1579, %v1593
  %v1616 = vadd.f32 %v1580, %v1593
  %v1617 = vadd.f32 %v1581, %v1593
  %v1618 = vadd.f32 %v1582, %v1593
  %v1619 = vadd.f32 %v1583, %v1593
  %v1620 = vadd.f32 %v1584, %v1593
  %v1621 = vadd.f32 %v1585, %v1593
  %v1622 = vadd.f32 %v1586, %v1593
  %v1623 = vadd.f32 %v1587, %v1593
  %v1624 = vadd.f32 %v1588, %v1593
  %v1625 = vadd.f32 %v1589, %v1593
  %v1626 = vadd.f32 %v1590, %v1593
  %v1627 = vmax.f32 %v1595, 0.0
  %v1628 = vmax.f32 %v1596, 0.0
  %v1629 = vmax.f32 %v1597, 0.0
  %v1630 = vmax.f32 %v1598, 0.0
  %v1631 = vmax.f32 %v1599, 0.0
  %v1632 = vmax.f32 %v1600, 0.0
  %v1633 = vmax.f32 %v1601, 0.0
  %v1634 = vmax.f32 %v1602, 0.0
  %v1635 = vmax.f32 %v1603, 0.0
  %v1636 = vmax.f32 %v1604, 0.0
  %v1637 = vmax.f32 %v1605, 0.0
  %v1638 = vmax.f32 %v1606, 0.0
  %v1639 = vmax.f32 %v1607, 0.0
  %v1640 = vmax.f32 %v1608, 0.0
  %v1641 = vmax.f32 %v1609, 0.0
  %v1642 = vmax.f32 %v1610, 0.0
  %v1643 = vmax.f32 %v1611, 0.0
  %v1644 = vmax.f32 %v1612, 0.0
  %v1645 = vmax.f32 %v1613, 0.0
  %v1646 = vmax.f32 %v1614, 0.0
  %v1647 = vmax.f32 %v1615, 0.0
  %v1648 = vmax.f32 %v1616, 0.0
  %v1649 = vmax.f32 %v1617, 0.0
  %v1650 = vmax.f32 %v1618, 0.0
  %v1651 = vmax.f32 %v1619, 0.0
  %v1652 = vmax.f32 %v1620, 0.0
  %v1653 = vmax.f32 %v1621, 0.0
  %v1654 = vmax.f32 %v1622, 0.0
  %v1655 = vmax.f32 %v1623, 0.0
  %v1656 = vmax.f32 %v1624, 0.0
  %v1657 = vmax.f32 %v1625, 0.0
  %v1658 = vmax.f32 %v1626, 0.0
  %1659 = vst.msk [vmem:[%s164 + $0x1] sm:$0xff] %vm32, %v1627
  %1660 = vst.msk [vmem:[%s164 + $0x11] sm:$0xff] %vm32, %v1628
  %1661 = vst.msk [vmem:[%s164 + $0x21] sm:$0xff] %vm32, %v1629
  %1662 = vst.msk [vmem:[%s164 + $0x31] sm:$0xff] %vm32, %v1630
  %1663 = vst.msk [vmem:[%s164 + $0x41] sm:$0xff] %vm32, %v1631
  %1664 = vst.msk [vmem:[%s164 + $0x51] sm:$0xff] %vm32, %v1632
  %1665 = vst.msk [vmem:[%s164 + $0x61] sm:$0xff] %vm32, %v1633
  %1666 = vst.msk [vmem:[%s164 + $0x71] sm:$0xff] %vm32, %v1634
  %1667 = vst.msk [vmem:[%s164 + $0xa1] sm:$0xff] %vm32, %v1635
  %1668 = vst.msk [vmem:[%s164 + $0xb1] sm:$0xff] %vm32, %v1636
  %1669 = vst.msk [vmem:[%s164 + $0xc1] sm:$0xff] %vm32, %v1637
  %1670 = vst.msk [vmem:[%s164 + $0xd1] sm:$0xff] %vm32, %v1638
  %1671 = vst.msk [vmem:[%s164 + $0xe1] sm:$0xff] %vm32, %v1639
  %1672 = vst.msk [vmem:[%s164 + $0xf1] sm:$0xff] %vm32, %v1640
  %1673 = vst.msk [vmem:[%s164 + $0x101] sm:$0xff] %vm32, %v1641
  %1674 = vst.msk [vmem:[%s164 + $0x111] sm:$0xff] %vm32, %v1642
  %1675 = vst.msk [vmem:[%s164 + $0x141] sm:$0xff] %vm32, %v1643
  %1676 = vst.msk [vmem:[%s164 + $0x151] sm:$0xff] %vm32, %v1644
  %1677 = vst.msk [vmem:[%s164 + $0x161] sm:$0xff] %vm32, %v1645
  %1678 = vst.msk [vmem:[%s164 + $0x171] sm:$0xff] %vm32, %v1646
  %1679 = vst.msk [vmem:[%s164 + $0x181] sm:$0xff] %vm32, %v1647
  %1680 = vst.msk [vmem:[%s164 + $0x191] sm:$0xff] %vm32, %v1648
  %1681 = vst.msk [vmem:[%s164 + $0x1a1] sm:$0xff] %vm32, %v1649
  %1682 = vst.msk [vmem:[%s164 + $0x1b1] sm:$0xff] %vm32, %v1650
  %1683 = vst.msk [vmem:[%s164 + $0x1e1] sm:$0xff] %vm32, %v1651
  %1684 = vst.msk [vmem:[%s164 + $0x1f1] sm:$0xff] %vm32, %v1652
  %1685 = vst.msk [vmem:[%s164 + $0x201] sm:$0xff] %vm32, %v1653
  %1686 = vst.msk [vmem:[%s164 + $0x211] sm:$0xff] %vm32, %v1654
  %1687 = vst.msk [vmem:[%s164 + $0x221] sm:$0xff] %vm32, %v1655
  %1688 = vst.msk [vmem:[%s164 + $0x231] sm:$0xff] %vm32, %v1656
  %1689 = vst.msk [vmem:[%s164 + $0x241] sm:$0xff] %vm32, %v1657
  %1690 = vst.msk [vmem:[%s164 + $0x251] sm:$0xff] %vm32, %v1658
  %v1691 = vld [vmem:[#allocation2] sm:$0xff]
  %v1692 = vld [vmem:[#allocation2 + $0x10] sm:$0xff]
  %v1693 = vld [vmem:[#allocation2 + $0x20] sm:$0xff]
  %v1694 = vld [vmem:[#allocation2 + $0x30] sm:$0xff]
  %v1695 = vld [vmem:[#allocation2 + $0x40] sm:$0xff]
  %v1696 = vld [vmem:[#allocation2 + $0x50] sm:$0xff]
  %v1697 = vld [vmem:[#allocation2 + $0x60] sm:$0xff]
  %v1698 = vld [vmem:[#allocation2 + $0x70] sm:$0xff]
  %v1699 = vld [vmem:[#allocation2 + $0x80] sm:$0xff]
  %v1700 = vld [vmem:[#allocation2 + $0x90] sm:$0xff]
  %v1701 = vld [vmem:[#allocation2 + $0xa0] sm:$0xff]
  %v1702 = vld [vmem:[#allocation2 + $0xb0] sm:$0xff]
  %v1703 = vld [vmem:[#allocation2 + $0xc0] sm:$0xff]
  %v1704 = vld [vmem:[#allocation2 + $0xd0] sm:$0xff]
  %v1705 = vld [vmem:[#allocation2 + $0xe0] sm:$0xff]
  %v1706 = vld [vmem:[#allocation2 + $0xf0] sm:$0xff]
  %v1707 = vld [vmem:[#allocation2 + $0x100] sm:$0xff]
  %v1708 = vld [vmem:[#allocation2 + $0x110] sm:$0xff]
  %v1709 = vld [vmem:[#allocation2 + $0x120] sm:$0xff]
  %v1710 = vld [vmem:[#allocation2 + $0x130] sm:$0xff]
  %v1711 = vld [vmem:[#allocation2 + $0x140] sm:$0xff]
  %v1712 = vld [vmem:[#allocation2 + $0x150] sm:$0xff]
  %v1713 = vld [vmem:[#allocation2 + $0x160] sm:$0xff]
  %v1714 = vld [vmem:[#allocation2 + $0x170] sm:$0xff]
  %v1715 = vld [vmem:[#allocation2 + $0x180] sm:$0xff]
  %v1716 = vld [vmem:[#allocation2 + $0x190] sm:$0xff]
  %v1717 = vld [vmem:[#allocation2 + $0x1a0] sm:$0xff]
  %v1718 = vld [vmem:[#allocation2 + $0x1b0] sm:$0xff]
  %v1719 = vld [vmem:[#allocation2 + $0x1c0] sm:$0xff]
  %v1720 = vld [vmem:[#allocation2 + $0x1d0] sm:$0xff]
  %v1721 = vld [vmem:[#allocation2 + $0x1e0] sm:$0xff]
  %v1722 = vld [vmem:[#allocation2 + $0x1f0] sm:$0xff]
  %v1723 = vld [vmem:[#allocation2 + $0x200] sm:$0xff]
  %v1724 = vld [vmem:[#allocation2 + $0x210] sm:$0xff]
  %v1725 = vld [vmem:[#allocation2 + $0x220] sm:$0xff]
  %v1726 = vld [vmem:[#allocation2 + $0x230] sm:$0xff]
  %v1727 = vld [vmem:[#allocation2 + $0x240] sm:$0xff]
  %v1728 = vld [vmem:[#allocation2 + $0x250] sm:$0xff]
  %v1729 = vld [vmem:[#allocation2 + $0x260] sm:$0xff]
  %v1730 = vld [vmem:[#allocation2 + $0x270] sm:$0xff]
  %1731 = vst.msk [vmem:[#allocation3] sm:$0xff] %vm32, %v1691
  %1732 = vst.msk [vmem:[#allocation3 + $0x8] sm:$0xff] %vm32, %v1692
  %1733 = vst.msk [vmem:[#allocation3 + $0x10] sm:$0xff] %vm32, %v1693
  %1734 = vst.msk [vmem:[#allocation3 + $0x18] sm:$0xff] %vm32, %v1694
  %1735 = vst.msk [vmem:[#allocation3 + $0x20] sm:$0xff] %vm32, %v1695
  %1736 = vst.msk [vmem:[#allocation3 + $0x28] sm:$0xff] %vm32, %v1696
  %1737 = vst.msk [vmem:[#allocation3 + $0x30] sm:$0xff] %vm32, %v1697
  %1738 = vst.msk [vmem:[#allocation3 + $0x38] sm:$0xff] %vm32, %v1698
  %1739 = vst.msk [vmem:[#allocation3 + $0x40] sm:$0xff] %vm32, %v1699
  %1740 = vst.msk [vmem:[#allocation3 + $0x48] sm:$0xff] %vm32, %v1700
  %1741 = vst.msk [vmem:[#allocation3 + $0x50] sm:$0xff] %vm32, %v1701
  %1742 = vst.msk [vmem:[#allocation3 + $0x58] sm:$0xff] %vm32, %v1702
  %1743 = vst.msk [vmem:[#allocation3 + $0x60] sm:$0xff] %vm32, %v1703
  %1744 = vst.msk [vmem:[#allocation3 + $0x68] sm:$0xff] %vm32, %v1704
  %1745 = vst.msk [vmem:[#allocation3 + $0x70] sm:$0xff] %vm32, %v1705
  %1746 = vst.msk [vmem:[#allocation3 + $0x78] sm:$0xff] %vm32, %v1706
  %1747 = vst.msk [vmem:[#allocation3 + $0x80] sm:$0xff] %vm32, %v1707
  %1748 = vst.msk [vmem:[#allocation3 + $0x88] sm:$0xff] %vm32, %v1708
  %1749 = vst.msk [vmem:[#allocation3 + $0x90] sm:$0xff] %vm32, %v1709
  %1750 = vst.msk [vmem:[#allocation3 + $0x98] sm:$0xff] %vm32, %v1710
  %1751 = vst.msk [vmem:[#allocation3 + $0xa0] sm:$0xff] %vm32, %v1711
  %1752 = vst.msk [vmem:[#allocation3 + $0xa8] sm:$0xff] %vm32, %v1712
  %1753 = vst.msk [vmem:[#allocation3 + $0xb0] sm:$0xff] %vm32, %v1713
  %1754 = vst.msk [vmem:[#allocation3 + $0xb8] sm:$0xff] %vm32, %v1714
  %1755 = vst.msk [vmem:[#allocation3 + $0xc0] sm:$0xff] %vm32, %v1715
  %1756 = vst.msk [vmem:[#allocation3 + $0xc8] sm:$0xff] %vm32, %v1716
  %1757 = vst.msk [vmem:[#allocation3 + $0xd0] sm:$0xff] %vm32, %v1717
  %1758 = vst.msk [vmem:[#allocation3 + $0xd8] sm:$0xff] %vm32, %v1718
  %1759 = vst.msk [vmem:[#allocation3 + $0xe0] sm:$0xff] %vm32, %v1719
  %1760 = vst.msk [vmem:[#allocation3 + $0xe8] sm:$0xff] %vm32, %v1720
  %1761 = vst.msk [vmem:[#allocation3 + $0xf0] sm:$0xff] %vm32, %v1721
  %1762 = vst.msk [vmem:[#allocation3 + $0xf8] sm:$0xff] %vm32, %v1722
  %1763 = vst.msk [vmem:[#allocation3 + $0x100] sm:$0xff] %vm32, %v1723
  %1764 = vst.msk [vmem:[#allocation3 + $0x108] sm:$0xff] %vm32, %v1724
  %1765 = vst.msk [vmem:[#allocation3 + $0x110] sm:$0xff] %vm32, %v1725
  %1766 = vst.msk [vmem:[#allocation3 + $0x118] sm:$0xff] %vm32, %v1726
  %1767 = vst.msk [vmem:[#allocation3 + $0x120] sm:$0xff] %vm32, %v1727
  %1768 = vst.msk [vmem:[#allocation3 + $0x128] sm:$0xff] %vm32, %v1728
  %1769 = vst.msk [vmem:[#allocation3 + $0x130] sm:$0xff] %vm32, %v1729
  %1770 = vst.msk [vmem:[#allocation3 + $0x138] sm:$0xff] %vm32, %v1730
  %v1771 = vld [vmem:[#allocation2 + $0x1] sm:$0xff]
  %v1772 = vld [vmem:[#allocation2 + $0x11] sm:$0xff]
  %v1773 = vld [vmem:[#allocation2 + $0x21] sm:$0xff]
  %v1774 = vld [vmem:[#allocation2 + $0x31] sm:$0xff]
  %v1775 = vld [vmem:[#allocation2 + $0x41] sm:$0xff]
  %v1776 = vld [vmem:[#allocation2 + $0x51] sm:$0xff]
  %v1777 = vld [vmem:[#allocation2 + $0x61] sm:$0xff]
  %v1778 = vld [vmem:[#allocation2 + $0x71] sm:$0xff]
  %v1779 = vld [vmem:[#allocation2 + $0x81] sm:$0xff]
  %v1780 = vld [vmem:[#allocation2 + $0x91] sm:$0xff]
  %v1781 = vld [vmem:[#allocation2 + $0xa1] sm:$0xff]
  %v1782 = vld [vmem:[#allocation2 + $0xb1] sm:$0xff]
  %v1783 = vld [vmem:[#allocation2 + $0xc1] sm:$0xff]
  %v1784 = vld [vmem:[#allocation2 + $0xd1] sm:$0xff]
  %v1785 = vld [vmem:[#allocation2 + $0xe1] sm:$0xff]
  %v1786 = vld [vmem:[#allocation2 + $0xf1] sm:$0xff]
  %v1787 = vld [vmem:[#allocation2 + $0x101] sm:$0xff]
  %v1788 = vld [vmem:[#allocation2 + $0x111] sm:$0xff]
  %v1789 = vld [vmem:[#allocation2 + $0x121] sm:$0xff]
  %v1790 = vld [vmem:[#allocation2 + $0x131] sm:$0xff]
  %v1791 = vld [vmem:[#allocation2 + $0x141] sm:$0xff]
  %v1792 = vld [vmem:[#allocation2 + $0x151] sm:$0xff]
  %v1793 = vld [vmem:[#allocation2 + $0x161] sm:$0xff]
  %v1794 = vld [vmem:[#allocation2 + $0x171] sm:$0xff]
  %v1795 = vld [vmem:[#allocation2 + $0x181] sm:$0xff]
  %v1796 = vld [vmem:[#allocation2 + $0x191] sm:$0xff]
  %v1797 = vld [vmem:[#allocation2 + $0x1a1] sm:$0xff]
  %v1798 = vld [vmem:[#allocation2 + $0x1b1] sm:$0xff]
  %v1799 = vld [vmem:[#allocation2 + $0x1c1] sm:$0xff]
  %v1800 = vld [vmem:[#allocation2 + $0x1d1] sm:$0xff]
  %v1801 = vld [vmem:[#allocation2 + $0x1e1] sm:$0xff]
  %v1802 = vld [vmem:[#allocation2 + $0x1f1] sm:$0xff]
  %v1803 = vld [vmem:[#allocation2 + $0x201] sm:$0xff]
  %v1804 = vld [vmem:[#allocation2 + $0x211] sm:$0xff]
  %v1805 = vld [vmem:[#allocation2 + $0x221] sm:$0xff]
  %v1806 = vld [vmem:[#allocation2 + $0x231] sm:$0xff]
  %v1807 = vld [vmem:[#allocation2 + $0x241] sm:$0xff]
  %v1808 = vld [vmem:[#allocation2 + $0x251] sm:$0xff]
  %v1809 = vld [vmem:[#allocation2 + $0x261] sm:$0xff]
  %v1810 = vld [vmem:[#allocation2 + $0x271] sm:$0xff]
  %1851 = vrot.lane.b32.xlu0 %v1771, 32
  %v1852 = vpop.permute.xlu0 %1851
  %1853 = vrot.lane.b32.xlu0 %v1772, 32
  %v1854 = vpop.permute.xlu0 %1853
  %1855 = vrot.lane.b32.xlu0 %v1773, 32
  %v1856 = vpop.permute.xlu0 %1855
  %1857 = vrot.lane.b32.xlu0 %v1774, 32
  %v1858 = vpop.permute.xlu0 %1857
  %1859 = vrot.lane.b32.xlu0 %v1775, 32
  %v1860 = vpop.permute.xlu0 %1859
  %1861 = vrot.lane.b32.xlu0 %v1776, 32
  %v1862 = vpop.permute.xlu0 %1861
  %1863 = vrot.lane.b32.xlu0 %v1777, 32
  %v1864 = vpop.permute.xlu0 %1863
  %1865 = vrot.lane.b32.xlu0 %v1778, 32
  %v1866 = vpop.permute.xlu0 %1865
  %1867 = vrot.lane.b32.xlu0 %v1779, 32
  %v1868 = vpop.permute.xlu0 %1867
  %1869 = vrot.lane.b32.xlu0 %v1780, 32
  %v1870 = vpop.permute.xlu0 %1869
  %1871 = vrot.lane.b32.xlu0 %v1781, 32
  %v1872 = vpop.permute.xlu0 %1871
  %1873 = vrot.lane.b32.xlu0 %v1782, 32
  %v1874 = vpop.permute.xlu0 %1873
  %1875 = vrot.lane.b32.xlu0 %v1783, 32
  %v1876 = vpop.permute.xlu0 %1875
  %1877 = vrot.lane.b32.xlu0 %v1784, 32
  %v1878 = vpop.permute.xlu0 %1877
  %1879 = vrot.lane.b32.xlu0 %v1785, 32
  %v1880 = vpop.permute.xlu0 %1879
  %1881 = vrot.lane.b32.xlu0 %v1786, 32
  %v1882 = vpop.permute.xlu0 %1881
  %1883 = vrot.lane.b32.xlu0 %v1787, 32
  %v1884 = vpop.permute.xlu0 %1883
  %1885 = vrot.lane.b32.xlu0 %v1788, 32
  %v1886 = vpop.permute.xlu0 %1885
  %1887 = vrot.lane.b32.xlu0 %v1789, 32
  %v1888 = vpop.permute.xlu0 %1887
  %1889 = vrot.lane.b32.xlu0 %v1790, 32
  %v1890 = vpop.permute.xlu0 %1889
  %1891 = vrot.lane.b32.xlu0 %v1791, 32
  %v1892 = vpop.permute.xlu0 %1891
  %1893 = vrot.lane.b32.xlu0 %v1792, 32
  %v1894 = vpop.permute.xlu0 %1893
  %1895 = vrot.lane.b32.xlu0 %v1793, 32
  %v1896 = vpop.permute.xlu0 %1895
  %1897 = vrot.lane.b32.xlu0 %v1794, 32
  %v1898 = vpop.permute.xlu0 %1897
  %1899 = vrot.lane.b32.xlu0 %v1795, 32
  %v1900 = vpop.permute.xlu0 %1899
  %1901 = vrot.lane.b32.xlu0 %v1796, 32
  %v1902 = vpop.permute.xlu0 %1901
  %1903 = vrot.lane.b32.xlu0 %v1797, 32
  %v1904 = vpop.permute.xlu0 %1903
  %1905 = vrot.lane.b32.xlu0 %v1798, 32
  %v1906 = vpop.permute.xlu0 %1905
  %1907 = vrot.lane.b32.xlu0 %v1799, 32
  %v1908 = vpop.permute.xlu0 %1907
  %1909 = vrot.lane.b32.xlu0 %v1800, 32
  %v1910 = vpop.permute.xlu0 %1909
  %1911 = vrot.lane.b32.xlu0 %v1801, 32
  %v1912 = vpop.permute.xlu0 %1911
  %1913 = vrot.lane.b32.xlu0 %v1802, 32
  %v1914 = vpop.permute.xlu0 %1913
  %1915 = vrot.lane.b32.xlu0 %v1803, 32
  %v1916 = vpop.permute.xlu0 %1915
  %1917 = vrot.lane.b32.xlu0 %v1804, 32
  %v1918 = vpop.permute.xlu0 %1917
  %1919 = vrot.lane.b32.xlu0 %v1805, 32
  %v1920 = vpop.permute.xlu0 %1919
  %1921 = vrot.lane.b32.xlu0 %v1806, 32
  %v1922 = vpop.permute.xlu0 %1921
  %1923 = vrot.lane.b32.xlu0 %v1807, 32
  %v1924 = vpop.permute.xlu0 %1923
  %1925 = vrot.lane.b32.xlu0 %v1808, 32
  %v1926 = vpop.permute.xlu0 %1925
  %1927 = vrot.lane.b32.xlu0 %v1809, 32
  %v1928 = vpop.permute.xlu0 %1927
  %1929 = vrot.lane.b32.xlu0 %v1810, 32
  %v1930 = vpop.permute.xlu0 %1929
  %1971 = vst.msk [vmem:[#allocation3] sm:$0xff] %vm477, %v1852
  %1972 = vst.msk [vmem:[#allocation3 + $0x8] sm:$0xff] %vm477, %v1854
  %1973 = vst.msk [vmem:[#allocation3 + $0x10] sm:$0xff] %vm477, %v1856
  %1974 = vst.msk [vmem:[#allocation3 + $0x18] sm:$0xff] %vm477, %v1858
  %1975 = vst.msk [vmem:[#allocation3 + $0x20] sm:$0xff] %vm477, %v1860
  %1976 = vst.msk [vmem:[#allocation3 + $0x28] sm:$0xff] %vm477, %v1862
  %1977 = vst.msk [vmem:[#allocation3 + $0x30] sm:$0xff] %vm477, %v1864
  %1978 = vst.msk [vmem:[#allocation3 + $0x38] sm:$0xff] %vm477, %v1866
  %1979 = vst.msk [vmem:[#allocation3 + $0x40] sm:$0xff] %vm477, %v1868
  %1980 = vst.msk [vmem:[#allocation3 + $0x48] sm:$0xff] %vm477, %v1870
  %1981 = vst.msk [vmem:[#allocation3 + $0x50] sm:$0xff] %vm477, %v1872
  %1982 = vst.msk [vmem:[#allocation3 + $0x58] sm:$0xff] %vm477, %v1874
  %1983 = vst.msk [vmem:[#allocation3 + $0x60] sm:$0xff] %vm477, %v1876
  %1984 = vst.msk [vmem:[#allocation3 + $0x68] sm:$0xff] %vm477, %v1878
  %1985 = vst.msk [vmem:[#allocation3 + $0x70] sm:$0xff] %vm477, %v1880
  %1986 = vst.msk [vmem:[#allocation3 + $0x78] sm:$0xff] %vm477, %v1882
  %1987 = vst.msk [vmem:[#allocation3 + $0x80] sm:$0xff] %vm477, %v1884
  %1988 = vst.msk [vmem:[#allocation3 + $0x88] sm:$0xff] %vm477, %v1886
  %1989 = vst.msk [vmem:[#allocation3 + $0x90] sm:$0xff] %vm477, %v1888
  %1990 = vst.msk [vmem:[#allocation3 + $0x98] sm:$0xff] %vm477, %v1890
  %1991 = vst.msk [vmem:[#allocation3 + $0xa0] sm:$0xff] %vm477, %v1892
  %1992 = vst.msk [vmem:[#allocation3 + $0xa8] sm:$0xff] %vm477, %v1894
  %1993 = vst.msk [vmem:[#allocation3 + $0xb0] sm:$0xff] %vm477, %v1896
  %1994 = vst.msk [vmem:[#allocation3 + $0xb8] sm:$0xff] %vm477, %v1898
  %1995 = vst.msk [vmem:[#allocation3 + $0xc0] sm:$0xff] %vm477, %v1900
  %1996 = vst.msk [vmem:[#allocation3 + $0xc8] sm:$0xff] %vm477, %v1902
  %1997 = vst.msk [vmem:[#allocation3 + $0xd0] sm:$0xff] %vm477, %v1904
  %1998 = vst.msk [vmem:[#allocation3 + $0xd8] sm:$0xff] %vm477, %v1906
  %1999 = vst.msk [vmem:[#allocation3 + $0xe0] sm:$0xff] %vm477, %v1908
  %2000 = vst.msk [vmem:[#allocation3 + $0xe8] sm:$0xff] %vm477, %v1910
  %2001 = vst.msk [vmem:[#allocation3 + $0xf0] sm:$0xff] %vm477, %v1912
  %2002 = vst.msk [vmem:[#allocation3 + $0xf8] sm:$0xff] %vm477, %v1914
  %2003 = vst.msk [vmem:[#allocation3 + $0x100] sm:$0xff] %vm477, %v1916
  %2004 = vst.msk [vmem:[#allocation3 + $0x108] sm:$0xff] %vm477, %v1918
  %2005 = vst.msk [vmem:[#allocation3 + $0x110] sm:$0xff] %vm477, %v1920
  %2006 = vst.msk [vmem:[#allocation3 + $0x118] sm:$0xff] %vm477, %v1922
  %2007 = vst.msk [vmem:[#allocation3 + $0x120] sm:$0xff] %vm477, %v1924
  %2008 = vst.msk [vmem:[#allocation3 + $0x128] sm:$0xff] %vm477, %v1926
  %2009 = vst.msk [vmem:[#allocation3 + $0x130] sm:$0xff] %vm477, %v1928
  %2010 = vst.msk [vmem:[#allocation3 + $0x138] sm:$0xff] %vm477, %v1930
  %v2011 = vld [vmem:[#allocation2 + $0x2] sm:$0xff]
  %v2012 = vld [vmem:[#allocation2 + $0x12] sm:$0xff]
  %v2013 = vld [vmem:[#allocation2 + $0x22] sm:$0xff]
  %v2014 = vld [vmem:[#allocation2 + $0x32] sm:$0xff]
  %v2015 = vld [vmem:[#allocation2 + $0x42] sm:$0xff]
  %v2016 = vld [vmem:[#allocation2 + $0x52] sm:$0xff]
  %v2017 = vld [vmem:[#allocation2 + $0x62] sm:$0xff]
  %v2018 = vld [vmem:[#allocation2 + $0x72] sm:$0xff]
  %v2019 = vld [vmem:[#allocation2 + $0x82] sm:$0xff]
  %v2020 = vld [vmem:[#allocation2 + $0x92] sm:$0xff]
  %v2021 = vld [vmem:[#allocation2 + $0xa2] sm:$0xff]
  %v2022 = vld [vmem:[#allocation2 + $0xb2] sm:$0xff]
  %v2023 = vld [vmem:[#allocation2 + $0xc2] sm:$0xff]
  %v2024 = vld [vmem:[#allocation2 + $0xd2] sm:$0xff]
  %v2025 = vld [vmem:[#allocation2 + $0xe2] sm:$0xff]
  %v2026 = vld [vmem:[#allocation2 + $0xf2] sm:$0xff]
  %v2027 = vld [vmem:[#allocation2 + $0x102] sm:$0xff]
  %v2028 = vld [vmem:[#allocation2 + $0x112] sm:$0xff]
  %v2029 = vld [vmem:[#allocation2 + $0x122] sm:$0xff]
  %v2030 = vld [vmem:[#allocation2 + $0x132] sm:$0xff]
  %v2031 = vld [vmem:[#allocation2 + $0x142] sm:$0xff]
  %v2032 = vld [vmem:[#allocation2 + $0x152] sm:$0xff]
  %v2033 = vld [vmem:[#allocation2 + $0x162] sm:$0xff]
  %v2034 = vld [vmem:[#allocation2 + $0x172] sm:$0xff]
  %v2035 = vld [vmem:[#allocation2 + $0x182] sm:$0xff]
  %v2036 = vld [vmem:[#allocation2 + $0x192] sm:$0xff]
  %v2037 = vld [vmem:[#allocation2 + $0x1a2] sm:$0xff]
  %v2038 = vld [vmem:[#allocation2 + $0x1b2] sm:$0xff]
  %v2039 = vld [vmem:[#allocation2 + $0x1c2] sm:$0xff]
  %v2040 = vld [vmem:[#allocation2 + $0x1d2] sm:$0xff]
  %v2041 = vld [vmem:[#allocation2 + $0x1e2] sm:$0xff]
  %v2042 = vld [vmem:[#allocation2 + $0x1f2] sm:$0xff]
  %v2043 = vld [vmem:[#allocation2 + $0x202] sm:$0xff]
  %v2044 = vld [vmem:[#allocation2 + $0x212] sm:$0xff]
  %v2045 = vld [vmem:[#allocation2 + $0x222] sm:$0xff]
  %v2046 = vld [vmem:[#allocation2 + $0x232] sm:$0xff]
  %v2047 = vld [vmem:[#allocation2 + $0x242] sm:$0xff]
  %v2048 = vld [vmem:[#allocation2 + $0x252] sm:$0xff]
  %v2049 = vld [vmem:[#allocation2 + $0x262] sm:$0xff]
  %v2050 = vld [vmem:[#allocation2 + $0x272] sm:$0xff]
  %2091 = vrot.lane.b32.xlu0 %v2011, 64
  %v2092 = vpop.permute.xlu0 %2091
  %2093 = vrot.lane.b32.xlu0 %v2012, 64
  %v2094 = vpop.permute.xlu0 %2093
  %2095 = vrot.lane.b32.xlu0 %v2013, 64
  %v2096 = vpop.permute.xlu0 %2095
  %2097 = vrot.lane.b32.xlu0 %v2014, 64
  %v2098 = vpop.permute.xlu0 %2097
  %2099 = vrot.lane.b32.xlu0 %v2015, 64
  %v2100 = vpop.permute.xlu0 %2099
  %2101 = vrot.lane.b32.xlu0 %v2016, 64
  %v2102 = vpop.permute.xlu0 %2101
  %2103 = vrot.lane.b32.xlu0 %v2017, 64
  %v2104 = vpop.permute.xlu0 %2103
  %2105 = vrot.lane.b32.xlu0 %v2018, 64
  %v2106 = vpop.permute.xlu0 %2105
  %2107 = vrot.lane.b32.xlu0 %v2019, 64
  %v2108 = vpop.permute.xlu0 %2107
  %2109 = vrot.lane.b32.xlu0 %v2020, 64
  %v2110 = vpop.permute.xlu0 %2109
  %2111 = vrot.lane.b32.xlu0 %v2021, 64
  %v2112 = vpop.permute.xlu0 %2111
  %2113 = vrot.lane.b32.xlu0 %v2022, 64
  %v2114 = vpop.permute.xlu0 %2113
  %2115 = vrot.lane.b32.xlu0 %v2023, 64
  %v2116 = vpop.permute.xlu0 %2115
  %2117 = vrot.lane.b32.xlu0 %v2024, 64
  %v2118 = vpop.permute.xlu0 %2117
  %2119 = vrot.lane.b32.xlu0 %v2025, 64
  %v2120 = vpop.permute.xlu0 %2119
  %2121 = vrot.lane.b32.xlu0 %v2026, 64
  %v2122 = vpop.permute.xlu0 %2121
  %2123 = vrot.lane.b32.xlu0 %v2027, 64
  %v2124 = vpop.permute.xlu0 %2123
  %2125 = vrot.lane.b32.xlu0 %v2028, 64
  %v2126 = vpop.permute.xlu0 %2125
  %2127 = vrot.lane.b32.xlu0 %v2029, 64
  %v2128 = vpop.permute.xlu0 %2127
  %2129 = vrot.lane.b32.xlu0 %v2030, 64
  %v2130 = vpop.permute.xlu0 %2129
  %2131 = vrot.lane.b32.xlu0 %v2031, 64
  %v2132 = vpop.permute.xlu0 %2131
  %2133 = vrot.lane.b32.xlu0 %v2032, 64
  %v2134 = vpop.permute.xlu0 %2133
  %2135 = vrot.lane.b32.xlu0 %v2033, 64
  %v2136 = vpop.permute.xlu0 %2135
  %2137 = vrot.lane.b32.xlu0 %v2034, 64
  %v2138 = vpop.permute.xlu0 %2137
  %2139 = vrot.lane.b32.xlu0 %v2035, 64
  %v2140 = vpop.permute.xlu0 %2139
  %2141 = vrot.lane.b32.xlu0 %v2036, 64
  %v2142 = vpop.permute.xlu0 %2141
  %2143 = vrot.lane.b32.xlu0 %v2037, 64
  %v2144 = vpop.permute.xlu0 %2143
  %2145 = vrot.lane.b32.xlu0 %v2038, 64
  %v2146 = vpop.permute.xlu0 %2145
  %2147 = vrot.lane.b32.xlu0 %v2039, 64
  %v2148 = vpop.permute.xlu0 %2147
  %2149 = vrot.lane.b32.xlu0 %v2040, 64
  %v2150 = vpop.permute.xlu0 %2149
  %2151 = vrot.lane.b32.xlu0 %v2041, 64
  %v2152 = vpop.permute.xlu0 %2151
  %2153 = vrot.lane.b32.xlu0 %v2042, 64
  %v2154 = vpop.permute.xlu0 %2153
  %2155 = vrot.lane.b32.xlu0 %v2043, 64
  %v2156 = vpop.permute.xlu0 %2155
  %2157 = vrot.lane.b32.xlu0 %v2044, 64
  %v2158 = vpop.permute.xlu0 %2157
  %2159 = vrot.lane.b32.xlu0 %v2045, 64
  %v2160 = vpop.permute.xlu0 %2159
  %2161 = vrot.lane.b32.xlu0 %v2046, 64
  %v2162 = vpop.permute.xlu0 %2161
  %2163 = vrot.lane.b32.xlu0 %v2047, 64
  %v2164 = vpop.permute.xlu0 %2163
  %2165 = vrot.lane.b32.xlu0 %v2048, 64
  %v2166 = vpop.permute.xlu0 %2165
  %2167 = vrot.lane.b32.xlu0 %v2049, 64
  %v2168 = vpop.permute.xlu0 %2167
  %2169 = vrot.lane.b32.xlu0 %v2050, 64
  %v2170 = vpop.permute.xlu0 %2169
  %2211 = vst.msk [vmem:[#allocation3] sm:$0xff] %vm718, %v2092
  %2212 = vst.msk [vmem:[#allocation3 + $0x8] sm:$0xff] %vm718, %v2094
  %2213 = vst.msk [vmem:[#allocation3 + $0x10] sm:$0xff] %vm718, %v2096
  %2214 = vst.msk [vmem:[#allocation3 + $0x18] sm:$0xff] %vm718, %v2098
  %2215 = vst.msk [vmem:[#allocation3 + $0x20] sm:$0xff] %vm718, %v2100
  %2216 = vst.msk [vmem:[#allocation3 + $0x28] sm:$0xff] %vm718, %v2102
  %2217 = vst.msk [vmem:[#allocation3 + $0x30] sm:$0xff] %vm718, %v2104
  %2218 = vst.msk [vmem:[#allocation3 + $0x38] sm:$0xff] %vm718, %v2106
  %2219 = vst.msk [vmem:[#allocation3 + $0x40] sm:$0xff] %vm718, %v2108
  %2220 = vst.msk [vmem:[#allocation3 + $0x48] sm:$0xff] %vm718, %v2110
  %2221 = vst.msk [vmem:[#allocation3 + $0x50] sm:$0xff] %vm718, %v2112
  %2222 = vst.msk [vmem:[#allocation3 + $0x58] sm:$0xff] %vm718, %v2114
  %2223 = vst.msk [vmem:[#allocation3 + $0x60] sm:$0xff] %vm718, %v2116
  %2224 = vst.msk [vmem:[#allocation3 + $0x68] sm:$0xff] %vm718, %v2118
  %2225 = vst.msk [vmem:[#allocation3 + $0x70] sm:$0xff] %vm718, %v2120
  %2226 = vst.msk [vmem:[#allocation3 + $0x78] sm:$0xff] %vm718, %v2122
  %2227 = vst.msk [vmem:[#allocation3 + $0x80] sm:$0xff] %vm718, %v2124
  %2228 = vst.msk [vmem:[#allocation3 + $0x88] sm:$0xff] %vm718, %v2126
  %2229 = vst.msk [vmem:[#allocation3 + $0x90] sm:$0xff] %vm718, %v2128
  %2230 = vst.msk [vmem:[#allocation3 + $0x98] sm:$0xff] %vm718, %v2130
  %2231 = vst.msk [vmem:[#allocation3 + $0xa0] sm:$0xff] %vm718, %v2132
  %2232 = vst.msk [vmem:[#allocation3 + $0xa8] sm:$0xff] %vm718, %v2134
  %2233 = vst.msk [vmem:[#allocation3 + $0xb0] sm:$0xff] %vm718, %v2136
  %2234 = vst.msk [vmem:[#allocation3 + $0xb8] sm:$0xff] %vm718, %v2138
  %2235 = vst.msk [vmem:[#allocation3 + $0xc0] sm:$0xff] %vm718, %v2140
  %2236 = vst.msk [vmem:[#allocation3 + $0xc8] sm:$0xff] %vm718, %v2142
  %2237 = vst.msk [vmem:[#allocation3 + $0xd0] sm:$0xff] %vm718, %v2144
  %2238 = vst.msk [vmem:[#allocation3 + $0xd8] sm:$0xff] %vm718, %v2146
  %2239 = vst.msk [vmem:[#allocation3 + $0xe0] sm:$0xff] %vm718, %v2148
  %2240 = vst.msk [vmem:[#allocation3 + $0xe8] sm:$0xff] %vm718, %v2150
  %2241 = vst.msk [vmem:[#allocation3 + $0xf0] sm:$0xff] %vm718, %v2152
  %2242 = vst.msk [vmem:[#allocation3 + $0xf8] sm:$0xff] %vm718, %v2154
  %2243 = vst.msk [vmem:[#allocation3 + $0x100] sm:$0xff] %vm718, %v2156
  %2244 = vst.msk [vmem:[#allocation3 + $0x108] sm:$0xff] %vm718, %v2158
  %2245 = vst.msk [vmem:[#allocation3 + $0x110] sm:$0xff] %vm718, %v2160
  %2246 = vst.msk [vmem:[#allocation3 + $0x118] sm:$0xff] %vm718, %v2162
  %2247 = vst.msk [vmem:[#allocation3 + $0x120] sm:$0xff] %vm718, %v2164
  %2248 = vst.msk [vmem:[#allocation3 + $0x128] sm:$0xff] %vm718, %v2166
  %2249 = vst.msk [vmem:[#allocation3 + $0x130] sm:$0xff] %vm718, %v2168
  %2250 = vst.msk [vmem:[#allocation3 + $0x138] sm:$0xff] %vm718, %v2170
  %v2251 = vld [vmem:[#allocation3] sm:$0xff]
  %v2252 = vld [vmem:[#allocation3 + $0x8] sm:$0xff]
  %v2253 = vld [vmem:[#allocation3 + $0x10] sm:$0xff]
  %v2254 = vld [vmem:[#allocation3 + $0x18] sm:$0xff]
  %v2255 = vld [vmem:[#allocation3 + $0x20] sm:$0xff]
  %v2256 = vld [vmem:[#allocation3 + $0x28] sm:$0xff]
  %v2257 = vld [vmem:[#allocation3 + $0x30] sm:$0xff]
  %v2258 = vld [vmem:[#allocation3 + $0x38] sm:$0xff]
  %v2259 = vld [vmem:[#allocation3 + $0x50] sm:$0xff]
  %v2260 = vld [vmem:[#allocation3 + $0x58] sm:$0xff]
  %v2261 = vld [vmem:[#allocation3 + $0x60] sm:$0xff]
  %v2262 = vld [vmem:[#allocation3 + $0x68] sm:$0xff]
  %v2263 = vld [vmem:[#allocation3 + $0x70] sm:$0xff]
  %v2264 = vld [vmem:[#allocation3 + $0x78] sm:$0xff]
  %v2265 = vld [vmem:[#allocation3 + $0x80] sm:$0xff]
  %v2266 = vld [vmem:[#allocation3 + $0x88] sm:$0xff]
  %v2267 = vld [vmem:[#allocation3 + $0xa0] sm:$0xff]
  %v2268 = vld [vmem:[#allocation3 + $0xa8] sm:$0xff]
  %v2269 = vld [vmem:[#allocation3 + $0xb0] sm:$0xff]
  %v2270 = vld [vmem:[#allocation3 + $0xb8] sm:$0xff]
  %v2271 = vld [vmem:[#allocation3 + $0xc0] sm:$0xff]
  %v2272 = vld [vmem:[#allocation3 + $0xc8] sm:$0xff]
  %v2273 = vld [vmem:[#allocation3 + $0xd0] sm:$0xff]
  %v2274 = vld [vmem:[#allocation3 + $0xd8] sm:$0xff]
  %v2275 = vld [vmem:[#allocation3 + $0xf0] sm:$0xff]
  %v2276 = vld [vmem:[#allocation3 + $0xf8] sm:$0xff]
  %v2277 = vld [vmem:[#allocation3 + $0x100] sm:$0xff]
  %v2278 = vld [vmem:[#allocation3 + $0x108] sm:$0xff]
  %v2279 = vld [vmem:[#allocation3 + $0x110] sm:$0xff]
  %v2280 = vld [vmem:[#allocation3 + $0x118] sm:$0xff]
  %v2281 = vld [vmem:[#allocation3 + $0x120] sm:$0xff]
  %v2282 = vld [vmem:[#allocation3 + $0x128] sm:$0xff]
  %v2283 = vld [vmem:[%s4] sm:$0xff]
  %v2284 = vld [vmem:[%s4 + $0x8] sm:$0xff]
  %v2285 = vld [vmem:[%s4 + $0x10] sm:$0xff]
  %v2286 = vld [vmem:[%s4 + $0x18] sm:$0xff]
  %v2287 = vld [vmem:[%s4 + $0x20] sm:$0xff]
  %v2288 = vld [vmem:[%s4 + $0x28] sm:$0xff]
  %v2289 = vld [vmem:[%s4 + $0x30] sm:$0xff]
  %v2290 = vld [vmem:[%s4 + $0x38] sm:$0xff]
  %v2291 = vld [vmem:[%s4 + $0x40] sm:$0xff]
  %v2292 = vld [vmem:[%s4 + $0x48] sm:$0xff]
  %v2293 = vld [vmem:[%s4 + $0x50] sm:$0xff]
  %v2294 = vld [vmem:[%s4 + $0x58] sm:$0xff]
  %v2295 = vld [vmem:[%s803] sm:$0xff]
  %v2296 = vld [vmem:[%s803 + $0x8] sm:$0xff]
  %v2297 = vld [vmem:[%s803 + $0x10] sm:$0xff]
  %v2298 = vld [vmem:[%s803 + $0x18] sm:$0xff]
  %v2299 = vld [vmem:[%s803 + $0x20] sm:$0xff]
  %v2300 = vld [vmem:[%s803 + $0x28] sm:$0xff]
  %v2301 = vld [vmem:[%s803 + $0x30] sm:$0xff]
  %v2302 = vld [vmem:[%s803 + $0x38] sm:$0xff]
  %v2303 = vld [vmem:[%s803 + $0x50] sm:$0xff]
  %v2304 = vld [vmem:[%s803 + $0x58] sm:$0xff]
  %v2305 = vld [vmem:[%s803 + $0x60] sm:$0xff]
  %v2306 = vld [vmem:[%s803 + $0x68] sm:$0xff]
  %v2307 = vld [vmem:[%s803 + $0x70] sm:$0xff]
  %v2308 = vld [vmem:[%s803 + $0x78] sm:$0xff]
  %v2309 = vld [vmem:[%s803 + $0x80] sm:$0xff]
  %v2310 = vld [vmem:[%s803 + $0x88] sm:$0xff]
  %v2311 = vld [vmem:[%s803 + $0xa0] sm:$0xff]
  %v2312 = vld [vmem:[%s803 + $0xa8] sm:$0xff]
  %v2313 = vld [vmem:[%s803 + $0xb0] sm:$0xff]
  %v2314 = vld [vmem:[%s803 + $0xb8] sm:$0xff]
  %v2315 = vld [vmem:[%s803 + $0xc0] sm:$0xff]
  %v2316 = vld [vmem:[%s803 + $0xc8] sm:$0xff]
  %v2317 = vld [vmem:[%s803 + $0xd0] sm:$0xff]
  %v2318 = vld [vmem:[%s803 + $0xd8] sm:$0xff]
  %v2319 = vld [vmem:[%s803 + $0xf0] sm:$0xff]
  %v2320 = vld [vmem:[%s803 + $0xf8] sm:$0xff]
  %v2321 = vld [vmem:[%s803 + $0x100] sm:$0xff]
  %v2322 = vld [vmem:[%s803 + $0x108] sm:$0xff]
  %v2323 = vld [vmem:[%s803 + $0x110] sm:$0xff]
  %v2324 = vld [vmem:[%s803 + $0x118] sm:$0xff]
  %v2325 = vld [vmem:[%s803 + $0x120] sm:$0xff]
  %v2326 = vld [vmem:[%s803 + $0x128] sm:$0xff]
  %s2327 = scalar_lea.vmem %s4, 96
  %v2328 = vld [vmem:[%s2327] sm:$0xff]
  %v2329 = vld [vmem:[%s2327 + $0x8] sm:$0xff]
  %v2330 = vld [vmem:[%s2327 + $0x10] sm:$0xff]
  %v2331 = vld [vmem:[%s2327 + $0x18] sm:$0xff]
  %v2332 = vld [vmem:[%s2327 + $0x20] sm:$0xff]
  %v2333 = vld [vmem:[%s2327 + $0x28] sm:$0xff]
  %v2334 = vld [vmem:[%s2327 + $0x30] sm:$0xff]
  %v2335 = vld [vmem:[%s2327 + $0x38] sm:$0xff]
  %v2336 = vld [vmem:[%s2327 + $0x40] sm:$0xff]
  %v2337 = vld [vmem:[%s2327 + $0x48] sm:$0xff]
  %v2338 = vld [vmem:[%s2327 + $0x50] sm:$0xff]
  %v2339 = vld [vmem:[%s2327 + $0x58] sm:$0xff]
  %v2341 = vsel %vm849, %v2295, 0
  %v2344 = vsel %vm849, %v2296, 0
  %v2347 = vsel %vm849, %v2297, 0
  %v2350 = vsel %vm849, %v2298, 0
  %v2353 = vsel %vm849, %v2299, 0
  %v2356 = vsel %vm849, %v2300, 0
  %v2359 = vsel %vm849, %v2301, 0
  %v2362 = vsel %vm849, %v2302, 0
  %v2365 = vsel %vm849, %v2303, 0
  %v2368 = vsel %vm849, %v2304, 0
  %v2371 = vsel %vm849, %v2305, 0
  %v2374 = vsel %vm849, %v2306, 0
  %v2377 = vsel %vm849, %v2307, 0
  %v2380 = vsel %vm849, %v2308, 0
  %v2383 = vsel %vm849, %v2309, 0
  %v2386 = vsel %vm849, %v2310, 0
  %v2389 = vsel %vm849, %v2311, 0
  %v2392 = vsel %vm849, %v2312, 0
  %v2395 = vsel %vm849, %v2313, 0
  %v2398 = vsel %vm849, %v2314, 0
  %v2401 = vsel %vm849, %v2315, 0
  %v2404 = vsel %vm849, %v2316, 0
  %v2407 = vsel %vm849, %v2317, 0
  %v2410 = vsel %vm849, %v2318, 0
  %v2413 = vsel %vm849, %v2319, 0
  %v2416 = vsel %vm849, %v2320, 0
  %v2419 = vsel %vm849, %v2321, 0
  %v2422 = vsel %vm849, %v2322, 0
  %v2425 = vsel %vm849, %v2323, 0
  %v2428 = vsel %vm849, %v2324, 0
  %v2431 = vsel %vm849, %v2325, 0
  %v2434 = vsel %vm849, %v2326, 0
  %2436 = vmatpush.msra.mxu0 0.0
  %2437 = vmatpush.msra.mxu0 0.0
  %2438 = vmatpush.msra.mxu0 0.0
  %2439 = vmatpush.msra.mxu0 0.0
  %2440 = vmatpush.msra.mxu0 %v2339
  %2441 = vmatpush.msra.mxu0 %v2338
  %2442 = vmatpush.msra.mxu0 %v2337
  %2443 = vmatpush.msra.mxu0 %v2336
  %2444 = vmatpush.msra.mxu0 %v2335
  %2445 = vmatpush.msra.mxu0 %v2334
  %2446 = vmatpush.msra.mxu0 %v2333
  %2447 = vmatpush.msra.mxu0 %v2332
  %2448 = vmatpush.msra.mxu0 %v2331
  %2449 = vmatpush.msra.mxu0 %v2330
  %2450 = vmatpush.msra.mxu0 %v2329
  %2451 = vmatpush.msra.mxu0 %v2328
  %2452 = vmatmul.f32.gmra.mxu0 %v2341
  %v2453 = vpop.f32.mrf.mxu0
  %v2454 = vadd.f32 0.0, %v2453
  %2455 = vmatmul.f32.gmra.mxu0 %v2344
  %v2456 = vpop.f32.mrf.mxu0
  %v2457 = vadd.f32 0.0, %v2456
  %2458 = vmatmul.f32.gmra.mxu0 %v2347
  %v2459 = vpop.f32.mrf.mxu0
  %v2460 = vadd.f32 0.0, %v2459
  %2461 = vmatmul.f32.gmra.mxu0 %v2350
  %v2462 = vpop.f32.mrf.mxu0
  %v2463 = vadd.f32 0.0, %v2462
  %2464 = vmatmul.f32.gmra.mxu0 %v2353
  %v2465 = vpop.f32.mrf.mxu0
  %v2466 = vadd.f32 0.0, %v2465
  %2467 = vmatmul.f32.gmra.mxu0 %v2356
  %v2468 = vpop.f32.mrf.mxu0
  %v2469 = vadd.f32 0.0, %v2468
  %2470 = vmatmul.f32.gmra.mxu0 %v2359
  %v2471 = vpop.f32.mrf.mxu0
  %v2472 = vadd.f32 0.0, %v2471
  %2473 = vmatmul.f32.gmra.mxu0 %v2362
  %v2474 = vpop.f32.mrf.mxu0
  %v2475 = vadd.f32 0.0, %v2474
  %2476 = vmatmul.f32.gmra.mxu0 %v2365
  %v2477 = vpop.f32.mrf.mxu0
  %v2478 = vadd.f32 0.0, %v2477
  %2479 = vmatmul.f32.gmra.mxu0 %v2368
  %v2480 = vpop.f32.mrf.mxu0
  %v2481 = vadd.f32 0.0, %v2480
  %2482 = vmatmul.f32.gmra.mxu0 %v2371
  %v2483 = vpop.f32.mrf.mxu0
  %v2484 = vadd.f32 0.0, %v2483
  %2485 = vmatmul.f32.gmra.mxu0 %v2374
  %v2486 = vpop.f32.mrf.mxu0
  %v2487 = vadd.f32 0.0, %v2486
  %2488 = vmatmul.f32.gmra.mxu0 %v2377
  %v2489 = vpop.f32.mrf.mxu0
  %v2490 = vadd.f32 0.0, %v2489
  %2491 = vmatmul.f32.gmra.mxu0 %v2380
  %v2492 = vpop.f32.mrf.mxu0
  %v2493 = vadd.f32 0.0, %v2492
  %2494 = vmatmul.f32.gmra.mxu0 %v2383
  %v2495 = vpop.f32.mrf.mxu0
  %v2496 = vadd.f32 0.0, %v2495
  %2497 = vmatmul.f32.gmra.mxu0 %v2386
  %v2498 = vpop.f32.mrf.mxu0
  %v2499 = vadd.f32 0.0, %v2498
  %2500 = vmatmul.f32.gmra.mxu0 %v2389
  %v2501 = vpop.f32.mrf.mxu0
  %v2502 = vadd.f32 0.0, %v2501
  %2503 = vmatmul.f32.gmra.mxu0 %v2392
  %v2504 = vpop.f32.mrf.mxu0
  %v2505 = vadd.f32 0.0, %v2504
  %2506 = vmatmul.f32.gmra.mxu0 %v2395
  %v2507 = vpop.f32.mrf.mxu0
  %v2508 = vadd.f32 0.0, %v2507
  %2509 = vmatmul.f32.gmra.mxu0 %v2398
  %v2510 = vpop.f32.mrf.mxu0
  %v2511 = vadd.f32 0.0, %v2510
  %2512 = vmatmul.f32.gmra.mxu0 %v2401
  %v2513 = vpop.f32.mrf.mxu0
  %v2514 = vadd.f32 0.0, %v2513
  %2515 = vmatmul.f32.gmra.mxu0 %v2404
  %v2516 = vpop.f32.mrf.mxu0
  %v2517 = vadd.f32 0.0, %v2516
  %2518 = vmatmul.f32.gmra.mxu0 %v2407
  %v2519 = vpop.f32.mrf.mxu0
  %v2520 = vadd.f32 0.0, %v2519
  %2521 = vmatmul.f32.gmra.mxu0 %v2410
  %v2522 = vpop.f32.mrf.mxu0
  %v2523 = vadd.f32 0.0, %v2522
  %2524 = vmatmul.f32.gmra.mxu0 %v2413
  %v2525 = vpop.f32.mrf.mxu0
  %v2526 = vadd.f32 0.0, %v2525
  %2527 = vmatmul.f32.gmra.mxu0 %v2416
  %v2528 = vpop.f32.mrf.mxu0
  %v2529 = vadd.f32 0.0, %v2528
  %2530 = vmatmul.f32.gmra.mxu0 %v2419
  %v2531 = vpop.f32.mrf.mxu0
  %v2532 = vadd.f32 0.0, %v2531
  %2533 = vmatmul.f32.gmra.mxu0 %v2422
  %v2534 = vpop.f32.mrf.mxu0
  %v2535 = vadd.f32 0.0, %v2534
  %2536 = vmatmul.f32.gmra.mxu0 %v2425
  %v2537 = vpop.f32.mrf.mxu0
  %v2538 = vadd.f32 0.0, %v2537
  %2539 = vmatmul.f32.gmra.mxu0 %v2428
  %v2540 = vpop.f32.mrf.mxu0
  %v2541 = vadd.f32 0.0, %v2540
  %2542 = vmatmul.f32.gmra.mxu0 %v2431
  %v2543 = vpop.f32.mrf.mxu0
  %v2544 = vadd.f32 0.0, %v2543
  %2545 = vmatmul.f32.gmra.mxu0 %v2434
  %v2546 = vpop.f32.mrf.mxu0
  %v2547 = vadd.f32 0.0, %v2546
  %2548 = vdwg.mxu0
  %v2550 = vsel %vm849, %v2251, 0
  %v2553 = vsel %vm849, %v2252, 0
  %v2556 = vsel %vm849, %v2253, 0
  %v2559 = vsel %vm849, %v2254, 0
  %v2562 = vsel %vm849, %v2255, 0
  %v2565 = vsel %vm849, %v2256, 0
  %v2568 = vsel %vm849, %v2257, 0
  %v2571 = vsel %vm849, %v2258, 0
  %v2574 = vsel %vm849, %v2259, 0
  %v2577 = vsel %vm849, %v2260, 0
  %v2580 = vsel %vm849, %v2261, 0
  %v2583 = vsel %vm849, %v2262, 0
  %v2586 = vsel %vm849, %v2263, 0
  %v2589 = vsel %vm849, %v2264, 0
  %v2592 = vsel %vm849, %v2265, 0
  %v2595 = vsel %vm849, %v2266, 0
  %v2598 = vsel %vm849, %v2267, 0
  %v2601 = vsel %vm849, %v2268, 0
  %v2604 = vsel %vm849, %v2269, 0
  %v2607 = vsel %vm849, %v2270, 0
  %v2610 = vsel %vm849, %v2271, 0
  %v2613 = vsel %vm849, %v2272, 0
  %v2616 = vsel %vm849, %v2273, 0
  %v2619 = vsel %vm849, %v2274, 0
  %v2622 = vsel %vm849, %v2275, 0
  %v2625 = vsel %vm849, %v2276, 0
  %v2628 = vsel %vm849, %v2277, 0
  %v2631 = vsel %vm849, %v2278, 0
  %v2634 = vsel %vm849, %v2279, 0
  %v2637 = vsel %vm849, %v2280, 0
  %v2640 = vsel %vm849, %v2281, 0
  %v2643 = vsel %vm849, %v2282, 0
  %2645 = vmatpush.msra.mxu0 0.0
  %2646 = vmatpush.msra.mxu0 0.0
  %2647 = vmatpush.msra.mxu0 0.0
  %2648 = vmatpush.msra.mxu0 0.0
  %2649 = vmatpush.msra.mxu0 %v2294
  %2650 = vmatpush.msra.mxu0 %v2293
  %2651 = vmatpush.msra.mxu0 %v2292
  %2652 = vmatpush.msra.mxu0 %v2291
  %2653 = vmatpush.msra.mxu0 %v2290
  %2654 = vmatpush.msra.mxu0 %v2289
  %2655 = vmatpush.msra.mxu0 %v2288
  %2656 = vmatpush.msra.mxu0 %v2287
  %2657 = vmatpush.msra.mxu0 %v2286
  %2658 = vmatpush.msra.mxu0 %v2285
  %2659 = vmatpush.msra.mxu0 %v2284
  %2660 = vmatpush.msra.mxu0 %v2283
  %2661 = vmatmul.f32.gmra.mxu0 %v2550
  %v2662 = vpop.f32.mrf.mxu0
  %v2663 = vadd.f32 %v2454, %v2662
  %2664 = vmatmul.f32.gmra.mxu0 %v2553
  %v2665 = vpop.f32.mrf.mxu0
  %v2666 = vadd.f32 %v2457, %v2665
  %2667 = vmatmul.f32.gmra.mxu0 %v2556
  %v2668 = vpop.f32.mrf.mxu0
  %v2669 = vadd.f32 %v2460, %v2668
  %2670 = vmatmul.f32.gmra.mxu0 %v2559
  %v2671 = vpop.f32.mrf.mxu0
  %v2672 = vadd.f32 %v2463, %v2671
  %2673 = vmatmul.f32.gmra.mxu0 %v2562
  %v2674 = vpop.f32.mrf.mxu0
  %v2675 = vadd.f32 %v2466, %v2674
  %2676 = vmatmul.f32.gmra.mxu0 %v2565
  %v2677 = vpop.f32.mrf.mxu0
  %v2678 = vadd.f32 %v2469, %v2677
  %2679 = vmatmul.f32.gmra.mxu0 %v2568
  %v2680 = vpop.f32.mrf.mxu0
  %v2681 = vadd.f32 %v2472, %v2680
  %2682 = vmatmul.f32.gmra.mxu0 %v2571
  %v2683 = vpop.f32.mrf.mxu0
  %v2684 = vadd.f32 %v2475, %v2683
  %2685 = vmatmul.f32.gmra.mxu0 %v2574
  %v2686 = vpop.f32.mrf.mxu0
  %v2687 = vadd.f32 %v2478, %v2686
  %2688 = vmatmul.f32.gmra.mxu0 %v2577
  %v2689 = vpop.f32.mrf.mxu0
  %v2690 = vadd.f32 %v2481, %v2689
  %2691 = vmatmul.f32.gmra.mxu0 %v2580
  %v2692 = vpop.f32.mrf.mxu0
  %v2693 = vadd.f32 %v2484, %v2692
  %2694 = vmatmul.f32.gmra.mxu0 %v2583
  %v2695 = vpop.f32.mrf.mxu0
  %v2696 = vadd.f32 %v2487, %v2695
  %2697 = vmatmul.f32.gmra.mxu0 %v2586
  %v2698 = vpop.f32.mrf.mxu0
  %v2699 = vadd.f32 %v2490, %v2698
  %2700 = vmatmul.f32.gmra.mxu0 %v2589
  %v2701 = vpop.f32.mrf.mxu0
  %v2702 = vadd.f32 %v2493, %v2701
  %2703 = vmatmul.f32.gmra.mxu0 %v2592
  %v2704 = vpop.f32.mrf.mxu0
  %v2705 = vadd.f32 %v2496, %v2704
  %2706 = vmatmul.f32.gmra.mxu0 %v2595
  %v2707 = vpop.f32.mrf.mxu0
  %v2708 = vadd.f32 %v2499, %v2707
  %2709 = vmatmul.f32.gmra.mxu0 %v2598
  %v2710 = vpop.f32.mrf.mxu0
  %v2711 = vadd.f32 %v2502, %v2710
  %2712 = vmatmul.f32.gmra.mxu0 %v2601
  %v2713 = vpop.f32.mrf.mxu0
  %v2714 = vadd.f32 %v2505, %v2713
  %2715 = vmatmul.f32.gmra.mxu0 %v2604
  %v2716 = vpop.f32.mrf.mxu0
  %v2717 = vadd.f32 %v2508, %v2716
  %2718 = vmatmul.f32.gmra.mxu0 %v2607
  %v2719 = vpop.f32.mrf.mxu0
  %v2720 = vadd.f32 %v2511, %v2719
  %2721 = vmatmul.f32.gmra.mxu0 %v2610
  %v2722 = vpop.f32.mrf.mxu0
  %v2723 = vadd.f32 %v2514, %v2722
  %2724 = vmatmul.f32.gmra.mxu0 %v2613
  %v2725 = vpop.f32.mrf.mxu0
  %v2726 = vadd.f32 %v2517, %v2725
  %2727 = vmatmul.f32.gmra.mxu0 %v2616
  %v2728 = vpop.f32.mrf.mxu0
  %v2729 = vadd.f32 %v2520, %v2728
  %2730 = vmatmul.f32.gmra.mxu0 %v2619
  %v2731 = vpop.f32.mrf.mxu0
  %v2732 = vadd.f32 %v2523, %v2731
  %2733 = vmatmul.f32.gmra.mxu0 %v2622
  %v2734 = vpop.f32.mrf.mxu0
  %v2735 = vadd.f32 %v2526, %v2734
  %2736 = vmatmul.f32.gmra.mxu0 %v2625
  %v2737 = vpop.f32.mrf.mxu0
  %v2738 = vadd.f32 %v2529, %v2737
  %2739 = vmatmul.f32.gmra.mxu0 %v2628
  %v2740 = vpop.f32.mrf.mxu0
  %v2741 = vadd.f32 %v2532, %v2740
  %2742 = vmatmul.f32.gmra.mxu0 %v2631
  %v2743 = vpop.f32.mrf.mxu0
  %v2744 = vadd.f32 %v2535, %v2743
  %2745 = vmatmul.f32.gmra.mxu0 %v2634
  %v2746 = vpop.f32.mrf.mxu0
  %v2747 = vadd.f32 %v2538, %v2746
  %2748 = vmatmul.f32.gmra.mxu0 %v2637
  %v2749 = vpop.f32.mrf.mxu0
  %v2750 = vadd.f32 %v2541, %v2749
  %2751 = vmatmul.f32.gmra.mxu0 %v2640
  %v2752 = vpop.f32.mrf.mxu0
  %v2753 = vadd.f32 %v2544, %v2752
  %2754 = vmatmul.f32.gmra.mxu0 %v2643
  %v2755 = vpop.f32.mrf.mxu0
  %v2756 = vadd.f32 %v2547, %v2755
  %2757 = vdwg.mxu0
  %v2758 = vld [vmem:[%s1268] sm:$0xff]
  %v2759 = vld [vmem:[%s1268 + $0x8] sm:$0xff]
  %v2760 = vld [vmem:[%s1268 + $0x10] sm:$0xff]
  %v2761 = vld [vmem:[%s1268 + $0x18] sm:$0xff]
  %v2762 = vld [vmem:[%s1268 + $0x20] sm:$0xff]
  %v2763 = vld [vmem:[%s1268 + $0x28] sm:$0xff]
  %v2764 = vld [vmem:[%s1268 + $0x30] sm:$0xff]
  %v2765 = vld [vmem:[%s1268 + $0x38] sm:$0xff]
  %v2766 = vld [vmem:[%s1268 + $0x50] sm:$0xff]
  %v2767 = vld [vmem:[%s1268 + $0x58] sm:$0xff]
  %v2768 = vld [vmem:[%s1268 + $0x60] sm:$0xff]
  %v2769 = vld [vmem:[%s1268 + $0x68] sm:$0xff]
  %v2770 = vld [vmem:[%s1268 + $0x70] sm:$0xff]
  %v2771 = vld [vmem:[%s1268 + $0x78] sm:$0xff]
  %v2772 = vld [vmem:[%s1268 + $0x80] sm:$0xff]
  %v2773 = vld [vmem:[%s1268 + $0x88] sm:$0xff]
  %v2774 = vld [vmem:[%s1268 + $0xa0] sm:$0xff]
  %v2775 = vld [vmem:[%s1268 + $0xa8] sm:$0xff]
  %v2776 = vld [vmem:[%s1268 + $0xb0] sm:$0xff]
  %v2777 = vld [vmem:[%s1268 + $0xb8] sm:$0xff]
  %v2778 = vld [vmem:[%s1268 + $0xc0] sm:$0xff]
  %v2779 = vld [vmem:[%s1268 + $0xc8] sm:$0xff]
  %v2780 = vld [vmem:[%s1268 + $0xd0] sm:$0xff]
  %v2781 = vld [vmem:[%s1268 + $0xd8] sm:$0xff]
  %v2782 = vld [vmem:[%s1268 + $0xf0] sm:$0xff]
  %v2783 = vld [vmem:[%s1268 + $0xf8] sm:$0xff]
  %v2784 = vld [vmem:[%s1268 + $0x100] sm:$0xff]
  %v2785 = vld [vmem:[%s1268 + $0x108] sm:$0xff]
  %v2786 = vld [vmem:[%s1268 + $0x110] sm:$0xff]
  %v2787 = vld [vmem:[%s1268 + $0x118] sm:$0xff]
  %v2788 = vld [vmem:[%s1268 + $0x120] sm:$0xff]
  %v2789 = vld [vmem:[%s1268 + $0x128] sm:$0xff]
  %s2790 = scalar_lea.vmem %s4, 192
  %v2791 = vld [vmem:[%s2790] sm:$0xff]
  %v2792 = vld [vmem:[%s2790 + $0x8] sm:$0xff]
  %v2793 = vld [vmem:[%s2790 + $0x10] sm:$0xff]
  %v2794 = vld [vmem:[%s2790 + $0x18] sm:$0xff]
  %v2795 = vld [vmem:[%s2790 + $0x20] sm:$0xff]
  %v2796 = vld [vmem:[%s2790 + $0x28] sm:$0xff]
  %v2797 = vld [vmem:[%s2790 + $0x30] sm:$0xff]
  %v2798 = vld [vmem:[%s2790 + $0x38] sm:$0xff]
  %v2799 = vld [vmem:[%s2790 + $0x40] sm:$0xff]
  %v2800 = vld [vmem:[%s2790 + $0x48] sm:$0xff]
  %v2801 = vld [vmem:[%s2790 + $0x50] sm:$0xff]
  %v2802 = vld [vmem:[%s2790 + $0x58] sm:$0xff]
  %v2804 = vsel %vm849, %v2758, 0
  %v2807 = vsel %vm849, %v2759, 0
  %v2810 = vsel %vm849, %v2760, 0
  %v2813 = vsel %vm849, %v2761, 0
  %v2816 = vsel %vm849, %v2762, 0
  %v2819 = vsel %vm849, %v2763, 0
  %v2822 = vsel %vm849, %v2764, 0
  %v2825 = vsel %vm849, %v2765, 0
  %v2828 = vsel %vm849, %v2766, 0
  %v2831 = vsel %vm849, %v2767, 0
  %v2834 = vsel %vm849, %v2768, 0
  %v2837 = vsel %vm849, %v2769, 0
  %v2840 = vsel %vm849, %v2770, 0
  %v2843 = vsel %vm849, %v2771, 0
  %v2846 = vsel %vm849, %v2772, 0
  %v2849 = vsel %vm849, %v2773, 0
  %v2852 = vsel %vm849, %v2774, 0
  %v2855 = vsel %vm849, %v2775, 0
  %v2858 = vsel %vm849, %v2776, 0
  %v2861 = vsel %vm849, %v2777, 0
  %v2864 = vsel %vm849, %v2778, 0
  %v2867 = vsel %vm849, %v2779, 0
  %v2870 = vsel %vm849, %v2780, 0
  %v2873 = vsel %vm849, %v2781, 0
  %v2876 = vsel %vm849, %v2782, 0
  %v2879 = vsel %vm849, %v2783, 0
  %v2882 = vsel %vm849, %v2784, 0
  %v2885 = vsel %vm849, %v2785, 0
  %v2888 = vsel %vm849, %v2786, 0
  %v2891 = vsel %vm849, %v2787, 0
  %v2894 = vsel %vm849, %v2788, 0
  %v2897 = vsel %vm849, %v2789, 0
  %2899 = vmatpush.msra.mxu0 0.0
  %2900 = vmatpush.msra.mxu0 0.0
  %2901 = vmatpush.msra.mxu0 0.0
  %2902 = vmatpush.msra.mxu0 0.0
  %2903 = vmatpush.msra.mxu0 %v2802
  %2904 = vmatpush.msra.mxu0 %v2801
  %2905 = vmatpush.msra.mxu0 %v2800
  %2906 = vmatpush.msra.mxu0 %v2799
  %2907 = vmatpush.msra.mxu0 %v2798
  %2908 = vmatpush.msra.mxu0 %v2797
  %2909 = vmatpush.msra.mxu0 %v2796
  %2910 = vmatpush.msra.mxu0 %v2795
  %2911 = vmatpush.msra.mxu0 %v2794
  %2912 = vmatpush.msra.mxu0 %v2793
  %2913 = vmatpush.msra.mxu0 %v2792
  %2914 = vmatpush.msra.mxu0 %v2791
  %2915 = vmatmul.f32.gmra.mxu0 %v2804
  %v2916 = vpop.f32.mrf.mxu0
  %v2917 = vadd.f32 0.0, %v2916
  %2918 = vmatmul.f32.gmra.mxu0 %v2807
  %v2919 = vpop.f32.mrf.mxu0
  %v2920 = vadd.f32 0.0, %v2919
  %2921 = vmatmul.f32.gmra.mxu0 %v2810
  %v2922 = vpop.f32.mrf.mxu0
  %v2923 = vadd.f32 0.0, %v2922
  %2924 = vmatmul.f32.gmra.mxu0 %v2813
  %v2925 = vpop.f32.mrf.mxu0
  %v2926 = vadd.f32 0.0, %v2925
  %2927 = vmatmul.f32.gmra.mxu0 %v2816
  %v2928 = vpop.f32.mrf.mxu0
  %v2929 = vadd.f32 0.0, %v2928
  %2930 = vmatmul.f32.gmra.mxu0 %v2819
  %v2931 = vpop.f32.mrf.mxu0
  %v2932 = vadd.f32 0.0, %v2931
  %2933 = vmatmul.f32.gmra.mxu0 %v2822
  %v2934 = vpop.f32.mrf.mxu0
  %v2935 = vadd.f32 0.0, %v2934
  %2936 = vmatmul.f32.gmra.mxu0 %v2825
  %v2937 = vpop.f32.mrf.mxu0
  %v2938 = vadd.f32 0.0, %v2937
  %2939 = vmatmul.f32.gmra.mxu0 %v2828
  %v2940 = vpop.f32.mrf.mxu0
  %v2941 = vadd.f32 0.0, %v2940
  %2942 = vmatmul.f32.gmra.mxu0 %v2831
  %v2943 = vpop.f32.mrf.mxu0
  %v2944 = vadd.f32 0.0, %v2943
  %2945 = vmatmul.f32.gmra.mxu0 %v2834
  %v2946 = vpop.f32.mrf.mxu0
  %v2947 = vadd.f32 0.0, %v2946
  %2948 = vmatmul.f32.gmra.mxu0 %v2837
  %v2949 = vpop.f32.mrf.mxu0
  %v2950 = vadd.f32 0.0, %v2949
  %2951 = vmatmul.f32.gmra.mxu0 %v2840
  %v2952 = vpop.f32.mrf.mxu0
  %v2953 = vadd.f32 0.0, %v2952
  %2954 = vmatmul.f32.gmra.mxu0 %v2843
  %v2955 = vpop.f32.mrf.mxu0
  %v2956 = vadd.f32 0.0, %v2955
  %2957 = vmatmul.f32.gmra.mxu0 %v2846
  %v2958 = vpop.f32.mrf.mxu0
  %v2959 = vadd.f32 0.0, %v2958
  %2960 = vmatmul.f32.gmra.mxu0 %v2849
  %v2961 = vpop.f32.mrf.mxu0
  %v2962 = vadd.f32 0.0, %v2961
  %2963 = vmatmul.f32.gmra.mxu0 %v2852
  %v2964 = vpop.f32.mrf.mxu0
  %v2965 = vadd.f32 0.0, %v2964
  %2966 = vmatmul.f32.gmra.mxu0 %v2855
  %v2967 = vpop.f32.mrf.mxu0
  %v2968 = vadd.f32 0.0, %v2967
  %2969 = vmatmul.f32.gmra.mxu0 %v2858
  %v2970 = vpop.f32.mrf.mxu0
  %v2971 = vadd.f32 0.0, %v2970
  %2972 = vmatmul.f32.gmra.mxu0 %v2861
  %v2973 = vpop.f32.mrf.mxu0
  %v2974 = vadd.f32 0.0, %v2973
  %2975 = vmatmul.f32.gmra.mxu0 %v2864
  %v2976 = vpop.f32.mrf.mxu0
  %v2977 = vadd.f32 0.0, %v2976
  %2978 = vmatmul.f32.gmra.mxu0 %v2867
  %v2979 = vpop.f32.mrf.mxu0
  %v2980 = vadd.f32 0.0, %v2979
  %2981 = vmatmul.f32.gmra.mxu0 %v2870
  %v2982 = vpop.f32.mrf.mxu0
  %v2983 = vadd.f32 0.0, %v2982
  %2984 = vmatmul.f32.gmra.mxu0 %v2873
  %v2985 = vpop.f32.mrf.mxu0
  %v2986 = vadd.f32 0.0, %v2985
  %2987 = vmatmul.f32.gmra.mxu0 %v2876
  %v2988 = vpop.f32.mrf.mxu0
  %v2989 = vadd.f32 0.0, %v2988
  %2990 = vmatmul.f32.gmra.mxu0 %v2879
  %v2991 = vpop.f32.mrf.mxu0
  %v2992 = vadd.f32 0.0, %v2991
  %2993 = vmatmul.f32.gmra.mxu0 %v2882
  %v2994 = vpop.f32.mrf.mxu0
  %v2995 = vadd.f32 0.0, %v2994
  %2996 = vmatmul.f32.gmra.mxu0 %v2885
  %v2997 = vpop.f32.mrf.mxu0
  %v2998 = vadd.f32 0.0, %v2997
  %2999 = vmatmul.f32.gmra.mxu0 %v2888
  %v3000 = vpop.f32.mrf.mxu0
  %v3001 = vadd.f32 0.0, %v3000
  %3002 = vmatmul.f32.gmra.mxu0 %v2891
  %v3003 = vpop.f32.mrf.mxu0
  %v3004 = vadd.f32 0.0, %v3003
  %3005 = vmatmul.f32.gmra.mxu0 %v2894
  %v3006 = vpop.f32.mrf.mxu0
  %v3007 = vadd.f32 0.0, %v3006
  %3008 = vmatmul.f32.gmra.mxu0 %v2897
  %v3009 = vpop.f32.mrf.mxu0
  %v3010 = vadd.f32 0.0, %v3009
  %3011 = vdwg.mxu0
  %v3012 = vadd.f32 %v2663, %v2917
  %v3013 = vadd.f32 %v2666, %v2920
  %v3014 = vadd.f32 %v2669, %v2923
  %v3015 = vadd.f32 %v2672, %v2926
  %v3016 = vadd.f32 %v2675, %v2929
  %v3017 = vadd.f32 %v2678, %v2932
  %v3018 = vadd.f32 %v2681, %v2935
  %v3019 = vadd.f32 %v2684, %v2938
  %v3020 = vadd.f32 %v2687, %v2941
  %v3021 = vadd.f32 %v2690, %v2944
  %v3022 = vadd.f32 %v2693, %v2947
  %v3023 = vadd.f32 %v2696, %v2950
  %v3024 = vadd.f32 %v2699, %v2953
  %v3025 = vadd.f32 %v2702, %v2956
  %v3026 = vadd.f32 %v2705, %v2959
  %v3027 = vadd.f32 %v2708, %v2962
  %v3028 = vadd.f32 %v2711, %v2965
  %v3029 = vadd.f32 %v2714, %v2968
  %v3030 = vadd.f32 %v2717, %v2971
  %v3031 = vadd.f32 %v2720, %v2974
  %v3032 = vadd.f32 %v2723, %v2977
  %v3033 = vadd.f32 %v2726, %v2980
  %v3034 = vadd.f32 %v2729, %v2983
  %v3035 = vadd.f32 %v2732, %v2986
  %v3036 = vadd.f32 %v2735, %v2989
  %v3037 = vadd.f32 %v2738, %v2992
  %v3038 = vadd.f32 %v2741, %v2995
  %v3039 = vadd.f32 %v2744, %v2998
  %v3040 = vadd.f32 %v2747, %v3001
  %v3041 = vadd.f32 %v2750, %v3004
  %v3042 = vadd.f32 %v2753, %v3007
  %v3043 = vadd.f32 %v2756, %v3010
  %v3044 = vld [vmem:[%s5] sm:$0x1]
  %v3046 = vperm.slane %v3044, 0
  %v3048 = vmul.f32 %v3012, %v3046
  %v3049 = vmul.f32 %v3013, %v3046
  %v3050 = vmul.f32 %v3014, %v3046
  %v3051 = vmul.f32 %v3015, %v3046
  %v3052 = vmul.f32 %v3016, %v3046
  %v3053 = vmul.f32 %v3017, %v3046
  %v3054 = vmul.f32 %v3018, %v3046
  %v3055 = vmul.f32 %v3019, %v3046
  %v3056 = vmul.f32 %v3020, %v3046
  %v3057 = vmul.f32 %v3021, %v3046
  %v3058 = vmul.f32 %v3022, %v3046
  %v3059 = vmul.f32 %v3023, %v3046
  %v3060 = vmul.f32 %v3024, %v3046
  %v3061 = vmul.f32 %v3025, %v3046
  %v3062 = vmul.f32 %v3026, %v3046
  %v3063 = vmul.f32 %v3027, %v3046
  %v3064 = vmul.f32 %v3028, %v3046
  %v3065 = vmul.f32 %v3029, %v3046
  %v3066 = vmul.f32 %v3030, %v3046
  %v3067 = vmul.f32 %v3031, %v3046
  %v3068 = vmul.f32 %v3032, %v3046
  %v3069 = vmul.f32 %v3033, %v3046
  %v3070 = vmul.f32 %v3034, %v3046
  %v3071 = vmul.f32 %v3035, %v3046
  %v3072 = vmul.f32 %v3036, %v3046
  %v3073 = vmul.f32 %v3037, %v3046
  %v3074 = vmul.f32 %v3038, %v3046
  %v3075 = vmul.f32 %v3039, %v3046
  %v3076 = vmul.f32 %v3040, %v3046
  %v3077 = vmul.f32 %v3041, %v3046
  %v3078 = vmul.f32 %v3042, %v3046
  %v3079 = vmul.f32 %v3043, %v3046
  %v3080 = vld [vmem:[%s6] sm:$0x1]
  %v3082 = vperm.slane %v3080, 0
  %v3084 = vadd.f32 %v3048, %v3082
  %v3085 = vadd.f32 %v3049, %v3082
  %v3086 = vadd.f32 %v3050, %v3082
  %v3087 = vadd.f32 %v3051, %v3082
  %v3088 = vadd.f32 %v3052, %v3082
  %v3089 = vadd.f32 %v3053, %v3082
  %v3090 = vadd.f32 %v3054, %v3082
  %v3091 = vadd.f32 %v3055, %v3082
  %v3092 = vadd.f32 %v3056, %v3082
  %v3093 = vadd.f32 %v3057, %v3082
  %v3094 = vadd.f32 %v3058, %v3082
  %v3095 = vadd.f32 %v3059, %v3082
  %v3096 = vadd.f32 %v3060, %v3082
  %v3097 = vadd.f32 %v3061, %v3082
  %v3098 = vadd.f32 %v3062, %v3082
  %v3099 = vadd.f32 %v3063, %v3082
  %v3100 = vadd.f32 %v3064, %v3082
  %v3101 = vadd.f32 %v3065, %v3082
  %v3102 = vadd.f32 %v3066, %v3082
  %v3103 = vadd.f32 %v3067, %v3082
  %v3104 = vadd.f32 %v3068, %v3082
  %v3105 = vadd.f32 %v3069, %v3082
  %v3106 = vadd.f32 %v3070, %v3082
  %v3107 = vadd.f32 %v3071, %v3082
  %v3108 = vadd.f32 %v3072, %v3082
  %v3109 = vadd.f32 %v3073, %v3082
  %v3110 = vadd.f32 %v3074, %v3082
  %v3111 = vadd.f32 %v3075, %v3082
  %v3112 = vadd.f32 %v3076, %v3082
  %v3113 = vadd.f32 %v3077, %v3082
  %v3114 = vadd.f32 %v3078, %v3082
  %v3115 = vadd.f32 %v3079, %v3082
  %v3116 = vadd.f32 %v3084, %v3085
  %v3117 = vadd.f32 %v3116, %v3086
  %v3118 = vadd.f32 %v3117, %v3087
  %v3119 = vadd.f32 %v3118, %v3088
  %v3120 = vadd.f32 %v3119, %v3089
  %v3121 = vadd.f32 %v3120, %v3090
  %v3122 = vadd.f32 %v3121, %v3091
  %v3123 = vrot.slane %v3122, 4
  %v3124 = vadd.f32 %v3122, %v3123
  %v3125 = vrot.slane %v3124, 2
  %v3126 = vadd.f32 %v3124, %v3125
  %v3127 = vrot.slane %v3126, 1
  %v3128 = vadd.f32 %v3126, %v3127
  %v3129 = vadd.f32 %v3092, %v3093
  %v3130 = vadd.f32 %v3129, %v3094
  %v3131 = vadd.f32 %v3130, %v3095
  %v3132 = vadd.f32 %v3131, %v3096
  %v3133 = vadd.f32 %v3132, %v3097
  %v3134 = vadd.f32 %v3133, %v3098
  %v3135 = vadd.f32 %v3134, %v3099
  %v3136 = vrot.slane %v3135, 4
  %v3137 = vadd.f32 %v3135, %v3136
  %v3138 = vrot.slane %v3137, 2
  %v3139 = vadd.f32 %v3137, %v3138
  %v3140 = vrot.slane %v3139, 1
  %v3141 = vadd.f32 %v3139, %v3140
  %v3142 = vadd.f32 %v3100, %v3101
  %v3143 = vadd.f32 %v3142, %v3102
  %v3144 = vadd.f32 %v3143, %v3103
  %v3145 = vadd.f32 %v3144, %v3104
  %v3146 = vadd.f32 %v3145, %v3105
  %v3147 = vadd.f32 %v3146, %v3106
  %v3148 = vadd.f32 %v3147, %v3107
  %v3149 = vrot.slane %v3148, 4
  %v3150 = vadd.f32 %v3148, %v3149
  %v3151 = vrot.slane %v3150, 2
  %v3152 = vadd.f32 %v3150, %v3151
  %v3153 = vrot.slane %v3152, 1
  %v3154 = vadd.f32 %v3152, %v3153
  %v3155 = vadd.f32 %v3108, %v3109
  %v3156 = vadd.f32 %v3155, %v3110
  %v3157 = vadd.f32 %v3156, %v3111
  %v3158 = vadd.f32 %v3157, %v3112
  %v3159 = vadd.f32 %v3158, %v3113
  %v3160 = vadd.f32 %v3159, %v3114
  %v3161 = vadd.f32 %v3160, %v3115
  %v3162 = vrot.slane %v3161, 4
  %v3163 = vadd.f32 %v3161, %v3162
  %v3164 = vrot.slane %v3163, 2
  %v3165 = vadd.f32 %v3163, %v3164
  %v3166 = vrot.slane %v3165, 1
  %v3167 = vadd.f32 %v3165, %v3166
  %v3168 = vrcp.pop 64.0
  %v3169 = vmul.f32 64.0, %v3168
  %v3170 = vsub.f32 1.0, %v3169
  %v3171 = vmul.f32 %v3168, %v3170
  %v3172 = vadd.f32 %v3168, %v3171
  %vm3173 = vweird.f32 %v3168
  %v3174 = vsel %vm3173, %v3168, %v3172
  %v3175 = vmul.f32 %v3128, %v3174
  %v3176 = vmul.f32 %v3141, %v3174
  %v3177 = vmul.f32 %v3154, %v3174
  %v3178 = vmul.f32 %v3167, %v3174
  %v3179 = vld [vmem:[%s7] sm:$0x3]
  %v3180 = vmul.f32 %v3175, %v3179
  %v3181 = vmul.f32 %v3176, %v3179
  %v3182 = vmul.f32 %v3177, %v3179
  %v3183 = vmul.f32 %v3178, %v3179
  %vm3184 = vcmask 1041408
  %v3185 = vsel %vm3184, %v3180, 0.0
  %3186 = vadd.xlane.f32.xlu0 %v3185
  %v3187 = vpop.xlane.xlu0 %3186
  %v3188 = vsel %vm3184, %v3181, 0.0
  %3189 = vadd.xlane.f32.xlu0 %v3188
  %v3190 = vpop.xlane.xlu0 %3189
  %v3191 = vsel %vm3184, %v3182, 0.0
  %3192 = vadd.xlane.f32.xlu0 %v3191
  %v3193 = vpop.xlane.xlu0 %3192
  %v3194 = vsel %vm3184, %v3183, 0.0
  %3195 = vadd.xlane.f32.xlu0 %v3194
  %v3196 = vpop.xlane.xlu0 %3195
  %v3197 = vmax.f32 %v3187, 0.0
  %v3198 = vmax.f32 %v3190, 0.0
  %v3199 = vmax.f32 %v3193, 0.0
  %v3200 = vmax.f32 %v3196, 0.0
  %v3201 = vld [vmem:[%s8] sm:$0x3]
  %v3202 = vmul.f32 %v3197, %v3201
  %v3203 = vmul.f32 %v3198, %v3201
  %v3204 = vmul.f32 %v3199, %v3201
  %v3205 = vmul.f32 %v3200, %v3201
  %v3206 = vsel %vm3184, %v3202, 0.0
  %v3207 = vrot.slane %v3206, 4
  %v3208 = vadd.f32 %v3206, %v3207
  %v3209 = vrot.slane %v3208, 2
  %v3210 = vadd.f32 %v3208, %v3209
  %v3211 = vrot.slane %v3210, 1
  %v3212 = vadd.f32 %v3210, %v3211
  %v3213 = vsel %vm3184, %v3203, 0.0
  %v3214 = vrot.slane %v3213, 4
  %v3215 = vadd.f32 %v3213, %v3214
  %v3216 = vrot.slane %v3215, 2
  %v3217 = vadd.f32 %v3215, %v3216
  %v3218 = vrot.slane %v3217, 1
  %v3219 = vadd.f32 %v3217, %v3218
  %v3220 = vsel %vm3184, %v3204, 0.0
  %v3221 = vrot.slane %v3220, 4
  %v3222 = vadd.f32 %v3220, %v3221
  %v3223 = vrot.slane %v3222, 2
  %v3224 = vadd.f32 %v3222, %v3223
  %v3225 = vrot.slane %v3224, 1
  %v3226 = vadd.f32 %v3224, %v3225
  %v3227 = vsel %vm3184, %v3205, 0.0
  %v3228 = vrot.slane %v3227, 4
  %v3229 = vadd.f32 %v3227, %v3228
  %v3230 = vrot.slane %v3229, 2
  %v3231 = vadd.f32 %v3229, %v3230
  %v3232 = vrot.slane %v3231, 1
  %v3233 = vadd.f32 %v3231, %v3232
  %v3234 = vxor.u32 %v3212, 2147483648
  %v3235 = vxor.u32 %v3219, 2147483648
  %v3236 = vxor.u32 %v3226, 2147483648
  %v3237 = vxor.u32 %v3233, 2147483648
  %v3238 = vmul.f32 %v3234, 1.442695
  %v3239 = vpow.pop %v3238
  %v3240 = vmul.f32 %v3235, 1.442695
  %v3241 = vpow.pop %v3240
  %v3242 = vmul.f32 %v3236, 1.442695
  %v3243 = vpow.pop %v3242
  %v3244 = vmul.f32 %v3237, 1.442695
  %v3245 = vpow.pop %v3244
  %v3246 = vadd.f32 %v3239, 1.0
  %v3247 = vadd.f32 %v3241, 1.0
  %v3248 = vadd.f32 %v3243, 1.0
  %v3249 = vadd.f32 %v3245, 1.0
  %v3250 = vrcp.pop %v3246
  %v3251 = vmul.f32 %v3246, %v3250
  %v3252 = vsub.f32 1.0, %v3251
  %v3253 = vmul.f32 %v3250, %v3252
  %v3254 = vadd.f32 %v3250, %v3253
  %vm3255 = vweird.f32 %v3246
  %vm3256 = vweird.f32 %v3250
  %vm3257 = vmor %vm3255, %vm3256
  %v3258 = vsel %vm3257, %v3250, %v3254
  %v3259 = vand.u32 2147483647, %v3246
  %vm3260 = vcmp.eq.f32.partialorder %v3259, 8.507059e+37
  %v3261 = vand.u32 %v3246, 2147483648
  %v3262 = vor.u32 1.1754944e-38, %v3261
  %v3263 = vsel %vm3260, %v3262, %v3258
  %v3264 = vmul.f32 1.0, %v3263
  %v3265 = vrcp.pop %v3247
  %v3266 = vmul.f32 %v3247, %v3265
  %v3267 = vsub.f32 1.0, %v3266
  %v3268 = vmul.f32 %v3265, %v3267
  %v3269 = vadd.f32 %v3265, %v3268
  %vm3270 = vweird.f32 %v3247
  %vm3271 = vweird.f32 %v3265
  %vm3272 = vmor %vm3270, %vm3271
  %v3273 = vsel %vm3272, %v3265, %v3269
  %v3274 = vand.u32 2147483647, %v3247
  %vm3275 = vcmp.eq.f32.partialorder %v3274, 8.507059e+37
  %v3276 = vand.u32 %v3247, 2147483648
  %v3277 = vor.u32 1.1754944e-38, %v3276
  %v3278 = vsel %vm3275, %v3277, %v3273
  %v3279 = vmul.f32 1.0, %v3278
  %v3280 = vrcp.pop %v3248
  %v3281 = vmul.f32 %v3248, %v3280
  %v3282 = vsub.f32 1.0, %v3281
  %v3283 = vmul.f32 %v3280, %v3282
  %v3284 = vadd.f32 %v3280, %v3283
  %vm3285 = vweird.f32 %v3248
  %vm3286 = vweird.f32 %v3280
  %vm3287 = vmor %vm3285, %vm3286
  %v3288 = vsel %vm3287, %v3280, %v3284
  %v3289 = vand.u32 2147483647, %v3248
  %vm3290 = vcmp.eq.f32.partialorder %v3289, 8.507059e+37
  %v3291 = vand.u32 %v3248, 2147483648
  %v3292 = vor.u32 1.1754944e-38, %v3291
  %v3293 = vsel %vm3290, %v3292, %v3288
  %v3294 = vmul.f32 1.0, %v3293
  %v3295 = vrcp.pop %v3249
  %v3296 = vmul.f32 %v3249, %v3295
  %v3297 = vsub.f32 1.0, %v3296
  %v3298 = vmul.f32 %v3295, %v3297
  %v3299 = vadd.f32 %v3295, %v3298
  %vm3300 = vweird.f32 %v3249
  %vm3301 = vweird.f32 %v3295
  %vm3302 = vmor %vm3300, %vm3301
  %v3303 = vsel %vm3302, %v3295, %v3299
  %v3304 = vand.u32 2147483647, %v3249
  %vm3305 = vcmp.eq.f32.partialorder %v3304, 8.507059e+37
  %v3306 = vand.u32 %v3249, 2147483648
  %v3307 = vor.u32 1.1754944e-38, %v3306
  %v3308 = vsel %vm3305, %v3307, %v3303
  %v3309 = vmul.f32 1.0, %v3308
  %v3310 = vmul.f32 %v3084, %v3264
  %v3311 = vmul.f32 %v3085, %v3264
  %v3312 = vmul.f32 %v3086, %v3264
  %v3313 = vmul.f32 %v3087, %v3264
  %v3314 = vmul.f32 %v3088, %v3264
  %v3315 = vmul.f32 %v3089, %v3264
  %v3316 = vmul.f32 %v3090, %v3264
  %v3317 = vmul.f32 %v3091, %v3264
  %v3318 = vmul.f32 %v3092, %v3279
  %v3319 = vmul.f32 %v3093, %v3279
  %v3320 = vmul.f32 %v3094, %v3279
  %v3321 = vmul.f32 %v3095, %v3279
  %v3322 = vmul.f32 %v3096, %v3279
  %v3323 = vmul.f32 %v3097, %v3279
  %v3324 = vmul.f32 %v3098, %v3279
  %v3325 = vmul.f32 %v3099, %v3279
  %v3326 = vmul.f32 %v3100, %v3294
  %v3327 = vmul.f32 %v3101, %v3294
  %v3328 = vmul.f32 %v3102, %v3294
  %v3329 = vmul.f32 %v3103, %v3294
  %v3330 = vmul.f32 %v3104, %v3294
  %v3331 = vmul.f32 %v3105, %v3294
  %v3332 = vmul.f32 %v3106, %v3294
  %v3333 = vmul.f32 %v3107, %v3294
  %v3334 = vmul.f32 %v3108, %v3309
  %v3335 = vmul.f32 %v3109, %v3309
  %v3336 = vmul.f32 %v3110, %v3309
  %v3337 = vmul.f32 %v3111, %v3309
  %v3338 = vmul.f32 %v3112, %v3309
  %v3339 = vmul.f32 %v3113, %v3309
  %v3340 = vmul.f32 %v3114, %v3309
  %v3341 = vmul.f32 %v3115, %v3309
  %v3342 = vld [vmem:[%s0] sm:$0xff]
  %v3343 = vld [vmem:[%s0 + $0x8] sm:$0xff]
  %v3344 = vld [vmem:[%s0 + $0x10] sm:$0xff]
  %v3345 = vld [vmem:[%s0 + $0x18] sm:$0xff]
  %v3346 = vld [vmem:[%s0 + $0x20] sm:$0xff]
  %v3347 = vld [vmem:[%s0 + $0x28] sm:$0xff]
  %v3348 = vld [vmem:[%s0 + $0x30] sm:$0xff]
  %v3349 = vld [vmem:[%s0 + $0x38] sm:$0xff]
  %v3350 = vld [vmem:[%s0 + $0x40] sm:$0xff]
  %v3351 = vld [vmem:[%s0 + $0x48] sm:$0xff]
  %v3352 = vld [vmem:[%s0 + $0x50] sm:$0xff]
  %v3353 = vld [vmem:[%s0 + $0x58] sm:$0xff]
  %v3354 = vld [vmem:[%s0 + $0x60] sm:$0xff]
  %v3355 = vld [vmem:[%s0 + $0x68] sm:$0xff]
  %v3356 = vld [vmem:[%s0 + $0x70] sm:$0xff]
  %v3357 = vld [vmem:[%s0 + $0x78] sm:$0xff]
  %v3358 = vld [vmem:[%s0 + $0x80] sm:$0xff]
  %v3359 = vld [vmem:[%s0 + $0x88] sm:$0xff]
  %v3360 = vld [vmem:[%s0 + $0x90] sm:$0xff]
  %v3361 = vld [vmem:[%s0 + $0x98] sm:$0xff]
  %v3362 = vld [vmem:[%s0 + $0xa0] sm:$0xff]
  %v3363 = vld [vmem:[%s0 + $0xa8] sm:$0xff]
  %v3364 = vld [vmem:[%s0 + $0xb0] sm:$0xff]
  %v3365 = vld [vmem:[%s0 + $0xb8] sm:$0xff]
  %v3366 = vld [vmem:[%s0 + $0xc0] sm:$0xff]
  %v3367 = vld [vmem:[%s0 + $0xc8] sm:$0xff]
  %v3368 = vld [vmem:[%s0 + $0xd0] sm:$0xff]
  %v3369 = vld [vmem:[%s0 + $0xd8] sm:$0xff]
  %v3370 = vld [vmem:[%s0 + $0xe0] sm:$0xff]
  %v3371 = vld [vmem:[%s0 + $0xe8] sm:$0xff]
  %v3372 = vld [vmem:[%s0 + $0xf0] sm:$0xff]
  %v3373 = vld [vmem:[%s0 + $0xf8] sm:$0xff]
  %v3374 = vsel %vm32, %v3342, 0.0
  %v3375 = vsel %vm32, %v3343, 0.0
  %v3376 = vsel %vm32, %v3344, 0.0
  %v3377 = vsel %vm32, %v3345, 0.0
  %v3378 = vsel %vm32, %v3346, 0.0
  %v3379 = vsel %vm32, %v3347, 0.0
  %v3380 = vsel %vm32, %v3348, 0.0
  %v3381 = vsel %vm32, %v3349, 0.0
  %v3382 = vsel %vm32, %v3350, 0.0
  %v3383 = vsel %vm32, %v3351, 0.0
  %v3384 = vsel %vm32, %v3352, 0.0
  %v3385 = vsel %vm32, %v3353, 0.0
  %v3386 = vsel %vm32, %v3354, 0.0
  %v3387 = vsel %vm32, %v3355, 0.0
  %v3388 = vsel %vm32, %v3356, 0.0
  %v3389 = vsel %vm32, %v3357, 0.0
  %v3390 = vsel %vm32, %v3358, 0.0
  %v3391 = vsel %vm32, %v3359, 0.0
  %v3392 = vsel %vm32, %v3360, 0.0
  %v3393 = vsel %vm32, %v3361, 0.0
  %v3394 = vsel %vm32, %v3362, 0.0
  %v3395 = vsel %vm32, %v3363, 0.0
  %v3396 = vsel %vm32, %v3364, 0.0
  %v3397 = vsel %vm32, %v3365, 0.0
  %v3398 = vsel %vm32, %v3366, 0.0
  %v3399 = vsel %vm32, %v3367, 0.0
  %v3400 = vsel %vm32, %v3368, 0.0
  %v3401 = vsel %vm32, %v3369, 0.0
  %v3402 = vsel %vm32, %v3370, 0.0
  %v3403 = vsel %vm32, %v3371, 0.0
  %v3404 = vsel %vm32, %v3372, 0.0
  %v3405 = vsel %vm32, %v3373, 0.0
  %v3406 = vadd.f32 %v3310, %v3374
  %v3407 = vadd.f32 %v3311, %v3375
  %v3408 = vadd.f32 %v3312, %v3376
  %v3409 = vadd.f32 %v3313, %v3377
  %v3410 = vadd.f32 %v3314, %v3378
  %v3411 = vadd.f32 %v3315, %v3379
  %v3412 = vadd.f32 %v3316, %v3380
  %v3413 = vadd.f32 %v3317, %v3381
  %v3414 = vadd.f32 %v3318, %v3382
  %v3415 = vadd.f32 %v3319, %v3383
  %v3416 = vadd.f32 %v3320, %v3384
  %v3417 = vadd.f32 %v3321, %v3385
  %v3418 = vadd.f32 %v3322, %v3386
  %v3419 = vadd.f32 %v3323, %v3387
  %v3420 = vadd.f32 %v3324, %v3388
  %v3421 = vadd.f32 %v3325, %v3389
  %v3422 = vadd.f32 %v3326, %v3390
  %v3423 = vadd.f32 %v3327, %v3391
  %v3424 = vadd.f32 %v3328, %v3392
  %v3425 = vadd.f32 %v3329, %v3393
  %v3426 = vadd.f32 %v3330, %v3394
  %v3427 = vadd.f32 %v3331, %v3395
  %v3428 = vadd.f32 %v3332, %v3396
  %v3429 = vadd.f32 %v3333, %v3397
  %v3430 = vadd.f32 %v3334, %v3398
  %v3431 = vadd.f32 %v3335, %v3399
  %v3432 = vadd.f32 %v3336, %v3400
  %v3433 = vadd.f32 %v3337, %v3401
  %v3434 = vadd.f32 %v3338, %v3402
  %v3435 = vadd.f32 %v3339, %v3403
  %v3436 = vadd.f32 %v3340, %v3404
  %v3437 = vadd.f32 %v3341, %v3405
  %v3438 = vmax.f32 %v3406, 0.0
  %v3439 = vmax.f32 %v3407, 0.0
  %v3440 = vmax.f32 %v3408, 0.0
  %v3441 = vmax.f32 %v3409, 0.0
  %v3442 = vmax.f32 %v3410, 0.0
  %v3443 = vmax.f32 %v3411, 0.0
  %v3444 = vmax.f32 %v3412, 0.0
  %v3445 = vmax.f32 %v3413, 0.0
  %v3446 = vmax.f32 %v3414, 0.0
  %v3447 = vmax.f32 %v3415, 0.0
  %v3448 = vmax.f32 %v3416, 0.0
  %v3449 = vmax.f32 %v3417, 0.0
  %v3450 = vmax.f32 %v3418, 0.0
  %v3451 = vmax.f32 %v3419, 0.0
  %v3452 = vmax.f32 %v3420, 0.0
  %v3453 = vmax.f32 %v3421, 0.0
  %v3454 = vmax.f32 %v3422, 0.0
  %v3455 = vmax.f32 %v3423, 0.0
  %v3456 = vmax.f32 %v3424, 0.0
  %v3457 = vmax.f32 %v3425, 0.0
  %v3458 = vmax.f32 %v3426, 0.0
  %v3459 = vmax.f32 %v3427, 0.0
  %v3460 = vmax.f32 %v3428, 0.0
  %v3461 = vmax.f32 %v3429, 0.0
  %v3462 = vmax.f32 %v3430, 0.0
  %v3463 = vmax.f32 %v3431, 0.0
  %v3464 = vmax.f32 %v3432, 0.0
  %v3465 = vmax.f32 %v3433, 0.0
  %v3466 = vmax.f32 %v3434, 0.0
  %v3467 = vmax.f32 %v3435, 0.0
  %v3468 = vmax.f32 %v3436, 0.0
  %v3469 = vmax.f32 %v3437, 0.0
  %3470 = vst [vmem:[%s9] sm:$0xff] %v3438
  %3471 = vst [vmem:[%s9 + $0x8] sm:$0xff] %v3439
  %3472 = vst [vmem:[%s9 + $0x10] sm:$0xff] %v3440
  %3473 = vst [vmem:[%s9 + $0x18] sm:$0xff] %v3441
  %3474 = vst [vmem:[%s9 + $0x20] sm:$0xff] %v3442
  %3475 = vst [vmem:[%s9 + $0x28] sm:$0xff] %v3443
  %3476 = vst [vmem:[%s9 + $0x30] sm:$0xff] %v3444
  %3477 = vst [vmem:[%s9 + $0x38] sm:$0xff] %v3445
  %3478 = vst [vmem:[%s9 + $0x40] sm:$0xff] %v3446
  %3479 = vst [vmem:[%s9 + $0x48] sm:$0xff] %v3447
  %3480 = vst [vmem:[%s9 + $0x50] sm:$0xff] %v3448
  %3481 = vst [vmem:[%s9 + $0x58] sm:$0xff] %v3449
  %3482 = vst [vmem:[%s9 + $0x60] sm:$0xff] %v3450
  %3483 = vst [vmem:[%s9 + $0x68] sm:$0xff] %v3451
  %3484 = vst [vmem:[%s9 + $0x70] sm:$0xff] %v3452
  %3485 = vst [vmem:[%s9 + $0x78] sm:$0xff] %v3453
  %3486 = vst [vmem:[%s9 + $0x80] sm:$0xff] %v3454
  %3487 = vst [vmem:[%s9 + $0x88] sm:$0xff] %v3455
  %3488 = vst [vmem:[%s9 + $0x90] sm:$0xff] %v3456
  %3489 = vst [vmem:[%s9 + $0x98] sm:$0xff] %v3457
  %3490 = vst [vmem:[%s9 + $0xa0] sm:$0xff] %v3458
  %3491 = vst [vmem:[%s9 + $0xa8] sm:$0xff] %v3459
  %3492 = vst [vmem:[%s9 + $0xb0] sm:$0xff] %v3460
  %3493 = vst [vmem:[%s9 + $0xb8] sm:$0xff] %v3461
  %3494 = vst [vmem:[%s9 + $0xc0] sm:$0xff] %v3462
  %3495 = vst [vmem:[%s9 + $0xc8] sm:$0xff] %v3463
  %3496 = vst [vmem:[%s9 + $0xd0] sm:$0xff] %v3464
  %3497 = vst [vmem:[%s9 + $0xd8] sm:$0xff] %v3465
  %3498 = vst [vmem:[%s9 + $0xe0] sm:$0xff] %v3466
  %3499 = vst [vmem:[%s9 + $0xe8] sm:$0xff] %v3467
  %3500 = vst [vmem:[%s9 + $0xf0] sm:$0xff] %v3468
  %3501 = vst [vmem:[%s9 + $0xf8] sm:$0xff] %v3469
  // Predicated region
  $region38: #{residual_se_block.1} parent=0 // pred_check
    _
  $region39: #{residual_se_block.1} parent=0 // pred_check_branch
    %3503 = sbr.rel (0) target = $region41
  $region40: #{residual_se_block.1} parent=0 // pred_region
    _
  $region41: #{residual_se_block.1} parent=0 // pred_fallthru
    _
  // Predicated region
  $region42: #{residual_se_block.1} parent=0 // pred_check
    _
  $region43: #{residual_se_block.1} parent=0 // pred_check_branch
    %3505 = sbr.rel (0) target = $region45
  $region44: #{residual_se_block.1} parent=0 // pred_region
    _
  $region45: #{residual_se_block.1} parent=0 // pred_fallthru
    _

</llo_original>
